<compile_context>
chip_gen: v7x
topology: tpu7x:2x2x1
jax: 0.10.0
libtpu: 0.0.40
codegen_flags: <defaults>
</compile_context>

<pallas_src>
import numpy as np
import jax
import jax.numpy as jnp
from jax.experimental import pallas as pl
from jax.experimental.pallas import tpu as pltpu

LEAKY_SLOPE = 0.01   # nn.LeakyReLU() default negative_slope
BN_EPS = 1e-5        # nn.BatchNorm2d default eps


# ---------------------------------------------------------------------------
# Fused Pallas kernel
# ---------------------------------------------------------------------------
def _bn_lrelu(y, gamma, beta):
    """Training-mode BatchNorm over rows (= B*H*W) per channel column + LeakyReLU."""
    mean = jnp.mean(y, axis=0, keepdims=True)
    var = jnp.mean(y * y, axis=0, keepdims=True) - mean * mean   # single pass
    scale = gamma * jax.lax.rsqrt(var + BN_EPS)                   # gamma folded in
    y = y * scale + (beta - mean * scale)
    # TODO(synk): running_mean / running_var buffer updates (training-side
    # bookkeeping) are not emitted; they do not affect the returned tensors.
    return jnp.where(y > 0, y, LEAKY_SLOPE * y)


def _conv_gather(a_prev, gth_ref, w_ref):
    """Conv2d(3x3, stride=2, pad=1) on an [N_prev, Cin] activation.

    Computes sum_t (G_t @ a_prev) @ W_t where G_t is a constant 0/1
    row-selection matrix implementing the tap-t gather (all-zero rows encode
    the padding).  Only jnp.dot / add -> safe, exact, and stays on the MXU.
    """
    acc = None
    for t in range(gth_ref.shape[0]):
        rows = jnp.dot(gth_ref[t], a_prev, preferred_element_type=jnp.float32)
        term = jnp.dot(rows, w_ref[t], preferred_element_type=jnp.float32)
        acc = term if acc is None else acc + term
    return acc


def _encoder_fused_kernel(p1_ref, w1_ref, gam1_ref, bet1_ref,
                          gth2_ref, w2_ref, gam2_ref, bet2_ref,
                          gth3_ref, w3_ref, gam3_ref, bet3_ref,
                          sel_ref, whmu_ref, whlv_ref, bmu_ref, blv_ref,
                          eps_ref, z_ref, mu_ref, lv_ref):
    # ---- layer 1: patches built once (from the raw input) in the wrapper ----
    y1 = jnp.dot(p1_ref[...], w1_ref[...], preferred_element_type=jnp.float32)
    a1 = _bn_lrelu(y1, gam1_ref[...], bet1_ref[...])

    # ---- layers 2 / 3: gather + matmul entirely in VMEM ----------------------
    a2 = _bn_lrelu(_conv_gather(a1, gth2_ref, w2_ref), gam2_ref[...], bet2_ref[...])
    a3 = _bn_lrelu(_conv_gather(a2, gth3_ref, w3_ref), gam3_ref[...], bet3_ref[...])

    # ---- head: NCHW flatten + mu/logvar projections --------------------------
    # One row-gather per spatial position (same selection-matmul trick), shared
    # between the mu and logvar projections.
    mu = None
    lv = None
    for s in range(sel_ref.shape[0]):
        rows = jnp.dot(sel_ref[s], a3, preferred_element_type=jnp.float32)
        mu_t = jnp.dot(rows, whmu_ref[s], preferred_element_type=jnp.float32)
        lv_t = jnp.dot(rows, whlv_ref[s], preferred_element_type=jnp.float32)
        mu = mu_t if mu is None else mu + mu_t
        lv = lv_t if lv is None else lv + lv_t
    mu = mu + bmu_ref[...]
    lv = lv + blv_ref[...]

    sigma = jnp.exp(lv * 0.5)
    z_ref[...] = eps_ref[...] * sigma + mu   # eps ~ U[0,1): faithful port of torch.rand_like
    mu_ref[...] = mu
    lv_ref[...] = lv


def _vmem_spec():
    return pl.BlockSpec(memory_space=pltpu.MemorySpace.VMEM)


# ---------------------------------------------------------------------------
# Init-time constant operands (gather matrices, repacked weights) + glue
# ---------------------------------------------------------------------------
def _im2col(x_nchw, stride=2, pad=1, k=3):
    """Patch matrix [B*Ho*Wo, C*k*k]; rows (b,ho,wo), cols (c,kh,kw) = torch order."""
    B, C, H, W = x_nchw.shape
    Ho = (H + 2 * pad - k) // stride + 1
    Wo = (W + 2 * pad - k) // stride + 1
    xp = jnp.pad(x_nchw, ((0, 0), (0, 0), (pad, pad), (pad, pad)))
    taps = []
    for kh in range(k):
        for kw in range(k):
            taps.append(xp[:, :, kh:kh + stride * Ho:stride,
                              kw:kw + stride * Wo:stride])
    patches = jnp.stack(taps, axis=2)                              # [B, C, 9, Ho, Wo]
    patches = jnp.transpose(patches, (0, 3, 4, 1, 2)).reshape(B * Ho * Wo, C * k * k)
    return patches, Ho, Wo


def _gather_mats(batch, hi, wi):
    """[9, B*Ho*Wo, B*Hi*Wi] 0/1 gather matrices for a 3x3 / stride-2 / pad-1 conv."""
    ho, wo = hi // 2, wi // 2
    g = np.zeros((9, batch * ho * wo, batch * hi * wi), np.float32)
    for kh in range(3):
        for kw in range(3):
            t = kh * 3 + kw
            for b in range(batch):
                for oh in range(ho):
                    for ow in range(wo):
                        ih = 2 * oh + kh - 1
                        iw = 2 * ow + kw - 1
                        if 0 <= ih < hi and 0 <= iw < wi:
                            g[t, (b * ho + oh) * wo + ow,
                              (b * hi + ih) * wi + iw] = 1.0
    return jnp.asarray(g)


def _head_sel(batch, spatial):
    """[S, B, B*S] 0/1 matrices selecting spatial position s of every batch element."""
    sel = np.zeros((spatial, batch, batch * spatial), np.float32)
    for s in range(spatial):
        for b in range(batch):
            sel[s, b, b * spatial + s] = 1.0
    return jnp.asarray(sel)


def prepare_operands(params, batch, input_shape):
    """One-time repack of the torch-layout parameters into fused-kernel operands."""
    (cw1, _b1, gam1, bet1), (cw2, _b2, gam2, bet2), (cw3, _b3, gam3, bet3) = params["convs"]
    # Conv biases (_b1/_b2/_b3) are intentionally dropped: a per-channel bias
    # added before training-mode BatchNorm is exactly cancelled by the mean
    # subtraction, so it is dead work in the forward pass.
    h, w = input_shape[1], input_shape[2]
    f1, f2, f3 = cw1.shape[0], cw2.shape[0], cw3.shape[0]

    w1 = cw1.reshape(f1, -1).T                                   # [Cin*9, f1], matches patch cols
    w2_taps = jnp.transpose(cw2.reshape(f2, f1, 9), (2, 1, 0))   # [9, f1, f2]  (t, ci, co)
    w3_taps = jnp.transpose(cw3.reshape(f3, f2, 9), (2, 1, 0))   # [9, f2, f3]

    gth2 = _gather_mats(batch, h // 2, w // 2)                   # layer-2 input spatial
    gth3 = _gather_mats(batch, h // 4, w // 4)                   # layer-3 input spatial

    s3 = (h // 8) * (w // 8)
    sel = _head_sel(batch, s3)                                   # [s3, B, B*s3]

    latent = params["w_mu"].shape[1]
    # torch flattens NCHW (index c*s3 + s); permute rows so the kernel's
    # (b, h, w)-row / channel-column activation can be consumed directly.
    whmu = params["w_mu"].reshape(f3, s3, latent).transpose(1, 0, 2)   # [s3, f3, L]
    whlv = params["w_lv"].reshape(f3, s3, latent).transpose(1, 0, 2)   # [s3, f3, L]
    bmu = params["b_mu"].reshape(1, latent)
    blv = params["b_lv"].reshape(1, latent)

    return (w1, gam1.reshape(1, -1), bet1.reshape(1, -1),
            gth2, w2_taps, gam2.reshape(1, -1), bet2.reshape(1, -1),
            gth3, w3_taps, gam3.reshape(1, -1), bet3.reshape(1, -1),
            sel, whmu, whlv, bmu, blv)


@jax.jit
def encoder_forward(x, operands, eps):
    """x: [B, C+1, H, W] float32.  Returns (z, mu, logvar), each [B, latent]."""
    p1, _, _ = _im2col(x)                          # [B*H/2*W/2, (C+1)*9] — input only
    batch, latent = eps.shape
    out_sds = jax.ShapeDtypeStruct((batch, latent), jnp.float32)
    z, mu, lv = pl.pallas_call(
        _encoder_fused_kernel,
        out_shape=(out_sds, out_sds, out_sds),
        in_specs=[_vmem_spec()] * (2 + len(operands)),
        out_specs=(_vmem_spec(), _vmem_spec(), _vmem_spec()),
    )(p1, *operands, eps)
    return z, mu, lv


# ---------------------------------------------------------------------------
# Pure-JAX reference (faithful math, incl. the BN-cancelled conv bias)
# ---------------------------------------------------------------------------
def reference_forward(x, params, eps):
    h = x
    for (w, b, g, bt) in params["convs"]:
        patches, Ho, Wo = _im2col(h)
        cout = w.shape[0]
        y = patches @ w.reshape(cout, -1).T + b[None, :]
        mean = y.mean(0, keepdims=True)
        var = ((y - mean) ** 2).mean(0, keepdims=True)
        y = (y - mean) / jnp.sqrt(var + BN_EPS) * g[None, :] + bt[None, :]
        y = jnp.where(y > 0, y, LEAKY_SLOPE * y)
        h = y.reshape(h.shape[0], Ho, Wo, cout).transpose(0, 3, 1, 2)
    flat = h.reshape(h.shape[0], -1)               # NCHW flatten == torch.flatten
    mu = flat @ params["w_mu"] + params["b_mu"][None, :]
    lv = flat @ params["w_lv"] + params["b_lv"][None, :]
    z = eps * jnp.exp(0.5 * lv) + mu
    return z, mu, lv


# ---------------------------------------------------------------------------
if __name__ == "__main__":
    key = jax.random.PRNGKey(0)
    keys = jax.random.split(key, 22)
    ki = iter(keys)

    # Module config (small): input_shape = (C, H, W); encoder sees C+1 channels.
    input_shape = (3, 16, 16)
    latent_dim = 8
    max_filters = 32
    B = 2

    filters = [max_filters // 4, max_filters // 2, max_filters]   # [8, 16, 32]
    in_ch = input_shape[0] + 1                                    # 4

    convs = []
    for f in filters:
        fan_in = in_ch * 9
        w = jax.random.normal(next(ki), (f, in_ch, 3, 3), jnp.float32) / np.sqrt(fan_in)
        b = 0.1 * jax.random.normal(next(ki), (f,), jnp.float32)
        g = 1.0 + 0.1 * jax.random.normal(next(ki), (f,), jnp.float32)
        bt = 0.1 * jax.random.normal(next(ki), (f,), jnp.float32)
        convs.append((w, b, g, bt))
        in_ch = f

    flat_dim = max_filters * (input_shape[1] // 8) * (input_shape[2] // 8)   # 128
    params = {
        "convs": convs,
        "w_mu": jax.random.normal(next(ki), (flat_dim, latent_dim), jnp.float32) / np.sqrt(flat_dim),
        "b_mu": 0.1 * jax.random.normal(next(ki), (latent_dim,), jnp.float32),
        "w_lv": jax.random.normal(next(ki), (flat_dim, latent_dim), jnp.float32) / np.sqrt(flat_dim),
        "b_lv": 0.1 * jax.random.normal(next(ki), (latent_dim,), jnp.float32),
    }

    x = jax.random.normal(next(ki), (B, input_shape[0] + 1,
                                     input_shape[1], input_shape[2]), jnp.float32)
    eps = jax.random.uniform(next(ki), (B, latent_dim), dtype=jnp.float32)

    operands = prepare_operands(params, B, input_shape)

    z, mu, logvar = encoder_forward(x, operands, eps)
    jax.block_until_ready((z, mu, logvar))

    z_ref, mu_ref, lv_ref = reference_forward(x, params, eps)
    np.testing.assert_allclose(np.asarray(mu), np.asarray(mu_ref), rtol=2e-4, atol=2e-4)
    np.testing.assert_allclose(np.asarray(logvar), np.asarray(lv_ref), rtol=2e-4, atol=2e-4)
    np.testing.assert_allclose(np.asarray(z), np.asarray(z_ref), rtol=2e-4, atol=2e-4)

    print("KERNEL_OK")
</pallas_src>

<mosaic_0001>
module attributes {stable_mosaic.version = 11 : i64} {
  func.func @_encoder_fused_kernel(%arg0: memref<128x36xf32, #tpu.memory_space<vmem>>, %arg1: memref<36x8xf32, #tpu.memory_space<vmem>>, %arg2: memref<1x8xf32, #tpu.memory_space<vmem>>, %arg3: memref<1x8xf32, #tpu.memory_space<vmem>>, %arg4: memref<9x32x128xf32, #tpu.memory_space<vmem>>, %arg5: memref<9x8x16xf32, #tpu.memory_space<vmem>>, %arg6: memref<1x16xf32, #tpu.memory_space<vmem>>, %arg7: memref<1x16xf32, #tpu.memory_space<vmem>>, %arg8: memref<9x8x32xf32, #tpu.memory_space<vmem>>, %arg9: memref<9x16x32xf32, #tpu.memory_space<vmem>>, %arg10: memref<1x32xf32, #tpu.memory_space<vmem>>, %arg11: memref<1x32xf32, #tpu.memory_space<vmem>>, %arg12: memref<4x2x8xf32, #tpu.memory_space<vmem>>, %arg13: memref<4x32x8xf32, #tpu.memory_space<vmem>>, %arg14: memref<4x32x8xf32, #tpu.memory_space<vmem>>, %arg15: memref<1x8xf32, #tpu.memory_space<vmem>>, %arg16: memref<1x8xf32, #tpu.memory_space<vmem>>, %arg17: memref<2x8xf32, #tpu.memory_space<vmem>>, %arg18: memref<2x8xf32, #tpu.memory_space<vmem>>, %arg19: memref<2x8xf32, #tpu.memory_space<vmem>>, %arg20: memref<2x8xf32, #tpu.memory_space<vmem>>) attributes {dimension_semantics = [], scalar_prefetch = 0 : i64, scratch_operands = 0 : i64, tpu.core_type = #tpu.core_type<tc>} {
    %c0 = arith.constant 0 : index
    %c0_0 = arith.constant 0 : index
    %0 = vector.load %arg0[%c0, %c0_0] : memref<128x36xf32, #tpu.memory_space<vmem>>, vector<128x36xf32>
    %c0_1 = arith.constant 0 : index
    %c0_2 = arith.constant 0 : index
    %1 = vector.load %arg1[%c0_1, %c0_2] : memref<36x8xf32, #tpu.memory_space<vmem>>, vector<36x8xf32>
    %cst = arith.constant dense<0.000000e+00> : vector<128x8xf32>
    %2 = tpu.matmul %0, %1, %cst {dimension_numbers = #tpu.dot_dimension_numbers<[1], [0], [0], [1], [0, 0, 1, 1], [], []>} : vector<128x36xf32>, vector<36x8xf32>, vector<128x8xf32> -> vector<128x8xf32>
    %c0_3 = arith.constant 0 : index
    %c0_4 = arith.constant 0 : index
    %3 = vector.load %arg2[%c0_3, %c0_4] : memref<1x8xf32, #tpu.memory_space<vmem>>, vector<1x8xf32>
    %c0_5 = arith.constant 0 : index
    %c0_6 = arith.constant 0 : index
    %4 = vector.load %arg3[%c0_5, %c0_6] : memref<1x8xf32, #tpu.memory_space<vmem>>, vector<1x8xf32>
    %cst_7 = arith.constant dense<0.000000e+00> : vector<8xf32>
    %5 = vector.multi_reduction <add>, %2, %cst_7 [0] : vector<128x8xf32> to vector<8xf32>
    %6 = vector.shape_cast %5 : vector<8xf32> to vector<1x8xf32>
    %cst_8 = arith.constant 1.280000e+02 : f32
    %7 = vector.broadcast %cst_8 : f32 to vector<1x8xf32>
    %8 = arith.divf %6, %7 : vector<1x8xf32>
    %9 = arith.mulf %2, %2 : vector<128x8xf32>
    %cst_9 = arith.constant dense<0.000000e+00> : vector<8xf32>
    %10 = vector.multi_reduction <add>, %9, %cst_9 [0] : vector<128x8xf32> to vector<8xf32>
    %11 = vector.shape_cast %10 : vector<8xf32> to vector<1x8xf32>
    %cst_10 = arith.constant 1.280000e+02 : f32
    %12 = vector.broadcast %cst_10 : f32 to vector<1x8xf32>
    %13 = arith.divf %11, %12 : vector<1x8xf32>
    %14 = arith.mulf %8, %8 : vector<1x8xf32>
    %15 = arith.subf %13, %14 : vector<1x8xf32>
    %cst_11 = arith.constant 9.99999974E-6 : f32
    %16 = vector.broadcast %cst_11 : f32 to vector<1x8xf32>
    %17 = arith.addf %15, %16 : vector<1x8xf32>
    %18 = math.rsqrt %17 : vector<1x8xf32>
    %19 = arith.mulf %3, %18 : vector<1x8xf32>
    %20 = vector.broadcast %19 : vector<1x8xf32> to vector<128x8xf32>
    %21 = arith.mulf %2, %20 : vector<128x8xf32>
    %22 = arith.mulf %8, %19 : vector<1x8xf32>
    %23 = arith.subf %4, %22 : vector<1x8xf32>
    %24 = vector.broadcast %23 : vector<1x8xf32> to vector<128x8xf32>
    %25 = arith.addf %21, %24 : vector<128x8xf32>
    %cst_12 = arith.constant 0.000000e+00 : f32
    %26 = vector.broadcast %cst_12 : f32 to vector<128x8xf32>
    %27 = arith.cmpf ogt, %25, %26 : vector<128x8xf32>
    %cst_13 = arith.constant 0.00999999977 : f32
    %28 = vector.broadcast %cst_13 : f32 to vector<128x8xf32>
    %29 = arith.mulf %28, %25 : vector<128x8xf32>
    %30 = arith.select %27, %25, %29 : vector<128x8xi1>, vector<128x8xf32>
    %c0_14 = arith.constant 0 : index
    %c0_15 = arith.constant 0 : index
    %c0_16 = arith.constant 0 : index
    %31 = vector.load %arg4[%c0_14, %c0_15, %c0_16] : memref<9x32x128xf32, #tpu.memory_space<vmem>>, vector<1x32x128xf32>
    %32 = vector.shape_cast %31 : vector<1x32x128xf32> to vector<32x128xf32>
    %cst_17 = arith.constant dense<0.000000e+00> : vector<32x8xf32>
    %33 = tpu.matmul %32, %30, %cst_17 {dimension_numbers = #tpu.dot_dimension_numbers<[1], [0], [0], [1], [0, 0, 1, 1], [], []>} : vector<32x128xf32>, vector<128x8xf32>, vector<32x8xf32> -> vector<32x8xf32>
    %c0_18 = arith.constant 0 : index
    %c0_19 = arith.constant 0 : index
    %c0_20 = arith.constant 0 : index
    %34 = vector.load %arg5[%c0_18, %c0_19, %c0_20] : memref<9x8x16xf32, #tpu.memory_space<vmem>>, vector<1x8x16xf32>
    %35 = vector.shape_cast %34 : vector<1x8x16xf32> to vector<8x16xf32>
    %cst_21 = arith.constant dense<0.000000e+00> : vector<32x16xf32>
    %36 = tpu.matmul %33, %35, %cst_21 {dimension_numbers = #tpu.dot_dimension_numbers<[1], [0], [0], [1], [0, 0, 1, 1], [], []>} : vector<32x8xf32>, vector<8x16xf32>, vector<32x16xf32> -> vector<32x16xf32>
    %c1 = arith.constant 1 : index
    %c0_22 = arith.constant 0 : index
    %c0_23 = arith.constant 0 : index
    %37 = vector.load %arg4[%c1, %c0_22, %c0_23] : memref<9x32x128xf32, #tpu.memory_space<vmem>>, vector<1x32x128xf32>
    %38 = vector.shape_cast %37 : vector<1x32x128xf32> to vector<32x128xf32>
    %cst_24 = arith.constant dense<0.000000e+00> : vector<32x8xf32>
    %39 = tpu.matmul %38, %30, %cst_24 {dimension_numbers = #tpu.dot_dimension_numbers<[1], [0], [0], [1], [0, 0, 1, 1], [], []>} : vector<32x128xf32>, vector<128x8xf32>, vector<32x8xf32> -> vector<32x8xf32>
    %c1_25 = arith.constant 1 : index
    %c0_26 = arith.constant 0 : index
    %c0_27 = arith.constant 0 : index
    %40 = vector.load %arg5[%c1_25, %c0_26, %c0_27] : memref<9x8x16xf32, #tpu.memory_space<vmem>>, vector<1x8x16xf32>
    %41 = vector.shape_cast %40 : vector<1x8x16xf32> to vector<8x16xf32>
    %cst_28 = arith.constant dense<0.000000e+00> : vector<32x16xf32>
    %42 = tpu.matmul %39, %41, %cst_28 {dimension_numbers = #tpu.dot_dimension_numbers<[1], [0], [0], [1], [0, 0, 1, 1], [], []>} : vector<32x8xf32>, vector<8x16xf32>, vector<32x16xf32> -> vector<32x16xf32>
    %43 = arith.addf %36, %42 : vector<32x16xf32>
    %c2 = arith.constant 2 : index
    %c0_29 = arith.constant 0 : index
    %c0_30 = arith.constant 0 : index
    %44 = vector.load %arg4[%c2, %c0_29, %c0_30] : memref<9x32x128xf32, #tpu.memory_space<vmem>>, vector<1x32x128xf32>
    %45 = vector.shape_cast %44 : vector<1x32x128xf32> to vector<32x128xf32>
    %cst_31 = arith.constant dense<0.000000e+00> : vector<32x8xf32>
    %46 = tpu.matmul %45, %30, %cst_31 {dimension_numbers = #tpu.dot_dimension_numbers<[1], [0], [0], [1], [0, 0, 1, 1], [], []>} : vector<32x128xf32>, vector<128x8xf32>, vector<32x8xf32> -> vector<32x8xf32>
    %c2_32 = arith.constant 2 : index
    %c0_33 = arith.constant 0 : index
    %c0_34 = arith.constant 0 : index
    %47 = vector.load %arg5[%c2_32, %c0_33, %c0_34] : memref<9x8x16xf32, #tpu.memory_space<vmem>>, vector<1x8x16xf32>
    %48 = vector.shape_cast %47 : vector<1x8x16xf32> to vector<8x16xf32>
    %cst_35 = arith.constant dense<0.000000e+00> : vector<32x16xf32>
    %49 = tpu.matmul %46, %48, %cst_35 {dimension_numbers = #tpu.dot_dimension_numbers<[1], [0], [0], [1], [0, 0, 1, 1], [], []>} : vector<32x8xf32>, vector<8x16xf32>, vector<32x16xf32> -> vector<32x16xf32>
    %50 = arith.addf %43, %49 : vector<32x16xf32>
    %c3 = arith.constant 3 : index
    %c0_36 = arith.constant 0 : index
    %c0_37 = arith.constant 0 : index
    %51 = vector.load %arg4[%c3, %c0_36, %c0_37] : memref<9x32x128xf32, #tpu.memory_space<vmem>>, vector<1x32x128xf32>
    %52 = vector.shape_cast %51 : vector<1x32x128xf32> to vector<32x128xf32>
    %cst_38 = arith.constant dense<0.000000e+00> : vector<32x8xf32>
    %53 = tpu.matmul %52, %30, %cst_38 {dimension_numbers = #tpu.dot_dimension_numbers<[1], [0], [0], [1], [0, 0, 1, 1], [], []>} : vector<32x128xf32>, vector<128x8xf32>, vector<32x8xf32> -> vector<32x8xf32>
    %c3_39 = arith.constant 3 : index
    %c0_40 = arith.constant 0 : index
    %c0_41 = arith.constant 0 : index
    %54 = vector.load %arg5[%c3_39, %c0_40, %c0_41] : memref<9x8x16xf32, #tpu.memory_space<vmem>>, vector<1x8x16xf32>
    %55 = vector.shape_cast %54 : vector<1x8x16xf32> to vector<8x16xf32>
    %cst_42 = arith.constant dense<0.000000e+00> : vector<32x16xf32>
    %56 = tpu.matmul %53, %55, %cst_42 {dimension_numbers = #tpu.dot_dimension_numbers<[1], [0], [0], [1], [0, 0, 1, 1], [], []>} : vector<32x8xf32>, vector<8x16xf32>, vector<32x16xf32> -> vector<32x16xf32>
    %57 = arith.addf %50, %56 : vector<32x16xf32>
    %c4 = arith.constant 4 : index
    %c0_43 = arith.constant 0 : index
    %c0_44 = arith.constant 0 : index
    %58 = vector.load %arg4[%c4, %c0_43, %c0_44] : memref<9x32x128xf32, #tpu.memory_space<vmem>>, vector<1x32x128xf32>
    %59 = vector.shape_cast %58 : vector<1x32x128xf32> to vector<32x128xf32>
    %cst_45 = arith.constant dense<0.000000e+00> : vector<32x8xf32>
    %60 = tpu.matmul %59, %30, %cst_45 {dimension_numbers = #tpu.dot_dimension_numbers<[1], [0], [0], [1], [0, 0, 1, 1], [], []>} : vector<32x128xf32>, vector<128x8xf32>, vector<32x8xf32> -> vector<32x8xf32>
    %c4_46 = arith.constant 4 : index
    %c0_47 = arith.constant 0 : index
    %c0_48 = arith.constant 0 : index
    %61 = vector.load %arg5[%c4_46, %c0_47, %c0_48] : memref<9x8x16xf32, #tpu.memory_space<vmem>>, vector<1x8x16xf32>
    %62 = vector.shape_cast %61 : vector<1x8x16xf32> to vector<8x16xf32>
    %cst_49 = arith.constant dense<0.000000e+00> : vector<32x16xf32>
    %63 = tpu.matmul %60, %62, %cst_49 {dimension_numbers = #tpu.dot_dimension_numbers<[1], [0], [0], [1], [0, 0, 1, 1], [], []>} : vector<32x8xf32>, vector<8x16xf32>, vector<32x16xf32> -> vector<32x16xf32>
    %64 = arith.addf %57, %63 : vector<32x16xf32>
    %c5 = arith.constant 5 : index
    %c0_50 = arith.constant 0 : index
    %c0_51 = arith.constant 0 : index
    %65 = vector.load %arg4[%c5, %c0_50, %c0_51] : memref<9x32x128xf32, #tpu.memory_space<vmem>>, vector<1x32x128xf32>
    %66 = vector.shape_cast %65 : vector<1x32x128xf32> to vector<32x128xf32>
    %cst_52 = arith.constant dense<0.000000e+00> : vector<32x8xf32>
    %67 = tpu.matmul %66, %30, %cst_52 {dimension_numbers = #tpu.dot_dimension_numbers<[1], [0], [0], [1], [0, 0, 1, 1], [], []>} : vector<32x128xf32>, vector<128x8xf32>, vector<32x8xf32> -> vector<32x8xf32>
    %c5_53 = arith.constant 5 : index
    %c0_54 = arith.constant 0 : index
    %c0_55 = arith.constant 0 : index
    %68 = vector.load %arg5[%c5_53, %c0_54, %c0_55] : memref<9x8x16xf32, #tpu.memory_space<vmem>>, vector<1x8x16xf32>
    %69 = vector.shape_cast %68 : vector<1x8x16xf32> to vector<8x16xf32>
    %cst_56 = arith.constant dense<0.000000e+00> : vector<32x16xf32>
    %70 = tpu.matmul %67, %69, %cst_56 {dimension_numbers = #tpu.dot_dimension_numbers<[1], [0], [0], [1], [0, 0, 1, 1], [], []>} : vector<32x8xf32>, vector<8x16xf32>, vector<32x16xf32> -> vector<32x16xf32>
    %71 = arith.addf %64, %70 : vector<32x16xf32>
    %c6 = arith.constant 6 : index
    %c0_57 = arith.constant 0 : index
    %c0_58 = arith.constant 0 : index
    %72 = vector.load %arg4[%c6, %c0_57, %c0_58] : memref<9x32x128xf32, #tpu.memory_space<vmem>>, vector<1x32x128xf32>
    %73 = vector.shape_cast %72 : vector<1x32x128xf32> to vector<32x128xf32>
    %cst_59 = arith.constant dense<0.000000e+00> : vector<32x8xf32>
    %74 = tpu.matmul %73, %30, %cst_59 {dimension_numbers = #tpu.dot_dimension_numbers<[1], [0], [0], [1], [0, 0, 1, 1], [], []>} : vector<32x128xf32>, vector<128x8xf32>, vector<32x8xf32> -> vector<32x8xf32>
    %c6_60 = arith.constant 6 : index
    %c0_61 = arith.constant 0 : index
    %c0_62 = arith.constant 0 : index
    %75 = vector.load %arg5[%c6_60, %c0_61, %c0_62] : memref<9x8x16xf32, #tpu.memory_space<vmem>>, vector<1x8x16xf32>
    %76 = vector.shape_cast %75 : vector<1x8x16xf32> to vector<8x16xf32>
    %cst_63 = arith.constant dense<0.000000e+00> : vector<32x16xf32>
    %77 = tpu.matmul %74, %76, %cst_63 {dimension_numbers = #tpu.dot_dimension_numbers<[1], [0], [0], [1], [0, 0, 1, 1], [], []>} : vector<32x8xf32>, vector<8x16xf32>, vector<32x16xf32> -> vector<32x16xf32>
    %78 = arith.addf %71, %77 : vector<32x16xf32>
    %c7 = arith.constant 7 : index
    %c0_64 = arith.constant 0 : index
    %c0_65 = arith.constant 0 : index
    %79 = vector.load %arg4[%c7, %c0_64, %c0_65] : memref<9x32x128xf32, #tpu.memory_space<vmem>>, vector<1x32x128xf32>
    %80 = vector.shape_cast %79 : vector<1x32x128xf32> to vector<32x128xf32>
    %cst_66 = arith.constant dense<0.000000e+00> : vector<32x8xf32>
    %81 = tpu.matmul %80, %30, %cst_66 {dimension_numbers = #tpu.dot_dimension_numbers<[1], [0], [0], [1], [0, 0, 1, 1], [], []>} : vector<32x128xf32>, vector<128x8xf32>, vector<32x8xf32> -> vector<32x8xf32>
    %c7_67 = arith.constant 7 : index
    %c0_68 = arith.constant 0 : index
    %c0_69 = arith.constant 0 : index
    %82 = vector.load %arg5[%c7_67, %c0_68, %c0_69] : memref<9x8x16xf32, #tpu.memory_space<vmem>>, vector<1x8x16xf32>
    %83 = vector.shape_cast %82 : vector<1x8x16xf32> to vector<8x16xf32>
    %cst_70 = arith.constant dense<0.000000e+00> : vector<32x16xf32>
    %84 = tpu.matmul %81, %83, %cst_70 {dimension_numbers = #tpu.dot_dimension_numbers<[1], [0], [0], [1], [0, 0, 1, 1], [], []>} : vector<32x8xf32>, vector<8x16xf32>, vector<32x16xf32> -> vector<32x16xf32>
    %85 = arith.addf %78, %84 : vector<32x16xf32>
    %c8 = arith.constant 8 : index
    %c0_71 = arith.constant 0 : index
    %c0_72 = arith.constant 0 : index
    %86 = vector.load %arg4[%c8, %c0_71, %c0_72] : memref<9x32x128xf32, #tpu.memory_space<vmem>>, vector<1x32x128xf32>
    %87 = vector.shape_cast %86 : vector<1x32x128xf32> to vector<32x128xf32>
    %cst_73 = arith.constant dense<0.000000e+00> : vector<32x8xf32>
    %88 = tpu.matmul %87, %30, %cst_73 {dimension_numbers = #tpu.dot_dimension_numbers<[1], [0], [0], [1], [0, 0, 1, 1], [], []>} : vector<32x128xf32>, vector<128x8xf32>, vector<32x8xf32> -> vector<32x8xf32>
    %c8_74 = arith.constant 8 : index
    %c0_75 = arith.constant 0 : index
    %c0_76 = arith.constant 0 : index
    %89 = vector.load %arg5[%c8_74, %c0_75, %c0_76] : memref<9x8x16xf32, #tpu.memory_space<vmem>>, vector<1x8x16xf32>
    %90 = vector.shape_cast %89 : vector<1x8x16xf32> to vector<8x16xf32>
    %cst_77 = arith.constant dense<0.000000e+00> : vector<32x16xf32>
    %91 = tpu.matmul %88, %90, %cst_77 {dimension_numbers = #tpu.dot_dimension_numbers<[1], [0], [0], [1], [0, 0, 1, 1], [], []>} : vector<32x8xf32>, vector<8x16xf32>, vector<32x16xf32> -> vector<32x16xf32>
    %92 = arith.addf %85, %91 : vector<32x16xf32>
    %c0_78 = arith.constant 0 : index
    %c0_79 = arith.constant 0 : index
    %93 = vector.load %arg6[%c0_78, %c0_79] : memref<1x16xf32, #tpu.memory_space<vmem>>, vector<1x16xf32>
    %c0_80 = arith.constant 0 : index
    %c0_81 = arith.constant 0 : index
    %94 = vector.load %arg7[%c0_80, %c0_81] : memref<1x16xf32, #tpu.memory_space<vmem>>, vector<1x16xf32>
    %cst_82 = arith.constant dense<0.000000e+00> : vector<16xf32>
    %95 = vector.multi_reduction <add>, %92, %cst_82 [0] : vector<32x16xf32> to vector<16xf32>
    %96 = vector.shape_cast %95 : vector<16xf32> to vector<1x16xf32>
    %cst_83 = arith.constant 3.200000e+01 : f32
    %97 = vector.broadcast %cst_83 : f32 to vector<1x16xf32>
    %98 = arith.divf %96, %97 : vector<1x16xf32>
    %99 = arith.mulf %92, %92 : vector<32x16xf32>
    %cst_84 = arith.constant dense<0.000000e+00> : vector<16xf32>
    %100 = vector.multi_reduction <add>, %99, %cst_84 [0] : vector<32x16xf32> to vector<16xf32>
    %101 = vector.shape_cast %100 : vector<16xf32> to vector<1x16xf32>
    %cst_85 = arith.constant 3.200000e+01 : f32
    %102 = vector.broadcast %cst_85 : f32 to vector<1x16xf32>
    %103 = arith.divf %101, %102 : vector<1x16xf32>
    %104 = arith.mulf %98, %98 : vector<1x16xf32>
    %105 = arith.subf %103, %104 : vector<1x16xf32>
    %cst_86 = arith.constant 9.99999974E-6 : f32
    %106 = vector.broadcast %cst_86 : f32 to vector<1x16xf32>
    %107 = arith.addf %105, %106 : vector<1x16xf32>
    %108 = math.rsqrt %107 : vector<1x16xf32>
    %109 = arith.mulf %93, %108 : vector<1x16xf32>
    %110 = vector.broadcast %109 : vector<1x16xf32> to vector<32x16xf32>
    %111 = arith.mulf %92, %110 : vector<32x16xf32>
    %112 = arith.mulf %98, %109 : vector<1x16xf32>
    %113 = arith.subf %94, %112 : vector<1x16xf32>
    %114 = vector.broadcast %113 : vector<1x16xf32> to vector<32x16xf32>
    %115 = arith.addf %111, %114 : vector<32x16xf32>
    %cst_87 = arith.constant 0.000000e+00 : f32
    %116 = vector.broadcast %cst_87 : f32 to vector<32x16xf32>
    %117 = arith.cmpf ogt, %115, %116 : vector<32x16xf32>
    %cst_88 = arith.constant 0.00999999977 : f32
    %118 = vector.broadcast %cst_88 : f32 to vector<32x16xf32>
    %119 = arith.mulf %118, %115 : vector<32x16xf32>
    %120 = arith.select %117, %115, %119 : vector<32x16xi1>, vector<32x16xf32>
    %c0_89 = arith.constant 0 : index
    %c0_90 = arith.constant 0 : index
    %c0_91 = arith.constant 0 : index
    %121 = vector.load %arg8[%c0_89, %c0_90, %c0_91] : memref<9x8x32xf32, #tpu.memory_space<vmem>>, vector<1x8x32xf32>
    %122 = vector.shape_cast %121 : vector<1x8x32xf32> to vector<8x32xf32>
    %cst_92 = arith.constant dense<0.000000e+00> : vector<8x16xf32>
    %123 = tpu.matmul %122, %120, %cst_92 {dimension_numbers = #tpu.dot_dimension_numbers<[1], [0], [0], [1], [0, 0, 1, 1], [], []>} : vector<8x32xf32>, vector<32x16xf32>, vector<8x16xf32> -> vector<8x16xf32>
    %c0_93 = arith.constant 0 : index
    %c0_94 = arith.constant 0 : index
    %c0_95 = arith.constant 0 : index
    %124 = vector.load %arg9[%c0_93, %c0_94, %c0_95] : memref<9x16x32xf32, #tpu.memory_space<vmem>>, vector<1x16x32xf32>
    %125 = vector.shape_cast %124 : vector<1x16x32xf32> to vector<16x32xf32>
    %cst_96 = arith.constant dense<0.000000e+00> : vector<8x32xf32>
    %126 = tpu.matmul %123, %125, %cst_96 {dimension_numbers = #tpu.dot_dimension_numbers<[1], [0], [0], [1], [0, 0, 1, 1], [], []>} : vector<8x16xf32>, vector<16x32xf32>, vector<8x32xf32> -> vector<8x32xf32>
    %c1_97 = arith.constant 1 : index
    %c0_98 = arith.constant 0 : index
    %c0_99 = arith.constant 0 : index
    %127 = vector.load %arg8[%c1_97, %c0_98, %c0_99] : memref<9x8x32xf32, #tpu.memory_space<vmem>>, vector<1x8x32xf32>
    %128 = vector.shape_cast %127 : vector<1x8x32xf32> to vector<8x32xf32>
    %cst_100 = arith.constant dense<0.000000e+00> : vector<8x16xf32>
    %129 = tpu.matmul %128, %120, %cst_100 {dimension_numbers = #tpu.dot_dimension_numbers<[1], [0], [0], [1], [0, 0, 1, 1], [], []>} : vector<8x32xf32>, vector<32x16xf32>, vector<8x16xf32> -> vector<8x16xf32>
    %c1_101 = arith.constant 1 : index
    %c0_102 = arith.constant 0 : index
    %c0_103 = arith.constant 0 : index
    %130 = vector.load %arg9[%c1_101, %c0_102, %c0_103] : memref<9x16x32xf32, #tpu.memory_space<vmem>>, vector<1x16x32xf32>
    %131 = vector.shape_cast %130 : vector<1x16x32xf32> to vector<16x32xf32>
    %cst_104 = arith.constant dense<0.000000e+00> : vector<8x32xf32>
    %132 = tpu.matmul %129, %131, %cst_104 {dimension_numbers = #tpu.dot_dimension_numbers<[1], [0], [0], [1], [0, 0, 1, 1], [], []>} : vector<8x16xf32>, vector<16x32xf32>, vector<8x32xf32> -> vector<8x32xf32>
    %133 = arith.addf %126, %132 : vector<8x32xf32>
    %c2_105 = arith.constant 2 : index
    %c0_106 = arith.constant 0 : index
    %c0_107 = arith.constant 0 : index
    %134 = vector.load %arg8[%c2_105, %c0_106, %c0_107] : memref<9x8x32xf32, #tpu.memory_space<vmem>>, vector<1x8x32xf32>
    %135 = vector.shape_cast %134 : vector<1x8x32xf32> to vector<8x32xf32>
    %cst_108 = arith.constant dense<0.000000e+00> : vector<8x16xf32>
    %136 = tpu.matmul %135, %120, %cst_108 {dimension_numbers = #tpu.dot_dimension_numbers<[1], [0], [0], [1], [0, 0, 1, 1], [], []>} : vector<8x32xf32>, vector<32x16xf32>, vector<8x16xf32> -> vector<8x16xf32>
    %c2_109 = arith.constant 2 : index
    %c0_110 = arith.constant 0 : index
    %c0_111 = arith.constant 0 : index
    %137 = vector.load %arg9[%c2_109, %c0_110, %c0_111] : memref<9x16x32xf32, #tpu.memory_space<vmem>>, vector<1x16x32xf32>
    %138 = vector.shape_cast %137 : vector<1x16x32xf32> to vector<16x32xf32>
    %cst_112 = arith.constant dense<0.000000e+00> : vector<8x32xf32>
    %139 = tpu.matmul %136, %138, %cst_112 {dimension_numbers = #tpu.dot_dimension_numbers<[1], [0], [0], [1], [0, 0, 1, 1], [], []>} : vector<8x16xf32>, vector<16x32xf32>, vector<8x32xf32> -> vector<8x32xf32>
    %140 = arith.addf %133, %139 : vector<8x32xf32>
    %c3_113 = arith.constant 3 : index
    %c0_114 = arith.constant 0 : index
    %c0_115 = arith.constant 0 : index
    %141 = vector.load %arg8[%c3_113, %c0_114, %c0_115] : memref<9x8x32xf32, #tpu.memory_space<vmem>>, vector<1x8x32xf32>
    %142 = vector.shape_cast %141 : vector<1x8x32xf32> to vector<8x32xf32>
    %cst_116 = arith.constant dense<0.000000e+00> : vector<8x16xf32>
    %143 = tpu.matmul %142, %120, %cst_116 {dimension_numbers = #tpu.dot_dimension_numbers<[1], [0], [0], [1], [0, 0, 1, 1], [], []>} : vector<8x32xf32>, vector<32x16xf32>, vector<8x16xf32> -> vector<8x16xf32>
    %c3_117 = arith.constant 3 : index
    %c0_118 = arith.constant 0 : index
    %c0_119 = arith.constant 0 : index
    %144 = vector.load %arg9[%c3_117, %c0_118, %c0_119] : memref<9x16x32xf32, #tpu.memory_space<vmem>>, vector<1x16x32xf32>
    %145 = vector.shape_cast %144 : vector<1x16x32xf32> to vector<16x32xf32>
    %cst_120 = arith.constant dense<0.000000e+00> : vector<8x32xf32>
    %146 = tpu.matmul %143, %145, %cst_120 {dimension_numbers = #tpu.dot_dimension_numbers<[1], [0], [0], [1], [0, 0, 1, 1], [], []>} : vector<8x16xf32>, vector<16x32xf32>, vector<8x32xf32> -> vector<8x32xf32>
    %147 = arith.addf %140, %146 : vector<8x32xf32>
    %c4_121 = arith.constant 4 : index
    %c0_122 = arith.constant 0 : index
    %c0_123 = arith.constant 0 : index
    %148 = vector.load %arg8[%c4_121, %c0_122, %c0_123] : memref<9x8x32xf32, #tpu.memory_space<vmem>>, vector<1x8x32xf32>
    %149 = vector.shape_cast %148 : vector<1x8x32xf32> to vector<8x32xf32>
    %cst_124 = arith.constant dense<0.000000e+00> : vector<8x16xf32>
    %150 = tpu.matmul %149, %120, %cst_124 {dimension_numbers = #tpu.dot_dimension_numbers<[1], [0], [0], [1], [0, 0, 1, 1], [], []>} : vector<8x32xf32>, vector<32x16xf32>, vector<8x16xf32> -> vector<8x16xf32>
    %c4_125 = arith.constant 4 : index
    %c0_126 = arith.constant 0 : index
    %c0_127 = arith.constant 0 : index
    %151 = vector.load %arg9[%c4_125, %c0_126, %c0_127] : memref<9x16x32xf32, #tpu.memory_space<vmem>>, vector<1x16x32xf32>
    %152 = vector.shape_cast %151 : vector<1x16x32xf32> to vector<16x32xf32>
    %cst_128 = arith.constant dense<0.000000e+00> : vector<8x32xf32>
    %153 = tpu.matmul %150, %152, %cst_128 {dimension_numbers = #tpu.dot_dimension_numbers<[1], [0], [0], [1], [0, 0, 1, 1], [], []>} : vector<8x16xf32>, vector<16x32xf32>, vector<8x32xf32> -> vector<8x32xf32>
    %154 = arith.addf %147, %153 : vector<8x32xf32>
    %c5_129 = arith.constant 5 : index
    %c0_130 = arith.constant 0 : index
    %c0_131 = arith.constant 0 : index
    %155 = vector.load %arg8[%c5_129, %c0_130, %c0_131] : memref<9x8x32xf32, #tpu.memory_space<vmem>>, vector<1x8x32xf32>
    %156 = vector.shape_cast %155 : vector<1x8x32xf32> to vector<8x32xf32>
    %cst_132 = arith.constant dense<0.000000e+00> : vector<8x16xf32>
    %157 = tpu.matmul %156, %120, %cst_132 {dimension_numbers = #tpu.dot_dimension_numbers<[1], [0], [0], [1], [0, 0, 1, 1], [], []>} : vector<8x32xf32>, vector<32x16xf32>, vector<8x16xf32> -> vector<8x16xf32>
    %c5_133 = arith.constant 5 : index
    %c0_134 = arith.constant 0 : index
    %c0_135 = arith.constant 0 : index
    %158 = vector.load %arg9[%c5_133, %c0_134, %c0_135] : memref<9x16x32xf32, #tpu.memory_space<vmem>>, vector<1x16x32xf32>
    %159 = vector.shape_cast %158 : vector<1x16x32xf32> to vector<16x32xf32>
    %cst_136 = arith.constant dense<0.000000e+00> : vector<8x32xf32>
    %160 = tpu.matmul %157, %159, %cst_136 {dimension_numbers = #tpu.dot_dimension_numbers<[1], [0], [0], [1], [0, 0, 1, 1], [], []>} : vector<8x16xf32>, vector<16x32xf32>, vector<8x32xf32> -> vector<8x32xf32>
    %161 = arith.addf %154, %160 : vector<8x32xf32>
    %c6_137 = arith.constant 6 : index
    %c0_138 = arith.constant 0 : index
    %c0_139 = arith.constant 0 : index
    %162 = vector.load %arg8[%c6_137, %c0_138, %c0_139] : memref<9x8x32xf32, #tpu.memory_space<vmem>>, vector<1x8x32xf32>
    %163 = vector.shape_cast %162 : vector<1x8x32xf32> to vector<8x32xf32>
    %cst_140 = arith.constant dense<0.000000e+00> : vector<8x16xf32>
    %164 = tpu.matmul %163, %120, %cst_140 {dimension_numbers = #tpu.dot_dimension_numbers<[1], [0], [0], [1], [0, 0, 1, 1], [], []>} : vector<8x32xf32>, vector<32x16xf32>, vector<8x16xf32> -> vector<8x16xf32>
    %c6_141 = arith.constant 6 : index
    %c0_142 = arith.constant 0 : index
    %c0_143 = arith.constant 0 : index
    %165 = vector.load %arg9[%c6_141, %c0_142, %c0_143] : memref<9x16x32xf32, #tpu.memory_space<vmem>>, vector<1x16x32xf32>
    %166 = vector.shape_cast %165 : vector<1x16x32xf32> to vector<16x32xf32>
    %cst_144 = arith.constant dense<0.000000e+00> : vector<8x32xf32>
    %167 = tpu.matmul %164, %166, %cst_144 {dimension_numbers = #tpu.dot_dimension_numbers<[1], [0], [0], [1], [0, 0, 1, 1], [], []>} : vector<8x16xf32>, vector<16x32xf32>, vector<8x32xf32> -> vector<8x32xf32>
    %168 = arith.addf %161, %167 : vector<8x32xf32>
    %c7_145 = arith.constant 7 : index
    %c0_146 = arith.constant 0 : index
    %c0_147 = arith.constant 0 : index
    %169 = vector.load %arg8[%c7_145, %c0_146, %c0_147] : memref<9x8x32xf32, #tpu.memory_space<vmem>>, vector<1x8x32xf32>
    %170 = vector.shape_cast %169 : vector<1x8x32xf32> to vector<8x32xf32>
    %cst_148 = arith.constant dense<0.000000e+00> : vector<8x16xf32>
    %171 = tpu.matmul %170, %120, %cst_148 {dimension_numbers = #tpu.dot_dimension_numbers<[1], [0], [0], [1], [0, 0, 1, 1], [], []>} : vector<8x32xf32>, vector<32x16xf32>, vector<8x16xf32> -> vector<8x16xf32>
    %c7_149 = arith.constant 7 : index
    %c0_150 = arith.constant 0 : index
    %c0_151 = arith.constant 0 : index
    %172 = vector.load %arg9[%c7_149, %c0_150, %c0_151] : memref<9x16x32xf32, #tpu.memory_space<vmem>>, vector<1x16x32xf32>
    %173 = vector.shape_cast %172 : vector<1x16x32xf32> to vector<16x32xf32>
    %cst_152 = arith.constant dense<0.000000e+00> : vector<8x32xf32>
    %174 = tpu.matmul %171, %173, %cst_152 {dimension_numbers = #tpu.dot_dimension_numbers<[1], [0], [0], [1], [0, 0, 1, 1], [], []>} : vector<8x16xf32>, vector<16x32xf32>, vector<8x32xf32> -> vector<8x32xf32>
    %175 = arith.addf %168, %174 : vector<8x32xf32>
    %c8_153 = arith.constant 8 : index
    %c0_154 = arith.constant 0 : index
    %c0_155 = arith.constant 0 : index
    %176 = vector.load %arg8[%c8_153, %c0_154, %c0_155] : memref<9x8x32xf32, #tpu.memory_space<vmem>>, vector<1x8x32xf32>
    %177 = vector.shape_cast %176 : vector<1x8x32xf32> to vector<8x32xf32>
    %cst_156 = arith.constant dense<0.000000e+00> : vector<8x16xf32>
    %178 = tpu.matmul %177, %120, %cst_156 {dimension_numbers = #tpu.dot_dimension_numbers<[1], [0], [0], [1], [0, 0, 1, 1], [], []>} : vector<8x32xf32>, vector<32x16xf32>, vector<8x16xf32> -> vector<8x16xf32>
    %c8_157 = arith.constant 8 : index
    %c0_158 = arith.constant 0 : index
    %c0_159 = arith.constant 0 : index
    %179 = vector.load %arg9[%c8_157, %c0_158, %c0_159] : memref<9x16x32xf32, #tpu.memory_space<vmem>>, vector<1x16x32xf32>
    %180 = vector.shape_cast %179 : vector<1x16x32xf32> to vector<16x32xf32>
    %cst_160 = arith.constant dense<0.000000e+00> : vector<8x32xf32>
    %181 = tpu.matmul %178, %180, %cst_160 {dimension_numbers = #tpu.dot_dimension_numbers<[1], [0], [0], [1], [0, 0, 1, 1], [], []>} : vector<8x16xf32>, vector<16x32xf32>, vector<8x32xf32> -> vector<8x32xf32>
    %182 = arith.addf %175, %181 : vector<8x32xf32>
    %c0_161 = arith.constant 0 : index
    %c0_162 = arith.constant 0 : index
    %183 = vector.load %arg10[%c0_161, %c0_162] : memref<1x32xf32, #tpu.memory_space<vmem>>, vector<1x32xf32>
    %c0_163 = arith.constant 0 : index
    %c0_164 = arith.constant 0 : index
    %184 = vector.load %arg11[%c0_163, %c0_164] : memref<1x32xf32, #tpu.memory_space<vmem>>, vector<1x32xf32>
    %cst_165 = arith.constant dense<0.000000e+00> : vector<32xf32>
    %185 = vector.multi_reduction <add>, %182, %cst_165 [0] : vector<8x32xf32> to vector<32xf32>
    %186 = vector.shape_cast %185 : vector<32xf32> to vector<1x32xf32>
    %cst_166 = arith.constant 8.000000e+00 : f32
    %187 = vector.broadcast %cst_166 : f32 to vector<1x32xf32>
    %188 = arith.divf %186, %187 : vector<1x32xf32>
    %189 = arith.mulf %182, %182 : vector<8x32xf32>
    %cst_167 = arith.constant dense<0.000000e+00> : vector<32xf32>
    %190 = vector.multi_reduction <add>, %189, %cst_167 [0] : vector<8x32xf32> to vector<32xf32>
    %191 = vector.shape_cast %190 : vector<32xf32> to vector<1x32xf32>
    %cst_168 = arith.constant 8.000000e+00 : f32
    %192 = vector.broadcast %cst_168 : f32 to vector<1x32xf32>
    %193 = arith.divf %191, %192 : vector<1x32xf32>
    %194 = arith.mulf %188, %188 : vector<1x32xf32>
    %195 = arith.subf %193, %194 : vector<1x32xf32>
    %cst_169 = arith.constant 9.99999974E-6 : f32
    %196 = vector.broadcast %cst_169 : f32 to vector<1x32xf32>
    %197 = arith.addf %195, %196 : vector<1x32xf32>
    %198 = math.rsqrt %197 : vector<1x32xf32>
    %199 = arith.mulf %183, %198 : vector<1x32xf32>
    %200 = vector.broadcast %199 : vector<1x32xf32> to vector<8x32xf32>
    %201 = arith.mulf %182, %200 : vector<8x32xf32>
    %202 = arith.mulf %188, %199 : vector<1x32xf32>
    %203 = arith.subf %184, %202 : vector<1x32xf32>
    %204 = vector.broadcast %203 : vector<1x32xf32> to vector<8x32xf32>
    %205 = arith.addf %201, %204 : vector<8x32xf32>
    %cst_170 = arith.constant 0.000000e+00 : f32
    %206 = vector.broadcast %cst_170 : f32 to vector<8x32xf32>
    %207 = arith.cmpf ogt, %205, %206 : vector<8x32xf32>
    %cst_171 = arith.constant 0.00999999977 : f32
    %208 = vector.broadcast %cst_171 : f32 to vector<8x32xf32>
    %209 = arith.mulf %208, %205 : vector<8x32xf32>
    %210 = arith.select %207, %205, %209 : vector<8x32xi1>, vector<8x32xf32>
    %c0_172 = arith.constant 0 : index
    %c0_173 = arith.constant 0 : index
    %c0_174 = arith.constant 0 : index
    %211 = vector.load %arg12[%c0_172, %c0_173, %c0_174] : memref<4x2x8xf32, #tpu.memory_space<vmem>>, vector<1x2x8xf32>
    %212 = vector.shape_cast %211 : vector<1x2x8xf32> to vector<2x8xf32>
    %cst_175 = arith.constant dense<0.000000e+00> : vector<2x32xf32>
    %213 = tpu.matmul %212, %210, %cst_175 {dimension_numbers = #tpu.dot_dimension_numbers<[1], [0], [0], [1], [0, 0, 1, 1], [], []>} : vector<2x8xf32>, vector<8x32xf32>, vector<2x32xf32> -> vector<2x32xf32>
    %c0_176 = arith.constant 0 : index
    %c0_177 = arith.constant 0 : index
    %c0_178 = arith.constant 0 : index
    %214 = vector.load %arg13[%c0_176, %c0_177, %c0_178] : memref<4x32x8xf32, #tpu.memory_space<vmem>>, vector<1x32x8xf32>
    %215 = vector.shape_cast %214 : vector<1x32x8xf32> to vector<32x8xf32>
    %cst_179 = arith.constant dense<0.000000e+00> : vector<2x8xf32>
    %216 = tpu.matmul %213, %215, %cst_179 {dimension_numbers = #tpu.dot_dimension_numbers<[1], [0], [0], [1], [0, 0, 1, 1], [], []>} : vector<2x32xf32>, vector<32x8xf32>, vector<2x8xf32> -> vector<2x8xf32>
    %c0_180 = arith.constant 0 : index
    %c0_181 = arith.constant 0 : index
    %c0_182 = arith.constant 0 : index
    %217 = vector.load %arg14[%c0_180, %c0_181, %c0_182] : memref<4x32x8xf32, #tpu.memory_space<vmem>>, vector<1x32x8xf32>
    %218 = vector.shape_cast %217 : vector<1x32x8xf32> to vector<32x8xf32>
    %cst_183 = arith.constant dense<0.000000e+00> : vector<2x8xf32>
    %219 = tpu.matmul %213, %218, %cst_183 {dimension_numbers = #tpu.dot_dimension_numbers<[1], [0], [0], [1], [0, 0, 1, 1], [], []>} : vector<2x32xf32>, vector<32x8xf32>, vector<2x8xf32> -> vector<2x8xf32>
    %c1_184 = arith.constant 1 : index
    %c0_185 = arith.constant 0 : index
    %c0_186 = arith.constant 0 : index
    %220 = vector.load %arg12[%c1_184, %c0_185, %c0_186] : memref<4x2x8xf32, #tpu.memory_space<vmem>>, vector<1x2x8xf32>
    %221 = vector.shape_cast %220 : vector<1x2x8xf32> to vector<2x8xf32>
    %cst_187 = arith.constant dense<0.000000e+00> : vector<2x32xf32>
    %222 = tpu.matmul %221, %210, %cst_187 {dimension_numbers = #tpu.dot_dimension_numbers<[1], [0], [0], [1], [0, 0, 1, 1], [], []>} : vector<2x8xf32>, vector<8x32xf32>, vector<2x32xf32> -> vector<2x32xf32>
    %c1_188 = arith.constant 1 : index
    %c0_189 = arith.constant 0 : index
    %c0_190 = arith.constant 0 : index
    %223 = vector.load %arg13[%c1_188, %c0_189, %c0_190] : memref<4x32x8xf32, #tpu.memory_space<vmem>>, vector<1x32x8xf32>
    %224 = vector.shape_cast %223 : vector<1x32x8xf32> to vector<32x8xf32>
    %cst_191 = arith.constant dense<0.000000e+00> : vector<2x8xf32>
    %225 = tpu.matmul %222, %224, %cst_191 {dimension_numbers = #tpu.dot_dimension_numbers<[1], [0], [0], [1], [0, 0, 1, 1], [], []>} : vector<2x32xf32>, vector<32x8xf32>, vector<2x8xf32> -> vector<2x8xf32>
    %c1_192 = arith.constant 1 : index
    %c0_193 = arith.constant 0 : index
    %c0_194 = arith.constant 0 : index
    %226 = vector.load %arg14[%c1_192, %c0_193, %c0_194] : memref<4x32x8xf32, #tpu.memory_space<vmem>>, vector<1x32x8xf32>
    %227 = vector.shape_cast %226 : vector<1x32x8xf32> to vector<32x8xf32>
    %cst_195 = arith.constant dense<0.000000e+00> : vector<2x8xf32>
    %228 = tpu.matmul %222, %227, %cst_195 {dimension_numbers = #tpu.dot_dimension_numbers<[1], [0], [0], [1], [0, 0, 1, 1], [], []>} : vector<2x32xf32>, vector<32x8xf32>, vector<2x8xf32> -> vector<2x8xf32>
    %229 = arith.addf %216, %225 : vector<2x8xf32>
    %230 = arith.addf %219, %228 : vector<2x8xf32>
    %c2_196 = arith.constant 2 : index
    %c0_197 = arith.constant 0 : index
    %c0_198 = arith.constant 0 : index
    %231 = vector.load %arg12[%c2_196, %c0_197, %c0_198] : memref<4x2x8xf32, #tpu.memory_space<vmem>>, vector<1x2x8xf32>
    %232 = vector.shape_cast %231 : vector<1x2x8xf32> to vector<2x8xf32>
    %cst_199 = arith.constant dense<0.000000e+00> : vector<2x32xf32>
    %233 = tpu.matmul %232, %210, %cst_199 {dimension_numbers = #tpu.dot_dimension_numbers<[1], [0], [0], [1], [0, 0, 1, 1], [], []>} : vector<2x8xf32>, vector<8x32xf32>, vector<2x32xf32> -> vector<2x32xf32>
    %c2_200 = arith.constant 2 : index
    %c0_201 = arith.constant 0 : index
    %c0_202 = arith.constant 0 : index
    %234 = vector.load %arg13[%c2_200, %c0_201, %c0_202] : memref<4x32x8xf32, #tpu.memory_space<vmem>>, vector<1x32x8xf32>
    %235 = vector.shape_cast %234 : vector<1x32x8xf32> to vector<32x8xf32>
    %cst_203 = arith.constant dense<0.000000e+00> : vector<2x8xf32>
    %236 = tpu.matmul %233, %235, %cst_203 {dimension_numbers = #tpu.dot_dimension_numbers<[1], [0], [0], [1], [0, 0, 1, 1], [], []>} : vector<2x32xf32>, vector<32x8xf32>, vector<2x8xf32> -> vector<2x8xf32>
    %c2_204 = arith.constant 2 : index
    %c0_205 = arith.constant 0 : index
    %c0_206 = arith.constant 0 : index
    %237 = vector.load %arg14[%c2_204, %c0_205, %c0_206] : memref<4x32x8xf32, #tpu.memory_space<vmem>>, vector<1x32x8xf32>
    %238 = vector.shape_cast %237 : vector<1x32x8xf32> to vector<32x8xf32>
    %cst_207 = arith.constant dense<0.000000e+00> : vector<2x8xf32>
    %239 = tpu.matmul %233, %238, %cst_207 {dimension_numbers = #tpu.dot_dimension_numbers<[1], [0], [0], [1], [0, 0, 1, 1], [], []>} : vector<2x32xf32>, vector<32x8xf32>, vector<2x8xf32> -> vector<2x8xf32>
    %240 = arith.addf %229, %236 : vector<2x8xf32>
    %241 = arith.addf %230, %239 : vector<2x8xf32>
    %c3_208 = arith.constant 3 : index
    %c0_209 = arith.constant 0 : index
    %c0_210 = arith.constant 0 : index
    %242 = vector.load %arg12[%c3_208, %c0_209, %c0_210] : memref<4x2x8xf32, #tpu.memory_space<vmem>>, vector<1x2x8xf32>
    %243 = vector.shape_cast %242 : vector<1x2x8xf32> to vector<2x8xf32>
    %cst_211 = arith.constant dense<0.000000e+00> : vector<2x32xf32>
    %244 = tpu.matmul %243, %210, %cst_211 {dimension_numbers = #tpu.dot_dimension_numbers<[1], [0], [0], [1], [0, 0, 1, 1], [], []>} : vector<2x8xf32>, vector<8x32xf32>, vector<2x32xf32> -> vector<2x32xf32>
    %c3_212 = arith.constant 3 : index
    %c0_213 = arith.constant 0 : index
    %c0_214 = arith.constant 0 : index
    %245 = vector.load %arg13[%c3_212, %c0_213, %c0_214] : memref<4x32x8xf32, #tpu.memory_space<vmem>>, vector<1x32x8xf32>
    %246 = vector.shape_cast %245 : vector<1x32x8xf32> to vector<32x8xf32>
    %cst_215 = arith.constant dense<0.000000e+00> : vector<2x8xf32>
    %247 = tpu.matmul %244, %246, %cst_215 {dimension_numbers = #tpu.dot_dimension_numbers<[1], [0], [0], [1], [0, 0, 1, 1], [], []>} : vector<2x32xf32>, vector<32x8xf32>, vector<2x8xf32> -> vector<2x8xf32>
    %c3_216 = arith.constant 3 : index
    %c0_217 = arith.constant 0 : index
    %c0_218 = arith.constant 0 : index
    %248 = vector.load %arg14[%c3_216, %c0_217, %c0_218] : memref<4x32x8xf32, #tpu.memory_space<vmem>>, vector<1x32x8xf32>
    %249 = vector.shape_cast %248 : vector<1x32x8xf32> to vector<32x8xf32>
    %cst_219 = arith.constant dense<0.000000e+00> : vector<2x8xf32>
    %250 = tpu.matmul %244, %249, %cst_219 {dimension_numbers = #tpu.dot_dimension_numbers<[1], [0], [0], [1], [0, 0, 1, 1], [], []>} : vector<2x32xf32>, vector<32x8xf32>, vector<2x8xf32> -> vector<2x8xf32>
    %251 = arith.addf %240, %247 : vector<2x8xf32>
    %252 = arith.addf %241, %250 : vector<2x8xf32>
    %c0_220 = arith.constant 0 : index
    %c0_221 = arith.constant 0 : index
    %253 = vector.load %arg15[%c0_220, %c0_221] : memref<1x8xf32, #tpu.memory_space<vmem>>, vector<1x8xf32>
    %254 = vector.broadcast %253 : vector<1x8xf32> to vector<2x8xf32>
    %255 = arith.addf %251, %254 : vector<2x8xf32>
    %c0_222 = arith.constant 0 : index
    %c0_223 = arith.constant 0 : index
    %256 = vector.load %arg16[%c0_222, %c0_223] : memref<1x8xf32, #tpu.memory_space<vmem>>, vector<1x8xf32>
    %257 = vector.broadcast %256 : vector<1x8xf32> to vector<2x8xf32>
    %258 = arith.addf %252, %257 : vector<2x8xf32>
    %cst_224 = arith.constant 5.000000e-01 : f32
    %259 = vector.broadcast %cst_224 : f32 to vector<2x8xf32>
    %260 = arith.mulf %258, %259 : vector<2x8xf32>
    %261 = math.exp %260 : vector<2x8xf32>
    %c0_225 = arith.constant 0 : index
    %c0_226 = arith.constant 0 : index
    %262 = vector.load %arg17[%c0_225, %c0_226] : memref<2x8xf32, #tpu.memory_space<vmem>>, vector<2x8xf32>
    %263 = arith.mulf %262, %261 : vector<2x8xf32>
    %264 = arith.addf %263, %255 : vector<2x8xf32>
    %c0_227 = arith.constant 0 : index
    %c0_228 = arith.constant 0 : index
    %265 = vector.load %arg18[%c0_227, %c0_228] : memref<2x8xf32, #tpu.memory_space<vmem>>, vector<2x8xf32>
    tpu.vector_store %arg18[%c0_227, %c0_228], %264 {strides = array<i32>} : memref<2x8xf32, #tpu.memory_space<vmem>>, vector<2x8xf32>,
    %c0_229 = arith.constant 0 : index
    %c0_230 = arith.constant 0 : index
    %266 = vector.load %arg19[%c0_229, %c0_230] : memref<2x8xf32, #tpu.memory_space<vmem>>, vector<2x8xf32>
    tpu.vector_store %arg19[%c0_229, %c0_230], %255 {strides = array<i32>} : memref<2x8xf32, #tpu.memory_space<vmem>>, vector<2x8xf32>,
    %c0_231 = arith.constant 0 : index
    %c0_232 = arith.constant 0 : index
    %267 = vector.load %arg20[%c0_231, %c0_232] : memref<2x8xf32, #tpu.memory_space<vmem>>, vector<2x8xf32>
    tpu.vector_store %arg20[%c0_231, %c0_232], %258 {strides = array<i32>} : memref<2x8xf32, #tpu.memory_space<vmem>>, vector<2x8xf32>,
    return
  }
}

</mosaic_0001>

<llo_original>
// kernel: encoder_forward.1
$region0: #{encoder_forward.1}
  #allocation0 [shape = 'u32[]', space=smem, size = 0x4, offset = 0x4, fixed_abs, tag = 'smem constant byte address 0x4 - core index']
  #allocation1 [shape = 'u32[144,128]{1,0:T(1,128)}', space=vmem, size = 0x12000, scoped, tag = 'internal scratch']
  %s0 = inlined_call_operand.vmem [shape: f32[128,36], index: 0, kind: input, shape index: {}]
  %s1 = inlined_call_operand.vmem [shape: f32[36,8], index: 1, kind: input, shape index: {}]
  %s2 = inlined_call_operand.vmem [shape: f32[1,8], index: 2, kind: input, shape index: {}]
  %s3 = inlined_call_operand.vmem [shape: f32[1,8], index: 3, kind: input, shape index: {}]
  %s4 = inlined_call_operand.vmem [shape: f32[9,32,128], index: 4, kind: input, shape index: {}]
  %s5 = inlined_call_operand.vmem [shape: f32[9,8,16], index: 5, kind: input, shape index: {}]
  %s6 = inlined_call_operand.vmem [shape: f32[1,16], index: 6, kind: input, shape index: {}]
  %s7 = inlined_call_operand.vmem [shape: f32[1,16], index: 7, kind: input, shape index: {}]
  %s8 = inlined_call_operand.vmem [shape: f32[9,8,32], index: 8, kind: input, shape index: {}]
  %s9 = inlined_call_operand.vmem [shape: f32[9,16,32], index: 9, kind: input, shape index: {}]
  %s10 = inlined_call_operand.vmem [shape: f32[1,32], index: 10, kind: input, shape index: {}]
  %s11 = inlined_call_operand.vmem [shape: f32[1,32], index: 11, kind: input, shape index: {}]
  %s12 = inlined_call_operand.vmem [shape: f32[4,2,8], index: 12, kind: input, shape index: {}]
  %s13 = inlined_call_operand.vmem [shape: f32[4,32,8], index: 13, kind: input, shape index: {}]
  %s14 = inlined_call_operand.vmem [shape: f32[4,32,8], index: 14, kind: input, shape index: {}]
  %s15 = inlined_call_operand.vmem [shape: f32[1,8], index: 15, kind: input, shape index: {}]
  %s16 = inlined_call_operand.vmem [shape: f32[1,8], index: 16, kind: input, shape index: {}]
  %s17 = inlined_call_operand.vmem [shape: f32[2,8], index: 17, kind: input, shape index: {}]
  %s18 = inlined_call_operand.hbm [shape: f32[2,8], index: 18, kind: output, shape index: {0}]
  %s19 = inlined_call_operand.hbm [shape: f32[2,8], index: 19, kind: output, shape index: {1}]
  %s20 = inlined_call_operand.hbm [shape: f32[2,8], index: 20, kind: output, shape index: {2}]
  %21 = xla_tuple %s18, %s19, %s20
  %s22 = sld [smem:[#allocation0]]
  $region98: #{encoder_forward.1} parent=0
    _
  %s24 = ssub.s32 1, %s22
  %s25 = scalar_select 0, %s24, %s22
  $region1: #{encoder_forward.1} parent=0
    #allocation2 [shape = 'u8[1024]{0}', space=vmem, size = 0x400, scoped, tag = 'output window, operand 0, single buffered']
    #allocation3 [shape = 's32[1]{0}', space=sflag, size = 0x4, scoped, tag = 'scoped memory for encoder_forward.1']
    #allocation4 [shape = 'u8[1024]{0}', space=vmem, size = 0x400, scoped, tag = 'output window, operand 1, single buffered']
    #allocation5 [shape = 's32[1]{0}', space=sflag, size = 0x4, scoped, tag = 'scoped memory for encoder_forward.1']
    #allocation6 [shape = 'u8[1024]{0}', space=vmem, size = 0x400, scoped, tag = 'output window, operand 2, single buffered']
    %26 = vsyncpa [#allocation3], 0
    %27 = vsyncpa [#allocation5], 0
    // Predicated region
    $region2: #{encoder_forward.1} parent=1 // pred_check
      _
    $region3: #{encoder_forward.1} parent=1 // pred_check_branch
      %29 = sbr.rel (0) target = $region5
    $region4: #{encoder_forward.1} parent=1 // pred_region
      _
    $region5: #{encoder_forward.1} parent=1 // pred_fallthru
      _
    // Predicated region
    $region6: #{encoder_forward.1} parent=1 // pred_check
      _
    $region7: #{encoder_forward.1} parent=1 // pred_check_branch
      %31 = sbr.rel (0) target = $region9
    $region8: #{encoder_forward.1} parent=1 // pred_region
      _
    $region9: #{encoder_forward.1} parent=1 // pred_fallthru
      _
    // Predicated region
    $region10: #{encoder_forward.1} parent=1 // pred_check
      _
    $region11: #{encoder_forward.1} parent=1 // pred_check_branch
      %33 = sbr.rel (0) target = $region13
    $region12: #{encoder_forward.1} parent=1 // pred_region
      _
    $region13: #{encoder_forward.1} parent=1 // pred_fallthru
      _
    // Predicated region
    $region14: #{encoder_forward.1} parent=1 // pred_check
      _
    $region15: #{encoder_forward.1} parent=1 // pred_check_branch
      %35 = sbr.rel (0) target = $region17
    $region16: #{encoder_forward.1} parent=1 // pred_region
      _
    $region17: #{encoder_forward.1} parent=1 // pred_fallthru
      _
    // Predicated region
    $region18: #{encoder_forward.1} parent=1 // pred_check
      _
    $region19: #{encoder_forward.1} parent=1 // pred_check_branch
      %37 = sbr.rel (0) target = $region21
    $region20: #{encoder_forward.1} parent=1 // pred_region
      _
    $region21: #{encoder_forward.1} parent=1 // pred_fallthru
      _
    // Predicated region
    $region22: #{encoder_forward.1} parent=1 // pred_check
      _
    $region23: #{encoder_forward.1} parent=1 // pred_check_branch
      %39 = sbr.rel (0) target = $region25
    $region24: #{encoder_forward.1} parent=1 // pred_region
      _
    $region25: #{encoder_forward.1} parent=1 // pred_fallthru
      _
    // Predicated region
    $region26: #{encoder_forward.1} parent=1 // pred_check
      _
    $region27: #{encoder_forward.1} parent=1 // pred_check_branch
      %41 = sbr.rel (0) target = $region29
    $region28: #{encoder_forward.1} parent=1 // pred_region
      _
    $region29: #{encoder_forward.1} parent=1 // pred_fallthru
      _
    // Predicated region
    $region30: #{encoder_forward.1} parent=1 // pred_check
      _
    $region31: #{encoder_forward.1} parent=1 // pred_check_branch
      %43 = sbr.rel (0) target = $region33
    $region32: #{encoder_forward.1} parent=1 // pred_region
      _
    $region33: #{encoder_forward.1} parent=1 // pred_fallthru
      _
    // Predicated region
    $region34: #{encoder_forward.1} parent=1 // pred_check
      _
    $region35: #{encoder_forward.1} parent=1 // pred_check_branch
      %45 = sbr.rel (0) target = $region37
    $region36: #{encoder_forward.1} parent=1 // pred_region
      _
    $region37: #{encoder_forward.1} parent=1 // pred_fallthru
      _
    // Predicated region
    $region38: #{encoder_forward.1} parent=1 // pred_check
      _
    $region39: #{encoder_forward.1} parent=1 // pred_check_branch
      %47 = sbr.rel (0) target = $region41
    $region40: #{encoder_forward.1} parent=1 // pred_region
      _
    $region41: #{encoder_forward.1} parent=1 // pred_fallthru
      _
    // Predicated region
    $region42: #{encoder_forward.1} parent=1 // pred_check
      _
    $region43: #{encoder_forward.1} parent=1 // pred_check_branch
      %49 = sbr.rel (0) target = $region45
    $region44: #{encoder_forward.1} parent=1 // pred_region
      _
    $region45: #{encoder_forward.1} parent=1 // pred_fallthru
      _
    // Predicated region
    $region46: #{encoder_forward.1} parent=1 // pred_check
      _
    $region47: #{encoder_forward.1} parent=1 // pred_check_branch
      %51 = sbr.rel (0) target = $region49
    $region48: #{encoder_forward.1} parent=1 // pred_region
      _
    $region49: #{encoder_forward.1} parent=1 // pred_fallthru
      _
    // Predicated region
    $region50: #{encoder_forward.1} parent=1 // pred_check
      _
    $region51: #{encoder_forward.1} parent=1 // pred_check_branch
      %53 = sbr.rel (0) target = $region53
    $region52: #{encoder_forward.1} parent=1 // pred_region
      _
    $region53: #{encoder_forward.1} parent=1 // pred_fallthru
      _
    // Predicated region
    $region54: #{encoder_forward.1} parent=1 // pred_check
      _
    $region55: #{encoder_forward.1} parent=1 // pred_check_branch
      %55 = sbr.rel (0) target = $region57
    $region56: #{encoder_forward.1} parent=1 // pred_region
      _
    $region57: #{encoder_forward.1} parent=1 // pred_fallthru
      _
    // Predicated region
    $region58: #{encoder_forward.1} parent=1 // pred_check
      _
    $region59: #{encoder_forward.1} parent=1 // pred_check_branch
      %57 = sbr.rel (0) target = $region61
    $region60: #{encoder_forward.1} parent=1 // pred_region
      _
    $region61: #{encoder_forward.1} parent=1 // pred_fallthru
      _
    // Predicated region
    $region62: #{encoder_forward.1} parent=1 // pred_check
      _
    $region63: #{encoder_forward.1} parent=1 // pred_check_branch
      %59 = sbr.rel (0) target = $region65
    $region64: #{encoder_forward.1} parent=1 // pred_region
      _
    $region65: #{encoder_forward.1} parent=1 // pred_fallthru
      _
    // Predicated region
    $region66: #{encoder_forward.1} parent=1 // pred_check
      _
    $region67: #{encoder_forward.1} parent=1 // pred_check_branch
      %61 = sbr.rel (0) target = $region69
    $region68: #{encoder_forward.1} parent=1 // pred_region
      _
    $region69: #{encoder_forward.1} parent=1 // pred_fallthru
      _
    // Predicated region
    $region70: #{encoder_forward.1} parent=1 // pred_check
      _
    $region71: #{encoder_forward.1} parent=1 // pred_check_branch
      %63 = sbr.rel (0) target = $region73
    $region72: #{encoder_forward.1} parent=1 // pred_region
      _
    $region73: #{encoder_forward.1} parent=1 // pred_fallthru
      _
    %v64 = vld [vmem:[%s0] sm:$0xff]
    %v65 = vld [vmem:[%s0 + $0x8] sm:$0xff]
    %v66 = vld [vmem:[%s0 + $0x10] sm:$0xff]
    %v67 = vld [vmem:[%s0 + $0x18] sm:$0xff]
    %v68 = vld [vmem:[%s0 + $0x20] sm:$0xff]
    %v69 = vld [vmem:[%s0 + $0x28] sm:$0xff]
    %v70 = vld [vmem:[%s0 + $0x30] sm:$0xff]
    %v71 = vld [vmem:[%s0 + $0x38] sm:$0xff]
    %v72 = vld [vmem:[%s0 + $0x40] sm:$0xff]
    %v73 = vld [vmem:[%s0 + $0x48] sm:$0xff]
    %v74 = vld [vmem:[%s0 + $0x50] sm:$0xff]
    %v75 = vld [vmem:[%s0 + $0x58] sm:$0xff]
    %v76 = vld [vmem:[%s0 + $0x60] sm:$0xff]
    %v77 = vld [vmem:[%s0 + $0x68] sm:$0xff]
    %v78 = vld [vmem:[%s0 + $0x70] sm:$0xff]
    %v79 = vld [vmem:[%s0 + $0x78] sm:$0xff]
    %v80 = vld [vmem:[%s1] sm:$0xff]
    %v81 = vld [vmem:[%s1 + $0x8] sm:$0xff]
    %v82 = vld [vmem:[%s1 + $0x10] sm:$0xff]
    %v83 = vld [vmem:[%s1 + $0x18] sm:$0xff]
    %v84 = vld [vmem:[%s1 + $0x20] sm:$0xf]
    %vm85 = vcmask 293888
    %v87 = vsel %vm85, %v64, 0
    %v90 = vsel %vm85, %v65, 0
    %v93 = vsel %vm85, %v66, 0
    %v96 = vsel %vm85, %v67, 0
    %v99 = vsel %vm85, %v68, 0
    %v102 = vsel %vm85, %v69, 0
    %v105 = vsel %vm85, %v70, 0
    %v108 = vsel %vm85, %v71, 0
    %v111 = vsel %vm85, %v72, 0
    %v114 = vsel %vm85, %v73, 0
    %v117 = vsel %vm85, %v74, 0
    %v120 = vsel %vm85, %v75, 0
    %v123 = vsel %vm85, %v76, 0
    %v126 = vsel %vm85, %v77, 0
    %v129 = vsel %vm85, %v78, 0
    %v132 = vsel %vm85, %v79, 0
    %vm134 = vcmask 1043456
    %v136 = vsel %vm134, %v84, 0
    %138 = vmatprep.subr.mxu0 0.0
    %139 = vmatpush1.msra.mxu0 %v80
    %140 = vmatprep.subr.mxu0 0.0
    %141 = vmatpush1.msra.mxu0 %v81
    %142 = vmatprep.subr.mxu0 0.0
    %143 = vmatpush1.msra.mxu0 %v82
    %144 = vmatprep.subr.mxu0 0.0
    %145 = vmatpush1.msra.mxu0 %v83
    %146 = vmatprep.subr.mxu0 0.0
    %147 = vmatpush1.msra.mxu0 %v136
    %148 = vmatprep.subr.mxu0 0.0
    %149 = vmatpush1.msra.mxu0 0.0
    %150 = vmatprep.subr.mxu0 0.0
    %151 = vmatpush1.msra.mxu0 0.0
    %152 = vmatprep.subr.mxu0 0.0
    %153 = vmatpush1.msra.mxu0 0.0
    %154 = vmatprep.subr.mxu0 0.0
    %155 = vmatpush1.msra.mxu0 0.0
    %156 = vmatprep.subr.mxu0 0.0
    %157 = vmatpush1.msra.mxu0 0.0
    %158 = vmatprep.subr.mxu0 0.0
    %159 = vmatpush1.msra.mxu0 0.0
    %160 = vmatprep.subr.mxu0 0.0
    %161 = vmatpush1.msra.mxu0 0.0
    %162 = vmatprep.subr.mxu0 0.0
    %163 = vmatpush1.msra.mxu0 0.0
    %164 = vmatprep.subr.mxu0 0.0
    %165 = vmatpush1.msra.mxu0 0.0
    %166 = vmatprep.subr.mxu0 0.0
    %167 = vmatpush1.msra.mxu0 0.0
    %168 = vmatprep.subr.mxu0 0.0
    %169 = vmatpush1.msra.mxu0 0.0
    %170 = vmatprep.subr.mxu0 0.0
    %171 = vmatpush1.msra.mxu0 0.0
    %172 = vmatprep.subr.mxu0 0.0
    %173 = vmatpush1.msra.mxu0 0.0
    %174 = vmatprep.subr.mxu0 0.0
    %175 = vmatpush1.msra.mxu0 0.0
    %176 = vmatprep.subr.mxu0 0.0
    %177 = vmatpush1.msra.mxu0 0.0
    %178 = vmatprep.subr.mxu0 0.0
    %179 = vmatpush1.msra.mxu0 0.0
    %180 = vmatprep.subr.mxu0 0.0
    %181 = vmatpush1.msra.mxu0 0.0
    %182 = vmatprep.subr.mxu0 0.0
    %183 = vmatpush1.msra.mxu0 0.0
    %184 = vmatprep.subr.mxu0 0.0
    %185 = vmatpush1.msra.mxu0 0.0
    %186 = vmatprep.subr.mxu0 0.0
    %187 = vmatpush1.msra.mxu0 0.0
    %188 = vmatprep.subr.mxu0 0.0
    %189 = vmatpush1.msra.mxu0 0.0
    %190 = vmatprep.subr.mxu0 0.0
    %191 = vmatpush1.msra.mxu0 0.0
    %192 = vmatprep.subr.mxu0 0.0
    %193 = vmatpush1.msra.mxu0 0.0
    %194 = vmatprep.subr.mxu0 0.0
    %195 = vmatpush1.msra.mxu0 0.0
    %196 = vmatprep.subr.mxu0 0.0
    %197 = vmatpush1.msra.mxu0 0.0
    %198 = vmatprep.subr.mxu0 0.0
    %199 = vmatpush1.msra.mxu0 0.0
    %200 = vmatprep.subr.mxu0 0.0
    %201 = vmatpush1.msra.mxu0 0.0
    %202 = vmatprep.mubr.f32.mxu0 0.0
    %203 = vmatmul.mubr.f32.gmra.mrb[0].mxu0 %v87
    %v204 = vpop.f32.mrb[0].mxu0
    %v205 = vadd.f32 0.0, %v204
    %v206 = vpop.f32.mrb[0].mxu0
    %207 = vmatprep.mubr.f32.mxu0 0.0
    %208 = vmatmul.mubr.f32.gmra.mrb[0].mxu0 %v90
    %v209 = vpop.f32.mrb[0].mxu0
    %v210 = vadd.f32 0.0, %v209
    %v211 = vpop.f32.mrb[0].mxu0
    %212 = vmatprep.mubr.f32.mxu0 0.0
    %213 = vmatmul.mubr.f32.gmra.mrb[0].mxu0 %v93
    %v214 = vpop.f32.mrb[0].mxu0
    %v215 = vadd.f32 0.0, %v214
    %v216 = vpop.f32.mrb[0].mxu0
    %217 = vmatprep.mubr.f32.mxu0 0.0
    %218 = vmatmul.mubr.f32.gmra.mrb[0].mxu0 %v96
    %v219 = vpop.f32.mrb[0].mxu0
    %v220 = vadd.f32 0.0, %v219
    %v221 = vpop.f32.mrb[0].mxu0
    %222 = vmatprep.mubr.f32.mxu0 0.0
    %223 = vmatmul.mubr.f32.gmra.mrb[0].mxu0 %v99
    %v224 = vpop.f32.mrb[0].mxu0
    %v225 = vadd.f32 0.0, %v224
    %v226 = vpop.f32.mrb[0].mxu0
    %227 = vmatprep.mubr.f32.mxu0 0.0
    %228 = vmatmul.mubr.f32.gmra.mrb[0].mxu0 %v102
    %v229 = vpop.f32.mrb[0].mxu0
    %v230 = vadd.f32 0.0, %v229
    %v231 = vpop.f32.mrb[0].mxu0
    %232 = vmatprep.mubr.f32.mxu0 0.0
    %233 = vmatmul.mubr.f32.gmra.mrb[0].mxu0 %v105
    %v234 = vpop.f32.mrb[0].mxu0
    %v235 = vadd.f32 0.0, %v234
    %v236 = vpop.f32.mrb[0].mxu0
    %237 = vmatprep.mubr.f32.mxu0 0.0
    %238 = vmatmul.mubr.f32.gmra.mrb[0].mxu0 %v108
    %v239 = vpop.f32.mrb[0].mxu0
    %v240 = vadd.f32 0.0, %v239
    %v241 = vpop.f32.mrb[0].mxu0
    %242 = vmatprep.mubr.f32.mxu0 0.0
    %243 = vmatmul.mubr.f32.gmra.mrb[0].mxu0 %v111
    %v244 = vpop.f32.mrb[0].mxu0
    %v245 = vadd.f32 0.0, %v244
    %v246 = vpop.f32.mrb[0].mxu0
    %247 = vmatprep.mubr.f32.mxu0 0.0
    %248 = vmatmul.mubr.f32.gmra.mrb[0].mxu0 %v114
    %v249 = vpop.f32.mrb[0].mxu0
    %v250 = vadd.f32 0.0, %v249
    %v251 = vpop.f32.mrb[0].mxu0
    %252 = vmatprep.mubr.f32.mxu0 0.0
    %253 = vmatmul.mubr.f32.gmra.mrb[0].mxu0 %v117
    %v254 = vpop.f32.mrb[0].mxu0
    %v255 = vadd.f32 0.0, %v254
    %v256 = vpop.f32.mrb[0].mxu0
    %257 = vmatprep.mubr.f32.mxu0 0.0
    %258 = vmatmul.mubr.f32.gmra.mrb[0].mxu0 %v120
    %v259 = vpop.f32.mrb[0].mxu0
    %v260 = vadd.f32 0.0, %v259
    %v261 = vpop.f32.mrb[0].mxu0
    %262 = vmatprep.mubr.f32.mxu0 0.0
    %263 = vmatmul.mubr.f32.gmra.mrb[0].mxu0 %v123
    %v264 = vpop.f32.mrb[0].mxu0
    %v265 = vadd.f32 0.0, %v264
    %v266 = vpop.f32.mrb[0].mxu0
    %267 = vmatprep.mubr.f32.mxu0 0.0
    %268 = vmatmul.mubr.f32.gmra.mrb[0].mxu0 %v126
    %v269 = vpop.f32.mrb[0].mxu0
    %v270 = vadd.f32 0.0, %v269
    %v271 = vpop.f32.mrb[0].mxu0
    %272 = vmatprep.mubr.f32.mxu0 0.0
    %273 = vmatmul.mubr.f32.gmra.mrb[0].mxu0 %v129
    %v274 = vpop.f32.mrb[0].mxu0
    %v275 = vadd.f32 0.0, %v274
    %v276 = vpop.f32.mrb[0].mxu0
    %277 = vmatprep.mubr.f32.mxu0 0.0
    %278 = vmatmul.mubr.f32.gmra.mrb[0].mxu0 %v132
    %v279 = vpop.f32.mrb[0].mxu0
    %v280 = vadd.f32 0.0, %v279
    %v281 = vpop.f32.mrb[0].mxu0
    %282 = vdwg.mxu0
    %v283 = vld [vmem:[%s2] sm:$0x1]
    %v284 = vld [vmem:[%s3] sm:$0x1]
    %vm285 = vcmask 64512
    %v286 = vsel %vm285, %v205, 0.0
    %v287 = vsel %vm285, %v210, 0.0
    %v288 = vadd.f32 %v286, %v287
    %v289 = vsel %vm285, %v215, 0.0
    %v290 = vadd.f32 %v288, %v289
    %v291 = vsel %vm285, %v220, 0.0
    %v292 = vadd.f32 %v290, %v291
    %v293 = vsel %vm285, %v225, 0.0
    %v294 = vadd.f32 %v292, %v293
    %v295 = vsel %vm285, %v230, 0.0
    %v296 = vadd.f32 %v294, %v295
    %v297 = vsel %vm285, %v235, 0.0
    %v298 = vadd.f32 %v296, %v297
    %v299 = vsel %vm285, %v240, 0.0
    %v300 = vadd.f32 %v298, %v299
    %v301 = vsel %vm285, %v245, 0.0
    %v302 = vadd.f32 %v300, %v301
    %v303 = vsel %vm285, %v250, 0.0
    %v304 = vadd.f32 %v302, %v303
    %v305 = vsel %vm285, %v255, 0.0
    %v306 = vadd.f32 %v304, %v305
    %v307 = vsel %vm285, %v260, 0.0
    %v308 = vadd.f32 %v306, %v307
    %v309 = vsel %vm285, %v265, 0.0
    %v310 = vadd.f32 %v308, %v309
    %v311 = vsel %vm285, %v270, 0.0
    %v312 = vadd.f32 %v310, %v311
    %v313 = vsel %vm285, %v275, 0.0
    %v314 = vadd.f32 %v312, %v313
    %v315 = vsel %vm285, %v280, 0.0
    %v316 = vadd.f32 %v314, %v315
    %v317 = vrot.slane %v316, 4
    %v318 = vadd.f32 %v316, %v317
    %v319 = vrot.slane %v318, 2
    %v320 = vadd.f32 %v318, %v319
    %v321 = vrot.slane %v320, 1
    %v322 = vadd.f32 %v320, %v321
    %v323 = vrcp.pop 128.0
    %v324 = vmul.f32 %v322, %v323
    %v325 = vmul.f32 %v205, %v205
    %v326 = vmul.f32 %v210, %v210
    %v327 = vmul.f32 %v215, %v215
    %v328 = vmul.f32 %v220, %v220
    %v329 = vmul.f32 %v225, %v225
    %v330 = vmul.f32 %v230, %v230
    %v331 = vmul.f32 %v235, %v235
    %v332 = vmul.f32 %v240, %v240
    %v333 = vmul.f32 %v245, %v245
    %v334 = vmul.f32 %v250, %v250
    %v335 = vmul.f32 %v255, %v255
    %v336 = vmul.f32 %v260, %v260
    %v337 = vmul.f32 %v265, %v265
    %v338 = vmul.f32 %v270, %v270
    %v339 = vmul.f32 %v275, %v275
    %v340 = vmul.f32 %v280, %v280
    %v341 = vsel %vm285, %v325, 0.0
    %v342 = vsel %vm285, %v326, 0.0
    %v343 = vadd.f32 %v341, %v342
    %v344 = vsel %vm285, %v327, 0.0
    %v345 = vadd.f32 %v343, %v344
    %v346 = vsel %vm285, %v328, 0.0
    %v347 = vadd.f32 %v345, %v346
    %v348 = vsel %vm285, %v329, 0.0
    %v349 = vadd.f32 %v347, %v348
    %v350 = vsel %vm285, %v330, 0.0
    %v351 = vadd.f32 %v349, %v350
    %v352 = vsel %vm285, %v331, 0.0
    %v353 = vadd.f32 %v351, %v352
    %v354 = vsel %vm285, %v332, 0.0
    %v355 = vadd.f32 %v353, %v354
    %v356 = vsel %vm285, %v333, 0.0
    %v357 = vadd.f32 %v355, %v356
    %v358 = vsel %vm285, %v334, 0.0
    %v359 = vadd.f32 %v357, %v358
    %v360 = vsel %vm285, %v335, 0.0
    %v361 = vadd.f32 %v359, %v360
    %v362 = vsel %vm285, %v336, 0.0
    %v363 = vadd.f32 %v361, %v362
    %v364 = vsel %vm285, %v337, 0.0
    %v365 = vadd.f32 %v363, %v364
    %v366 = vsel %vm285, %v338, 0.0
    %v367 = vadd.f32 %v365, %v366
    %v368 = vsel %vm285, %v339, 0.0
    %v369 = vadd.f32 %v367, %v368
    %v370 = vsel %vm285, %v340, 0.0
    %v371 = vadd.f32 %v369, %v370
    %v372 = vrot.slane %v371, 4
    %v373 = vadd.f32 %v371, %v372
    %v374 = vrot.slane %v373, 2
    %v375 = vadd.f32 %v373, %v374
    %v376 = vrot.slane %v375, 1
    %v377 = vadd.f32 %v375, %v376
    %v378 = vmul.f32 %v377, %v323
    %v379 = vmul.f32 %v324, %v324
    %v380 = vsub.f32 %v378, %v379
    %v381 = vadd.f32 %v380, 1e-05
    %v382 = vrsqrt.pop %v381
    %v383 = vmul.f32 %v283, %v382
    %v385 = vlaneseq
    %v386 = vshrl.u32 %v385, 7
    %v387 = vsub.s32 0, %v386
    %v388 = vrot.slane %v383, %v387
    %v390 = vmul.f32 %v205, %v388
    %v391 = vmul.f32 %v210, %v388
    %v392 = vmul.f32 %v215, %v388
    %v393 = vmul.f32 %v220, %v388
    %v394 = vmul.f32 %v225, %v388
    %v395 = vmul.f32 %v230, %v388
    %v396 = vmul.f32 %v235, %v388
    %v397 = vmul.f32 %v240, %v388
    %v398 = vmul.f32 %v245, %v388
    %v399 = vmul.f32 %v250, %v388
    %v400 = vmul.f32 %v255, %v388
    %v401 = vmul.f32 %v260, %v388
    %v402 = vmul.f32 %v265, %v388
    %v403 = vmul.f32 %v270, %v388
    %v404 = vmul.f32 %v275, %v388
    %v405 = vmul.f32 %v280, %v388
    %v406 = vmul.f32 %v324, %v383
    %v407 = vsub.f32 %v284, %v406
    %v409 = vlaneseq
    %v410 = vshrl.u32 %v409, 7
    %v411 = vsub.s32 0, %v410
    %v412 = vrot.slane %v407, %v411
    %v414 = vadd.f32 %v390, %v412
    %v415 = vadd.f32 %v391, %v412
    %v416 = vadd.f32 %v392, %v412
    %v417 = vadd.f32 %v393, %v412
    %v418 = vadd.f32 %v394, %v412
    %v419 = vadd.f32 %v395, %v412
    %v420 = vadd.f32 %v396, %v412
    %v421 = vadd.f32 %v397, %v412
    %v422 = vadd.f32 %v398, %v412
    %v423 = vadd.f32 %v399, %v412
    %v424 = vadd.f32 %v400, %v412
    %v425 = vadd.f32 %v401, %v412
    %v426 = vadd.f32 %v402, %v412
    %v427 = vadd.f32 %v403, %v412
    %v428 = vadd.f32 %v404, %v412
    %v429 = vadd.f32 %v405, %v412
    %vm430 = vcmp.gt.f32.partialorder %v414, 0.0
    %vm431 = vcmp.gt.f32.partialorder %v415, 0.0
    %vm432 = vcmp.gt.f32.partialorder %v416, 0.0
    %vm433 = vcmp.gt.f32.partialorder %v417, 0.0
    %vm434 = vcmp.gt.f32.partialorder %v418, 0.0
    %vm435 = vcmp.gt.f32.partialorder %v419, 0.0
    %vm436 = vcmp.gt.f32.partialorder %v420, 0.0
    %vm437 = vcmp.gt.f32.partialorder %v421, 0.0
    %vm438 = vcmp.gt.f32.partialorder %v422, 0.0
    %vm439 = vcmp.gt.f32.partialorder %v423, 0.0
    %vm440 = vcmp.gt.f32.partialorder %v424, 0.0
    %vm441 = vcmp.gt.f32.partialorder %v425, 0.0
    %vm442 = vcmp.gt.f32.partialorder %v426, 0.0
    %vm443 = vcmp.gt.f32.partialorder %v427, 0.0
    %vm444 = vcmp.gt.f32.partialorder %v428, 0.0
    %vm445 = vcmp.gt.f32.partialorder %v429, 0.0
    %v446 = vmul.f32 %v414, 0.01
    %v447 = vmul.f32 %v415, 0.01
    %v448 = vmul.f32 %v416, 0.01
    %v449 = vmul.f32 %v417, 0.01
    %v450 = vmul.f32 %v418, 0.01
    %v451 = vmul.f32 %v419, 0.01
    %v452 = vmul.f32 %v420, 0.01
    %v453 = vmul.f32 %v421, 0.01
    %v454 = vmul.f32 %v422, 0.01
    %v455 = vmul.f32 %v423, 0.01
    %v456 = vmul.f32 %v424, 0.01
    %v457 = vmul.f32 %v425, 0.01
    %v458 = vmul.f32 %v426, 0.01
    %v459 = vmul.f32 %v427, 0.01
    %v460 = vmul.f32 %v428, 0.01
    %v461 = vmul.f32 %v429, 0.01
    %v462 = vsel %vm430, %v414, %v446
    %v463 = vsel %vm431, %v415, %v447
    %v464 = vsel %vm432, %v416, %v448
    %v465 = vsel %vm433, %v417, %v449
    %v466 = vsel %vm434, %v418, %v450
    %v467 = vsel %vm435, %v419, %v451
    %v468 = vsel %vm436, %v420, %v452
    %v469 = vsel %vm437, %v421, %v453
    %v470 = vsel %vm438, %v422, %v454
    %v471 = vsel %vm439, %v423, %v455
    %v472 = vsel %vm440, %v424, %v456
    %v473 = vsel %vm441, %v425, %v457
    %v474 = vsel %vm442, %v426, %v458
    %v475 = vsel %vm443, %v427, %v459
    %v476 = vsel %vm444, %v428, %v460
    %v477 = vsel %vm445, %v429, %v461
    %v478 = vld [vmem:[%s4] sm:$0xff]
    %v479 = vld [vmem:[%s4 + $0x8] sm:$0xff]
    %v480 = vld [vmem:[%s4 + $0x10] sm:$0xff]
    %v481 = vld [vmem:[%s4 + $0x18] sm:$0xff]
    %482 = vmatprep.subr.mxu0 0.0
    %483 = vmatpush1.msra.mxu0 %v462
    %484 = vmatprep.subr.mxu0 0.0
    %485 = vmatpush1.msra.mxu0 %v463
    %486 = vmatprep.subr.mxu0 0.0
    %487 = vmatpush1.msra.mxu0 %v464
    %488 = vmatprep.subr.mxu0 0.0
    %489 = vmatpush1.msra.mxu0 %v465
    %490 = vmatprep.subr.mxu0 0.0
    %491 = vmatpush1.msra.mxu0 %v466
    %492 = vmatprep.subr.mxu0 0.0
    %493 = vmatpush1.msra.mxu0 %v467
    %494 = vmatprep.subr.mxu0 0.0
    %495 = vmatpush1.msra.mxu0 %v468
    %496 = vmatprep.subr.mxu0 0.0
    %497 = vmatpush1.msra.mxu0 %v469
    %498 = vmatprep.subr.mxu0 0.0
    %499 = vmatpush1.msra.mxu0 %v470
    %500 = vmatprep.subr.mxu0 0.0
    %501 = vmatpush1.msra.mxu0 %v471
    %502 = vmatprep.subr.mxu0 0.0
    %503 = vmatpush1.msra.mxu0 %v472
    %504 = vmatprep.subr.mxu0 0.0
    %505 = vmatpush1.msra.mxu0 %v473
    %506 = vmatprep.subr.mxu0 0.0
    %507 = vmatpush1.msra.mxu0 %v474
    %508 = vmatprep.subr.mxu0 0.0
    %509 = vmatpush1.msra.mxu0 %v475
    %510 = vmatprep.subr.mxu0 0.0
    %511 = vmatpush1.msra.mxu0 %v476
    %512 = vmatprep.subr.mxu0 0.0
    %513 = vmatpush1.msra.mxu0 %v477
    %514 = vmatprep.subr.mxu0 0.0
    %515 = vmatpush1.msra.mxu0 0.0
    %516 = vmatprep.subr.mxu0 0.0
    %517 = vmatpush1.msra.mxu0 0.0
    %518 = vmatprep.subr.mxu0 0.0
    %519 = vmatpush1.msra.mxu0 0.0
    %520 = vmatprep.subr.mxu0 0.0
    %521 = vmatpush1.msra.mxu0 0.0
    %522 = vmatprep.subr.mxu0 0.0
    %523 = vmatpush1.msra.mxu0 0.0
    %524 = vmatprep.subr.mxu0 0.0
    %525 = vmatpush1.msra.mxu0 0.0
    %526 = vmatprep.subr.mxu0 0.0
    %527 = vmatpush1.msra.mxu0 0.0
    %528 = vmatprep.subr.mxu0 0.0
    %529 = vmatpush1.msra.mxu0 0.0
    %530 = vmatprep.subr.mxu0 0.0
    %531 = vmatpush1.msra.mxu0 0.0
    %532 = vmatprep.subr.mxu0 0.0
    %533 = vmatpush1.msra.mxu0 0.0
    %534 = vmatprep.subr.mxu0 0.0
    %535 = vmatpush1.msra.mxu0 0.0
    %536 = vmatprep.subr.mxu0 0.0
    %537 = vmatpush1.msra.mxu0 0.0
    %538 = vmatprep.subr.mxu0 0.0
    %539 = vmatpush1.msra.mxu0 0.0
    %540 = vmatprep.subr.mxu0 0.0
    %541 = vmatpush1.msra.mxu0 0.0
    %542 = vmatprep.subr.mxu0 0.0
    %543 = vmatpush1.msra.mxu0 0.0
    %544 = vmatprep.subr.mxu0 0.0
    %545 = vmatpush1.msra.mxu0 0.0
    %546 = vmatprep.mubr.f32.mxu0 0.0
    %547 = vmatmul.mubr.f32.gmra.mrb[0].mxu0 %v478
    %v548 = vpop.f32.mrb[0].mxu0
    %v549 = vadd.f32 0.0, %v548
    %v550 = vpop.f32.mrb[0].mxu0
    %551 = vmatprep.mubr.f32.mxu0 0.0
    %552 = vmatmul.mubr.f32.gmra.mrb[0].mxu0 %v479
    %v553 = vpop.f32.mrb[0].mxu0
    %v554 = vadd.f32 0.0, %v553
    %v555 = vpop.f32.mrb[0].mxu0
    %556 = vmatprep.mubr.f32.mxu0 0.0
    %557 = vmatmul.mubr.f32.gmra.mrb[0].mxu0 %v480
    %v558 = vpop.f32.mrb[0].mxu0
    %v559 = vadd.f32 0.0, %v558
    %v560 = vpop.f32.mrb[0].mxu0
    %561 = vmatprep.mubr.f32.mxu0 0.0
    %562 = vmatmul.mubr.f32.gmra.mrb[0].mxu0 %v481
    %v563 = vpop.f32.mrb[0].mxu0
    %v564 = vadd.f32 0.0, %v563
    %v565 = vpop.f32.mrb[0].mxu0
    %566 = vdwg.mxu0
    %v567 = vld [vmem:[%s5] sm:$0xff]
    %s568 = scalar_lea.vmem %s4, 32
    %v569 = vld [vmem:[%s568] sm:$0xff]
    %v570 = vld [vmem:[%s568 + $0x8] sm:$0xff]
    %v571 = vld [vmem:[%s568 + $0x10] sm:$0xff]
    %v572 = vld [vmem:[%s568 + $0x18] sm:$0xff]
    %573 = vmatprep.subr.mxu0 0.0
    %574 = vmatpush1.msra.mxu0 %v462
    %575 = vmatprep.subr.mxu0 0.0
    %576 = vmatpush1.msra.mxu0 %v463
    %577 = vmatprep.subr.mxu0 0.0
    %578 = vmatpush1.msra.mxu0 %v464
    %579 = vmatprep.subr.mxu0 0.0
    %580 = vmatpush1.msra.mxu0 %v465
    %581 = vmatprep.subr.mxu0 0.0
    %582 = vmatpush1.msra.mxu0 %v466
    %583 = vmatprep.subr.mxu0 0.0
    %584 = vmatpush1.msra.mxu0 %v467
    %585 = vmatprep.subr.mxu0 0.0
    %586 = vmatpush1.msra.mxu0 %v468
    %587 = vmatprep.subr.mxu0 0.0
    %588 = vmatpush1.msra.mxu0 %v469
    %589 = vmatprep.subr.mxu0 0.0
    %590 = vmatpush1.msra.mxu0 %v470
    %591 = vmatprep.subr.mxu0 0.0
    %592 = vmatpush1.msra.mxu0 %v471
    %593 = vmatprep.subr.mxu0 0.0
    %594 = vmatpush1.msra.mxu0 %v472
    %595 = vmatprep.subr.mxu0 0.0
    %596 = vmatpush1.msra.mxu0 %v473
    %597 = vmatprep.subr.mxu0 0.0
    %598 = vmatpush1.msra.mxu0 %v474
    %599 = vmatprep.subr.mxu0 0.0
    %600 = vmatpush1.msra.mxu0 %v475
    %601 = vmatprep.subr.mxu0 0.0
    %602 = vmatpush1.msra.mxu0 %v476
    %603 = vmatprep.subr.mxu0 0.0
    %604 = vmatpush1.msra.mxu0 %v477
    %605 = vmatprep.subr.mxu0 0.0
    %606 = vmatpush1.msra.mxu0 0.0
    %607 = vmatprep.subr.mxu0 0.0
    %608 = vmatpush1.msra.mxu0 0.0
    %609 = vmatprep.subr.mxu0 0.0
    %610 = vmatpush1.msra.mxu0 0.0
    %611 = vmatprep.subr.mxu0 0.0
    %612 = vmatpush1.msra.mxu0 0.0
    %613 = vmatprep.subr.mxu0 0.0
    %614 = vmatpush1.msra.mxu0 0.0
    %615 = vmatprep.subr.mxu0 0.0
    %616 = vmatpush1.msra.mxu0 0.0
    %617 = vmatprep.subr.mxu0 0.0
    %618 = vmatpush1.msra.mxu0 0.0
    %619 = vmatprep.subr.mxu0 0.0
    %620 = vmatpush1.msra.mxu0 0.0
    %621 = vmatprep.subr.mxu0 0.0
    %622 = vmatpush1.msra.mxu0 0.0
    %623 = vmatprep.subr.mxu0 0.0
    %624 = vmatpush1.msra.mxu0 0.0
    %625 = vmatprep.subr.mxu0 0.0
    %626 = vmatpush1.msra.mxu0 0.0
    %627 = vmatprep.subr.mxu0 0.0
    %628 = vmatpush1.msra.mxu0 0.0
    %629 = vmatprep.subr.mxu0 0.0
    %630 = vmatpush1.msra.mxu0 0.0
    %631 = vmatprep.subr.mxu0 0.0
    %632 = vmatpush1.msra.mxu0 0.0
    %633 = vmatprep.subr.mxu0 0.0
    %634 = vmatpush1.msra.mxu0 0.0
    %635 = vmatprep.subr.mxu0 0.0
    %636 = vmatpush1.msra.mxu0 0.0
    %637 = vmatprep.mubr.f32.mxu0 0.0
    %638 = vmatmul.mubr.f32.gmra.mrb[0].mxu0 %v569
    %v639 = vpop.f32.mrb[0].mxu0
    %v640 = vadd.f32 0.0, %v639
    %v641 = vpop.f32.mrb[0].mxu0
    %642 = vmatprep.mubr.f32.mxu0 0.0
    %643 = vmatmul.mubr.f32.gmra.mrb[0].mxu0 %v570
    %v644 = vpop.f32.mrb[0].mxu0
    %v645 = vadd.f32 0.0, %v644
    %v646 = vpop.f32.mrb[0].mxu0
    %647 = vmatprep.mubr.f32.mxu0 0.0
    %648 = vmatmul.mubr.f32.gmra.mrb[0].mxu0 %v571
    %v649 = vpop.f32.mrb[0].mxu0
    %v650 = vadd.f32 0.0, %v649
    %v651 = vpop.f32.mrb[0].mxu0
    %652 = vmatprep.mubr.f32.mxu0 0.0
    %653 = vmatmul.mubr.f32.gmra.mrb[0].mxu0 %v572
    %v654 = vpop.f32.mrb[0].mxu0
    %v655 = vadd.f32 0.0, %v654
    %v656 = vpop.f32.mrb[0].mxu0
    %657 = vdwg.mxu0
    %s658 = scalar_lea.vmem %s5, 8
    %v659 = vld [vmem:[%s658] sm:$0xff]
    %v661 = vsel %vm285, %v640, 0
    %v664 = vsel %vm285, %v645, 0
    %v667 = vsel %vm285, %v650, 0
    %v670 = vsel %vm285, %v655, 0
    %672 = vmatprep.subr.mxu0 0.0
    %673 = vmatpush1.msra.mxu0 %v659
    %674 = vmatprep.subr.mxu0 0.0
    %675 = vmatpush1.msra.mxu0 0.0
    %676 = vmatprep.subr.mxu0 0.0
    %677 = vmatpush1.msra.mxu0 0.0
    %678 = vmatprep.subr.mxu0 0.0
    %679 = vmatpush1.msra.mxu0 0.0
    %680 = vmatprep.subr.mxu0 0.0
    %681 = vmatpush1.msra.mxu0 0.0
    %682 = vmatprep.subr.mxu0 0.0
    %683 = vmatpush1.msra.mxu0 0.0
    %684 = vmatprep.subr.mxu0 0.0
    %685 = vmatpush1.msra.mxu0 0.0
    %686 = vmatprep.subr.mxu0 0.0
    %687 = vmatpush1.msra.mxu0 0.0
    %688 = vmatprep.subr.mxu0 0.0
    %689 = vmatpush1.msra.mxu0 0.0
    %690 = vmatprep.subr.mxu0 0.0
    %691 = vmatpush1.msra.mxu0 0.0
    %692 = vmatprep.subr.mxu0 0.0
    %693 = vmatpush1.msra.mxu0 0.0
    %694 = vmatprep.subr.mxu0 0.0
    %695 = vmatpush1.msra.mxu0 0.0
    %696 = vmatprep.subr.mxu0 0.0
    %697 = vmatpush1.msra.mxu0 0.0
    %698 = vmatprep.subr.mxu0 0.0
    %699 = vmatpush1.msra.mxu0 0.0
    %700 = vmatprep.subr.mxu0 0.0
    %701 = vmatpush1.msra.mxu0 0.0
    %702 = vmatprep.subr.mxu0 0.0
    %703 = vmatpush1.msra.mxu0 0.0
    %704 = vmatprep.subr.mxu0 0.0
    %705 = vmatpush1.msra.mxu0 0.0
    %706 = vmatprep.subr.mxu0 0.0
    %707 = vmatpush1.msra.mxu0 0.0
    %708 = vmatprep.subr.mxu0 0.0
    %709 = vmatpush1.msra.mxu0 0.0
    %710 = vmatprep.subr.mxu0 0.0
    %711 = vmatpush1.msra.mxu0 0.0
    %712 = vmatprep.subr.mxu0 0.0
    %713 = vmatpush1.msra.mxu0 0.0
    %714 = vmatprep.subr.mxu0 0.0
    %715 = vmatpush1.msra.mxu0 0.0
    %716 = vmatprep.subr.mxu0 0.0
    %717 = vmatpush1.msra.mxu0 0.0
    %718 = vmatprep.subr.mxu0 0.0
    %719 = vmatpush1.msra.mxu0 0.0
    %720 = vmatprep.subr.mxu0 0.0
    %721 = vmatpush1.msra.mxu0 0.0
    %722 = vmatprep.subr.mxu0 0.0
    %723 = vmatpush1.msra.mxu0 0.0
    %724 = vmatprep.subr.mxu0 0.0
    %725 = vmatpush1.msra.mxu0 0.0
    %726 = vmatprep.subr.mxu0 0.0
    %727 = vmatpush1.msra.mxu0 0.0
    %728 = vmatprep.subr.mxu0 0.0
    %729 = vmatpush1.msra.mxu0 0.0
    %730 = vmatprep.subr.mxu0 0.0
    %731 = vmatpush1.msra.mxu0 0.0
    %732 = vmatprep.subr.mxu0 0.0
    %733 = vmatpush1.msra.mxu0 0.0
    %734 = vmatprep.subr.mxu0 0.0
    %735 = vmatpush1.msra.mxu0 0.0
    %736 = vmatprep.mubr.f32.mxu0 0.0
    %737 = vmatmul.mubr.f32.gmra.mrb[0].mxu0 %v661
    %v738 = vpop.f32.mrb[0].mxu0
    %v739 = vadd.f32 0.0, %v738
    %v740 = vpop.f32.mrb[0].mxu0
    %741 = vmatprep.mubr.f32.mxu0 0.0
    %742 = vmatmul.mubr.f32.gmra.mrb[0].mxu0 %v664
    %v743 = vpop.f32.mrb[0].mxu0
    %v744 = vadd.f32 0.0, %v743
    %v745 = vpop.f32.mrb[0].mxu0
    %746 = vmatprep.mubr.f32.mxu0 0.0
    %747 = vmatmul.mubr.f32.gmra.mrb[0].mxu0 %v667
    %v748 = vpop.f32.mrb[0].mxu0
    %v749 = vadd.f32 0.0, %v748
    %v750 = vpop.f32.mrb[0].mxu0
    %751 = vmatprep.mubr.f32.mxu0 0.0
    %752 = vmatmul.mubr.f32.gmra.mrb[0].mxu0 %v670
    %v753 = vpop.f32.mrb[0].mxu0
    %v754 = vadd.f32 0.0, %v753
    %v755 = vpop.f32.mrb[0].mxu0
    %756 = vdwg.mxu0
    %v758 = vsel %vm285, %v549, 0
    %v761 = vsel %vm285, %v554, 0
    %v764 = vsel %vm285, %v559, 0
    %v767 = vsel %vm285, %v564, 0
    %769 = vmatprep.subr.mxu0 0.0
    %770 = vmatpush1.msra.mxu0 %v567
    %771 = vmatprep.subr.mxu0 0.0
    %772 = vmatpush1.msra.mxu0 0.0
    %773 = vmatprep.subr.mxu0 0.0
    %774 = vmatpush1.msra.mxu0 0.0
    %775 = vmatprep.subr.mxu0 0.0
    %776 = vmatpush1.msra.mxu0 0.0
    %777 = vmatprep.subr.mxu0 0.0
    %778 = vmatpush1.msra.mxu0 0.0
    %779 = vmatprep.subr.mxu0 0.0
    %780 = vmatpush1.msra.mxu0 0.0
    %781 = vmatprep.subr.mxu0 0.0
    %782 = vmatpush1.msra.mxu0 0.0
    %783 = vmatprep.subr.mxu0 0.0
    %784 = vmatpush1.msra.mxu0 0.0
    %785 = vmatprep.subr.mxu0 0.0
    %786 = vmatpush1.msra.mxu0 0.0
    %787 = vmatprep.subr.mxu0 0.0
    %788 = vmatpush1.msra.mxu0 0.0
    %789 = vmatprep.subr.mxu0 0.0
    %790 = vmatpush1.msra.mxu0 0.0
    %791 = vmatprep.subr.mxu0 0.0
    %792 = vmatpush1.msra.mxu0 0.0
    %793 = vmatprep.subr.mxu0 0.0
    %794 = vmatpush1.msra.mxu0 0.0
    %795 = vmatprep.subr.mxu0 0.0
    %796 = vmatpush1.msra.mxu0 0.0
    %797 = vmatprep.subr.mxu0 0.0
    %798 = vmatpush1.msra.mxu0 0.0
    %799 = vmatprep.subr.mxu0 0.0
    %800 = vmatpush1.msra.mxu0 0.0
    %801 = vmatprep.subr.mxu0 0.0
    %802 = vmatpush1.msra.mxu0 0.0
    %803 = vmatprep.subr.mxu0 0.0
    %804 = vmatpush1.msra.mxu0 0.0
    %805 = vmatprep.subr.mxu0 0.0
    %806 = vmatpush1.msra.mxu0 0.0
    %807 = vmatprep.subr.mxu0 0.0
    %808 = vmatpush1.msra.mxu0 0.0
    %809 = vmatprep.subr.mxu0 0.0
    %810 = vmatpush1.msra.mxu0 0.0
    %811 = vmatprep.subr.mxu0 0.0
    %812 = vmatpush1.msra.mxu0 0.0
    %813 = vmatprep.subr.mxu0 0.0
    %814 = vmatpush1.msra.mxu0 0.0
    %815 = vmatprep.subr.mxu0 0.0
    %816 = vmatpush1.msra.mxu0 0.0
    %817 = vmatprep.subr.mxu0 0.0
    %818 = vmatpush1.msra.mxu0 0.0
    %819 = vmatprep.subr.mxu0 0.0
    %820 = vmatpush1.msra.mxu0 0.0
    %821 = vmatprep.subr.mxu0 0.0
    %822 = vmatpush1.msra.mxu0 0.0
    %823 = vmatprep.subr.mxu0 0.0
    %824 = vmatpush1.msra.mxu0 0.0
    %825 = vmatprep.subr.mxu0 0.0
    %826 = vmatpush1.msra.mxu0 0.0
    %827 = vmatprep.subr.mxu0 0.0
    %828 = vmatpush1.msra.mxu0 0.0
    %829 = vmatprep.subr.mxu0 0.0
    %830 = vmatpush1.msra.mxu0 0.0
    %831 = vmatprep.subr.mxu0 0.0
    %832 = vmatpush1.msra.mxu0 0.0
    %833 = vmatprep.mubr.f32.mxu0 0.0
    %834 = vmatmul.mubr.f32.gmra.mrb[0].mxu0 %v758
    %v835 = vpop.f32.mrb[0].mxu0
    %v836 = vadd.f32 %v739, %v835
    %v837 = vpop.f32.mrb[0].mxu0
    %838 = vmatprep.mubr.f32.mxu0 0.0
    %839 = vmatmul.mubr.f32.gmra.mrb[0].mxu0 %v761
    %v840 = vpop.f32.mrb[0].mxu0
    %v841 = vadd.f32 %v744, %v840
    %v842 = vpop.f32.mrb[0].mxu0
    %843 = vmatprep.mubr.f32.mxu0 0.0
    %844 = vmatmul.mubr.f32.gmra.mrb[0].mxu0 %v764
    %v845 = vpop.f32.mrb[0].mxu0
    %v846 = vadd.f32 %v749, %v845
    %v847 = vpop.f32.mrb[0].mxu0
    %848 = vmatprep.mubr.f32.mxu0 0.0
    %849 = vmatmul.mubr.f32.gmra.mrb[0].mxu0 %v767
    %v850 = vpop.f32.mrb[0].mxu0
    %v851 = vadd.f32 %v754, %v850
    %v852 = vpop.f32.mrb[0].mxu0
    %853 = vdwg.mxu0
    %s854 = scalar_lea.vmem %s4, 64
    %v855 = vld [vmem:[%s854] sm:$0xff]
    %v856 = vld [vmem:[%s854 + $0x8] sm:$0xff]
    %v857 = vld [vmem:[%s854 + $0x10] sm:$0xff]
    %v858 = vld [vmem:[%s854 + $0x18] sm:$0xff]
    %859 = vmatprep.subr.mxu0 0.0
    %860 = vmatpush1.msra.mxu0 %v462
    %861 = vmatprep.subr.mxu0 0.0
    %862 = vmatpush1.msra.mxu0 %v463
    %863 = vmatprep.subr.mxu0 0.0
    %864 = vmatpush1.msra.mxu0 %v464
    %865 = vmatprep.subr.mxu0 0.0
    %866 = vmatpush1.msra.mxu0 %v465
    %867 = vmatprep.subr.mxu0 0.0
    %868 = vmatpush1.msra.mxu0 %v466
    %869 = vmatprep.subr.mxu0 0.0
    %870 = vmatpush1.msra.mxu0 %v467
    %871 = vmatprep.subr.mxu0 0.0
    %872 = vmatpush1.msra.mxu0 %v468
    %873 = vmatprep.subr.mxu0 0.0
    %874 = vmatpush1.msra.mxu0 %v469
    %875 = vmatprep.subr.mxu0 0.0
    %876 = vmatpush1.msra.mxu0 %v470
    %877 = vmatprep.subr.mxu0 0.0
    %878 = vmatpush1.msra.mxu0 %v471
    %879 = vmatprep.subr.mxu0 0.0
    %880 = vmatpush1.msra.mxu0 %v472
    %881 = vmatprep.subr.mxu0 0.0
    %882 = vmatpush1.msra.mxu0 %v473
    %883 = vmatprep.subr.mxu0 0.0
    %884 = vmatpush1.msra.mxu0 %v474
    %885 = vmatprep.subr.mxu0 0.0
    %886 = vmatpush1.msra.mxu0 %v475
    %887 = vmatprep.subr.mxu0 0.0
    %888 = vmatpush1.msra.mxu0 %v476
    %889 = vmatprep.subr.mxu0 0.0
    %890 = vmatpush1.msra.mxu0 %v477
    %891 = vmatprep.subr.mxu0 0.0
    %892 = vmatpush1.msra.mxu0 0.0
    %893 = vmatprep.subr.mxu0 0.0
    %894 = vmatpush1.msra.mxu0 0.0
    %895 = vmatprep.subr.mxu0 0.0
    %896 = vmatpush1.msra.mxu0 0.0
    %897 = vmatprep.subr.mxu0 0.0
    %898 = vmatpush1.msra.mxu0 0.0
    %899 = vmatprep.subr.mxu0 0.0
    %900 = vmatpush1.msra.mxu0 0.0
    %901 = vmatprep.subr.mxu0 0.0
    %902 = vmatpush1.msra.mxu0 0.0
    %903 = vmatprep.subr.mxu0 0.0
    %904 = vmatpush1.msra.mxu0 0.0
    %905 = vmatprep.subr.mxu0 0.0
    %906 = vmatpush1.msra.mxu0 0.0
    %907 = vmatprep.subr.mxu0 0.0
    %908 = vmatpush1.msra.mxu0 0.0
    %909 = vmatprep.subr.mxu0 0.0
    %910 = vmatpush1.msra.mxu0 0.0
    %911 = vmatprep.subr.mxu0 0.0
    %912 = vmatpush1.msra.mxu0 0.0
    %913 = vmatprep.subr.mxu0 0.0
    %914 = vmatpush1.msra.mxu0 0.0
    %915 = vmatprep.subr.mxu0 0.0
    %916 = vmatpush1.msra.mxu0 0.0
    %917 = vmatprep.subr.mxu0 0.0
    %918 = vmatpush1.msra.mxu0 0.0
    %919 = vmatprep.subr.mxu0 0.0
    %920 = vmatpush1.msra.mxu0 0.0
    %921 = vmatprep.subr.mxu0 0.0
    %922 = vmatpush1.msra.mxu0 0.0
    %923 = vmatprep.mubr.f32.mxu0 0.0
    %924 = vmatmul.mubr.f32.gmra.mrb[0].mxu0 %v855
    %v925 = vpop.f32.mrb[0].mxu0
    %v926 = vadd.f32 0.0, %v925
    %v927 = vpop.f32.mrb[0].mxu0
    %928 = vmatprep.mubr.f32.mxu0 0.0
    %929 = vmatmul.mubr.f32.gmra.mrb[0].mxu0 %v856
    %v930 = vpop.f32.mrb[0].mxu0
    %v931 = vadd.f32 0.0, %v930
    %v932 = vpop.f32.mrb[0].mxu0
    %933 = vmatprep.mubr.f32.mxu0 0.0
    %934 = vmatmul.mubr.f32.gmra.mrb[0].mxu0 %v857
    %v935 = vpop.f32.mrb[0].mxu0
    %v936 = vadd.f32 0.0, %v935
    %v937 = vpop.f32.mrb[0].mxu0
    %938 = vmatprep.mubr.f32.mxu0 0.0
    %939 = vmatmul.mubr.f32.gmra.mrb[0].mxu0 %v858
    %v940 = vpop.f32.mrb[0].mxu0
    %v941 = vadd.f32 0.0, %v940
    %v942 = vpop.f32.mrb[0].mxu0
    %943 = vdwg.mxu0
    %s944 = scalar_lea.vmem %s5, 16
    %v945 = vld [vmem:[%s944] sm:$0xff]
    %v947 = vsel %vm285, %v926, 0
    %v950 = vsel %vm285, %v931, 0
    %v953 = vsel %vm285, %v936, 0
    %v956 = vsel %vm285, %v941, 0
    %958 = vmatprep.subr.mxu0 0.0
    %959 = vmatpush1.msra.mxu0 %v945
    %960 = vmatprep.subr.mxu0 0.0
    %961 = vmatpush1.msra.mxu0 0.0
    %962 = vmatprep.subr.mxu0 0.0
    %963 = vmatpush1.msra.mxu0 0.0
    %964 = vmatprep.subr.mxu0 0.0
    %965 = vmatpush1.msra.mxu0 0.0
    %966 = vmatprep.subr.mxu0 0.0
    %967 = vmatpush1.msra.mxu0 0.0
    %968 = vmatprep.subr.mxu0 0.0
    %969 = vmatpush1.msra.mxu0 0.0
    %970 = vmatprep.subr.mxu0 0.0
    %971 = vmatpush1.msra.mxu0 0.0
    %972 = vmatprep.subr.mxu0 0.0
    %973 = vmatpush1.msra.mxu0 0.0
    %974 = vmatprep.subr.mxu0 0.0
    %975 = vmatpush1.msra.mxu0 0.0
    %976 = vmatprep.subr.mxu0 0.0
    %977 = vmatpush1.msra.mxu0 0.0
    %978 = vmatprep.subr.mxu0 0.0
    %979 = vmatpush1.msra.mxu0 0.0
    %980 = vmatprep.subr.mxu0 0.0
    %981 = vmatpush1.msra.mxu0 0.0
    %982 = vmatprep.subr.mxu0 0.0
    %983 = vmatpush1.msra.mxu0 0.0
    %984 = vmatprep.subr.mxu0 0.0
    %985 = vmatpush1.msra.mxu0 0.0
    %986 = vmatprep.subr.mxu0 0.0
    %987 = vmatpush1.msra.mxu0 0.0
    %988 = vmatprep.subr.mxu0 0.0
    %989 = vmatpush1.msra.mxu0 0.0
    %990 = vmatprep.subr.mxu0 0.0
    %991 = vmatpush1.msra.mxu0 0.0
    %992 = vmatprep.subr.mxu0 0.0
    %993 = vmatpush1.msra.mxu0 0.0
    %994 = vmatprep.subr.mxu0 0.0
    %995 = vmatpush1.msra.mxu0 0.0
    %996 = vmatprep.subr.mxu0 0.0
    %997 = vmatpush1.msra.mxu0 0.0
    %998 = vmatprep.subr.mxu0 0.0
    %999 = vmatpush1.msra.mxu0 0.0
    %1000 = vmatprep.subr.mxu0 0.0
    %1001 = vmatpush1.msra.mxu0 0.0
    %1002 = vmatprep.subr.mxu0 0.0
    %1003 = vmatpush1.msra.mxu0 0.0
    %1004 = vmatprep.subr.mxu0 0.0
    %1005 = vmatpush1.msra.mxu0 0.0
    %1006 = vmatprep.subr.mxu0 0.0
    %1007 = vmatpush1.msra.mxu0 0.0
    %1008 = vmatprep.subr.mxu0 0.0
    %1009 = vmatpush1.msra.mxu0 0.0
    %1010 = vmatprep.subr.mxu0 0.0
    %1011 = vmatpush1.msra.mxu0 0.0
    %1012 = vmatprep.subr.mxu0 0.0
    %1013 = vmatpush1.msra.mxu0 0.0
    %1014 = vmatprep.subr.mxu0 0.0
    %1015 = vmatpush1.msra.mxu0 0.0
    %1016 = vmatprep.subr.mxu0 0.0
    %1017 = vmatpush1.msra.mxu0 0.0
    %1018 = vmatprep.subr.mxu0 0.0
    %1019 = vmatpush1.msra.mxu0 0.0
    %1020 = vmatprep.subr.mxu0 0.0
    %1021 = vmatpush1.msra.mxu0 0.0
    %1022 = vmatprep.mubr.f32.mxu0 0.0
    %1023 = vmatmul.mubr.f32.gmra.mrb[0].mxu0 %v947
    %v1024 = vpop.f32.mrb[0].mxu0
    %v1025 = vadd.f32 0.0, %v1024
    %v1026 = vpop.f32.mrb[0].mxu0
    %1027 = vmatprep.mubr.f32.mxu0 0.0
    %1028 = vmatmul.mubr.f32.gmra.mrb[0].mxu0 %v950
    %v1029 = vpop.f32.mrb[0].mxu0
    %v1030 = vadd.f32 0.0, %v1029
    %v1031 = vpop.f32.mrb[0].mxu0
    %1032 = vmatprep.mubr.f32.mxu0 0.0
    %1033 = vmatmul.mubr.f32.gmra.mrb[0].mxu0 %v953
    %v1034 = vpop.f32.mrb[0].mxu0
    %v1035 = vadd.f32 0.0, %v1034
    %v1036 = vpop.f32.mrb[0].mxu0
    %1037 = vmatprep.mubr.f32.mxu0 0.0
    %1038 = vmatmul.mubr.f32.gmra.mrb[0].mxu0 %v956
    %v1039 = vpop.f32.mrb[0].mxu0
    %v1040 = vadd.f32 0.0, %v1039
    %v1041 = vpop.f32.mrb[0].mxu0
    %1042 = vdwg.mxu0
    %v1043 = vadd.f32 %v836, %v1025
    %v1044 = vadd.f32 %v841, %v1030
    %v1045 = vadd.f32 %v846, %v1035
    %v1046 = vadd.f32 %v851, %v1040
    %s1047 = scalar_lea.vmem %s4, 96
    %v1048 = vld [vmem:[%s1047] sm:$0xff]
    %v1049 = vld [vmem:[%s1047 + $0x8] sm:$0xff]
    %v1050 = vld [vmem:[%s1047 + $0x10] sm:$0xff]
    %v1051 = vld [vmem:[%s1047 + $0x18] sm:$0xff]
    %1052 = vmatprep.subr.mxu0 0.0
    %1053 = vmatpush1.msra.mxu0 %v462
    %1054 = vmatprep.subr.mxu0 0.0
    %1055 = vmatpush1.msra.mxu0 %v463
    %1056 = vmatprep.subr.mxu0 0.0
    %1057 = vmatpush1.msra.mxu0 %v464
    %1058 = vmatprep.subr.mxu0 0.0
    %1059 = vmatpush1.msra.mxu0 %v465
    %1060 = vmatprep.subr.mxu0 0.0
    %1061 = vmatpush1.msra.mxu0 %v466
    %1062 = vmatprep.subr.mxu0 0.0
    %1063 = vmatpush1.msra.mxu0 %v467
    %1064 = vmatprep.subr.mxu0 0.0
    %1065 = vmatpush1.msra.mxu0 %v468
    %1066 = vmatprep.subr.mxu0 0.0
    %1067 = vmatpush1.msra.mxu0 %v469
    %1068 = vmatprep.subr.mxu0 0.0
    %1069 = vmatpush1.msra.mxu0 %v470
    %1070 = vmatprep.subr.mxu0 0.0
    %1071 = vmatpush1.msra.mxu0 %v471
    %1072 = vmatprep.subr.mxu0 0.0
    %1073 = vmatpush1.msra.mxu0 %v472
    %1074 = vmatprep.subr.mxu0 0.0
    %1075 = vmatpush1.msra.mxu0 %v473
    %1076 = vmatprep.subr.mxu0 0.0
    %1077 = vmatpush1.msra.mxu0 %v474
    %1078 = vmatprep.subr.mxu0 0.0
    %1079 = vmatpush1.msra.mxu0 %v475
    %1080 = vmatprep.subr.mxu0 0.0
    %1081 = vmatpush1.msra.mxu0 %v476
    %1082 = vmatprep.subr.mxu0 0.0
    %1083 = vmatpush1.msra.mxu0 %v477
    %1084 = vmatprep.subr.mxu0 0.0
    %1085 = vmatpush1.msra.mxu0 0.0
    %1086 = vmatprep.subr.mxu0 0.0
    %1087 = vmatpush1.msra.mxu0 0.0
    %1088 = vmatprep.subr.mxu0 0.0
    %1089 = vmatpush1.msra.mxu0 0.0
    %1090 = vmatprep.subr.mxu0 0.0
    %1091 = vmatpush1.msra.mxu0 0.0
    %1092 = vmatprep.subr.mxu0 0.0
    %1093 = vmatpush1.msra.mxu0 0.0
    %1094 = vmatprep.subr.mxu0 0.0
    %1095 = vmatpush1.msra.mxu0 0.0
    %1096 = vmatprep.subr.mxu0 0.0
    %1097 = vmatpush1.msra.mxu0 0.0
    %1098 = vmatprep.subr.mxu0 0.0
    %1099 = vmatpush1.msra.mxu0 0.0
    %1100 = vmatprep.subr.mxu0 0.0
    %1101 = vmatpush1.msra.mxu0 0.0
    %1102 = vmatprep.subr.mxu0 0.0
    %1103 = vmatpush1.msra.mxu0 0.0
    %1104 = vmatprep.subr.mxu0 0.0
    %1105 = vmatpush1.msra.mxu0 0.0
    %1106 = vmatprep.subr.mxu0 0.0
    %1107 = vmatpush1.msra.mxu0 0.0
    %1108 = vmatprep.subr.mxu0 0.0
    %1109 = vmatpush1.msra.mxu0 0.0
    %1110 = vmatprep.subr.mxu0 0.0
    %1111 = vmatpush1.msra.mxu0 0.0
    %1112 = vmatprep.subr.mxu0 0.0
    %1113 = vmatpush1.msra.mxu0 0.0
    %1114 = vmatprep.subr.mxu0 0.0
    %1115 = vmatpush1.msra.mxu0 0.0
    %1116 = vmatprep.mubr.f32.mxu0 0.0
    %1117 = vmatmul.mubr.f32.gmra.mrb[0].mxu0 %v1048
    %v1118 = vpop.f32.mrb[0].mxu0
    %v1119 = vadd.f32 0.0, %v1118
    %v1120 = vpop.f32.mrb[0].mxu0
    %1121 = vmatprep.mubr.f32.mxu0 0.0
    %1122 = vmatmul.mubr.f32.gmra.mrb[0].mxu0 %v1049
    %v1123 = vpop.f32.mrb[0].mxu0
    %v1124 = vadd.f32 0.0, %v1123
    %v1125 = vpop.f32.mrb[0].mxu0
    %1126 = vmatprep.mubr.f32.mxu0 0.0
    %1127 = vmatmul.mubr.f32.gmra.mrb[0].mxu0 %v1050
    %v1128 = vpop.f32.mrb[0].mxu0
    %v1129 = vadd.f32 0.0, %v1128
    %v1130 = vpop.f32.mrb[0].mxu0
    %1131 = vmatprep.mubr.f32.mxu0 0.0
    %1132 = vmatmul.mubr.f32.gmra.mrb[0].mxu0 %v1051
    %v1133 = vpop.f32.mrb[0].mxu0
    %v1134 = vadd.f32 0.0, %v1133
    %v1135 = vpop.f32.mrb[0].mxu0
    %1136 = vdwg.mxu0
    %s1137 = scalar_lea.vmem %s5, 24
    %v1138 = vld [vmem:[%s1137] sm:$0xff]
    %v1140 = vsel %vm285, %v1119, 0
    %v1143 = vsel %vm285, %v1124, 0
    %v1146 = vsel %vm285, %v1129, 0
    %v1149 = vsel %vm285, %v1134, 0
    %1151 = vmatprep.subr.mxu0 0.0
    %1152 = vmatpush1.msra.mxu0 %v1138
    %1153 = vmatprep.subr.mxu0 0.0
    %1154 = vmatpush1.msra.mxu0 0.0
    %1155 = vmatprep.subr.mxu0 0.0
    %1156 = vmatpush1.msra.mxu0 0.0
    %1157 = vmatprep.subr.mxu0 0.0
    %1158 = vmatpush1.msra.mxu0 0.0
    %1159 = vmatprep.subr.mxu0 0.0
    %1160 = vmatpush1.msra.mxu0 0.0
    %1161 = vmatprep.subr.mxu0 0.0
    %1162 = vmatpush1.msra.mxu0 0.0
    %1163 = vmatprep.subr.mxu0 0.0
    %1164 = vmatpush1.msra.mxu0 0.0
    %1165 = vmatprep.subr.mxu0 0.0
    %1166 = vmatpush1.msra.mxu0 0.0
    %1167 = vmatprep.subr.mxu0 0.0
    %1168 = vmatpush1.msra.mxu0 0.0
    %1169 = vmatprep.subr.mxu0 0.0
    %1170 = vmatpush1.msra.mxu0 0.0
    %1171 = vmatprep.subr.mxu0 0.0
    %1172 = vmatpush1.msra.mxu0 0.0
    %1173 = vmatprep.subr.mxu0 0.0
    %1174 = vmatpush1.msra.mxu0 0.0
    %1175 = vmatprep.subr.mxu0 0.0
    %1176 = vmatpush1.msra.mxu0 0.0
    %1177 = vmatprep.subr.mxu0 0.0
    %1178 = vmatpush1.msra.mxu0 0.0
    %1179 = vmatprep.subr.mxu0 0.0
    %1180 = vmatpush1.msra.mxu0 0.0
    %1181 = vmatprep.subr.mxu0 0.0
    %1182 = vmatpush1.msra.mxu0 0.0
    %1183 = vmatprep.subr.mxu0 0.0
    %1184 = vmatpush1.msra.mxu0 0.0
    %1185 = vmatprep.subr.mxu0 0.0
    %1186 = vmatpush1.msra.mxu0 0.0
    %1187 = vmatprep.subr.mxu0 0.0
    %1188 = vmatpush1.msra.mxu0 0.0
    %1189 = vmatprep.subr.mxu0 0.0
    %1190 = vmatpush1.msra.mxu0 0.0
    %1191 = vmatprep.subr.mxu0 0.0
    %1192 = vmatpush1.msra.mxu0 0.0
    %1193 = vmatprep.subr.mxu0 0.0
    %1194 = vmatpush1.msra.mxu0 0.0
    %1195 = vmatprep.subr.mxu0 0.0
    %1196 = vmatpush1.msra.mxu0 0.0
    %1197 = vmatprep.subr.mxu0 0.0
    %1198 = vmatpush1.msra.mxu0 0.0
    %1199 = vmatprep.subr.mxu0 0.0
    %1200 = vmatpush1.msra.mxu0 0.0
    %1201 = vmatprep.subr.mxu0 0.0
    %1202 = vmatpush1.msra.mxu0 0.0
    %1203 = vmatprep.subr.mxu0 0.0
    %1204 = vmatpush1.msra.mxu0 0.0
    %1205 = vmatprep.subr.mxu0 0.0
    %1206 = vmatpush1.msra.mxu0 0.0
    %1207 = vmatprep.subr.mxu0 0.0
    %1208 = vmatpush1.msra.mxu0 0.0
    %1209 = vmatprep.subr.mxu0 0.0
    %1210 = vmatpush1.msra.mxu0 0.0
    %1211 = vmatprep.subr.mxu0 0.0
    %1212 = vmatpush1.msra.mxu0 0.0
    %1213 = vmatprep.subr.mxu0 0.0
    %1214 = vmatpush1.msra.mxu0 0.0
    %1215 = vmatprep.mubr.f32.mxu0 0.0
    %1216 = vmatmul.mubr.f32.gmra.mrb[0].mxu0 %v1140
    %v1217 = vpop.f32.mrb[0].mxu0
    %v1218 = vadd.f32 0.0, %v1217
    %v1219 = vpop.f32.mrb[0].mxu0
    %1220 = vmatprep.mubr.f32.mxu0 0.0
    %1221 = vmatmul.mubr.f32.gmra.mrb[0].mxu0 %v1143
    %v1222 = vpop.f32.mrb[0].mxu0
    %v1223 = vadd.f32 0.0, %v1222
    %v1224 = vpop.f32.mrb[0].mxu0
    %1225 = vmatprep.mubr.f32.mxu0 0.0
    %1226 = vmatmul.mubr.f32.gmra.mrb[0].mxu0 %v1146
    %v1227 = vpop.f32.mrb[0].mxu0
    %v1228 = vadd.f32 0.0, %v1227
    %v1229 = vpop.f32.mrb[0].mxu0
    %1230 = vmatprep.mubr.f32.mxu0 0.0
    %1231 = vmatmul.mubr.f32.gmra.mrb[0].mxu0 %v1149
    %v1232 = vpop.f32.mrb[0].mxu0
    %v1233 = vadd.f32 0.0, %v1232
    %v1234 = vpop.f32.mrb[0].mxu0
    %1235 = vdwg.mxu0
    %v1236 = vadd.f32 %v1043, %v1218
    %v1237 = vadd.f32 %v1044, %v1223
    %v1238 = vadd.f32 %v1045, %v1228
    %v1239 = vadd.f32 %v1046, %v1233
    %s1240 = scalar_lea.vmem %s4, 128
    %v1241 = vld [vmem:[%s1240] sm:$0xff]
    %v1242 = vld [vmem:[%s1240 + $0x8] sm:$0xff]
    %v1243 = vld [vmem:[%s1240 + $0x10] sm:$0xff]
    %v1244 = vld [vmem:[%s1240 + $0x18] sm:$0xff]
    %1245 = vmatprep.subr.mxu0 0.0
    %1246 = vmatpush1.msra.mxu0 %v462
    %1247 = vmatprep.subr.mxu0 0.0
    %1248 = vmatpush1.msra.mxu0 %v463
    %1249 = vmatprep.subr.mxu0 0.0
    %1250 = vmatpush1.msra.mxu0 %v464
    %1251 = vmatprep.subr.mxu0 0.0
    %1252 = vmatpush1.msra.mxu0 %v465
    %1253 = vmatprep.subr.mxu0 0.0
    %1254 = vmatpush1.msra.mxu0 %v466
    %1255 = vmatprep.subr.mxu0 0.0
    %1256 = vmatpush1.msra.mxu0 %v467
    %1257 = vmatprep.subr.mxu0 0.0
    %1258 = vmatpush1.msra.mxu0 %v468
    %1259 = vmatprep.subr.mxu0 0.0
    %1260 = vmatpush1.msra.mxu0 %v469
    %1261 = vmatprep.subr.mxu0 0.0
    %1262 = vmatpush1.msra.mxu0 %v470
    %1263 = vmatprep.subr.mxu0 0.0
    %1264 = vmatpush1.msra.mxu0 %v471
    %1265 = vmatprep.subr.mxu0 0.0
    %1266 = vmatpush1.msra.mxu0 %v472
    %1267 = vmatprep.subr.mxu0 0.0
    %1268 = vmatpush1.msra.mxu0 %v473
    %1269 = vmatprep.subr.mxu0 0.0
    %1270 = vmatpush1.msra.mxu0 %v474
    %1271 = vmatprep.subr.mxu0 0.0
    %1272 = vmatpush1.msra.mxu0 %v475
    %1273 = vmatprep.subr.mxu0 0.0
    %1274 = vmatpush1.msra.mxu0 %v476
    %1275 = vmatprep.subr.mxu0 0.0
    %1276 = vmatpush1.msra.mxu0 %v477
    %1277 = vmatprep.subr.mxu0 0.0
    %1278 = vmatpush1.msra.mxu0 0.0
    %1279 = vmatprep.subr.mxu0 0.0
    %1280 = vmatpush1.msra.mxu0 0.0
    %1281 = vmatprep.subr.mxu0 0.0
    %1282 = vmatpush1.msra.mxu0 0.0
    %1283 = vmatprep.subr.mxu0 0.0
    %1284 = vmatpush1.msra.mxu0 0.0
    %1285 = vmatprep.subr.mxu0 0.0
    %1286 = vmatpush1.msra.mxu0 0.0
    %1287 = vmatprep.subr.mxu0 0.0
    %1288 = vmatpush1.msra.mxu0 0.0
    %1289 = vmatprep.subr.mxu0 0.0
    %1290 = vmatpush1.msra.mxu0 0.0
    %1291 = vmatprep.subr.mxu0 0.0
    %1292 = vmatpush1.msra.mxu0 0.0
    %1293 = vmatprep.subr.mxu0 0.0
    %1294 = vmatpush1.msra.mxu0 0.0
    %1295 = vmatprep.subr.mxu0 0.0
    %1296 = vmatpush1.msra.mxu0 0.0
    %1297 = vmatprep.subr.mxu0 0.0
    %1298 = vmatpush1.msra.mxu0 0.0
    %1299 = vmatprep.subr.mxu0 0.0
    %1300 = vmatpush1.msra.mxu0 0.0
    %1301 = vmatprep.subr.mxu0 0.0
    %1302 = vmatpush1.msra.mxu0 0.0
    %1303 = vmatprep.subr.mxu0 0.0
    %1304 = vmatpush1.msra.mxu0 0.0
    %1305 = vmatprep.subr.mxu0 0.0
    %1306 = vmatpush1.msra.mxu0 0.0
    %1307 = vmatprep.subr.mxu0 0.0
    %1308 = vmatpush1.msra.mxu0 0.0
    %1309 = vmatprep.mubr.f32.mxu0 0.0
    %1310 = vmatmul.mubr.f32.gmra.mrb[0].mxu0 %v1241
    %v1311 = vpop.f32.mrb[0].mxu0
    %v1312 = vadd.f32 0.0, %v1311
    %v1313 = vpop.f32.mrb[0].mxu0
    %1314 = vmatprep.mubr.f32.mxu0 0.0
    %1315 = vmatmul.mubr.f32.gmra.mrb[0].mxu0 %v1242
    %v1316 = vpop.f32.mrb[0].mxu0
    %v1317 = vadd.f32 0.0, %v1316
    %v1318 = vpop.f32.mrb[0].mxu0
    %1319 = vmatprep.mubr.f32.mxu0 0.0
    %1320 = vmatmul.mubr.f32.gmra.mrb[0].mxu0 %v1243
    %v1321 = vpop.f32.mrb[0].mxu0
    %v1322 = vadd.f32 0.0, %v1321
    %v1323 = vpop.f32.mrb[0].mxu0
    %1324 = vmatprep.mubr.f32.mxu0 0.0
    %1325 = vmatmul.mubr.f32.gmra.mrb[0].mxu0 %v1244
    %v1326 = vpop.f32.mrb[0].mxu0
    %v1327 = vadd.f32 0.0, %v1326
    %v1328 = vpop.f32.mrb[0].mxu0
    %1329 = vdwg.mxu0
    %s1330 = scalar_lea.vmem %s5, 32
    %v1331 = vld [vmem:[%s1330] sm:$0xff]
    %v1333 = vsel %vm285, %v1312, 0
    %v1336 = vsel %vm285, %v1317, 0
    %v1339 = vsel %vm285, %v1322, 0
    %v1342 = vsel %vm285, %v1327, 0
    %1344 = vmatprep.subr.mxu0 0.0
    %1345 = vmatpush1.msra.mxu0 %v1331
    %1346 = vmatprep.subr.mxu0 0.0
    %1347 = vmatpush1.msra.mxu0 0.0
    %1348 = vmatprep.subr.mxu0 0.0
    %1349 = vmatpush1.msra.mxu0 0.0
    %1350 = vmatprep.subr.mxu0 0.0
    %1351 = vmatpush1.msra.mxu0 0.0
    %1352 = vmatprep.subr.mxu0 0.0
    %1353 = vmatpush1.msra.mxu0 0.0
    %1354 = vmatprep.subr.mxu0 0.0
    %1355 = vmatpush1.msra.mxu0 0.0
    %1356 = vmatprep.subr.mxu0 0.0
    %1357 = vmatpush1.msra.mxu0 0.0
    %1358 = vmatprep.subr.mxu0 0.0
    %1359 = vmatpush1.msra.mxu0 0.0
    %1360 = vmatprep.subr.mxu0 0.0
    %1361 = vmatpush1.msra.mxu0 0.0
    %1362 = vmatprep.subr.mxu0 0.0
    %1363 = vmatpush1.msra.mxu0 0.0
    %1364 = vmatprep.subr.mxu0 0.0
    %1365 = vmatpush1.msra.mxu0 0.0
    %1366 = vmatprep.subr.mxu0 0.0
    %1367 = vmatpush1.msra.mxu0 0.0
    %1368 = vmatprep.subr.mxu0 0.0
    %1369 = vmatpush1.msra.mxu0 0.0
    %1370 = vmatprep.subr.mxu0 0.0
    %1371 = vmatpush1.msra.mxu0 0.0
    %1372 = vmatprep.subr.mxu0 0.0
    %1373 = vmatpush1.msra.mxu0 0.0
    %1374 = vmatprep.subr.mxu0 0.0
    %1375 = vmatpush1.msra.mxu0 0.0
    %1376 = vmatprep.subr.mxu0 0.0
    %1377 = vmatpush1.msra.mxu0 0.0
    %1378 = vmatprep.subr.mxu0 0.0
    %1379 = vmatpush1.msra.mxu0 0.0
    %1380 = vmatprep.subr.mxu0 0.0
    %1381 = vmatpush1.msra.mxu0 0.0
    %1382 = vmatprep.subr.mxu0 0.0
    %1383 = vmatpush1.msra.mxu0 0.0
    %1384 = vmatprep.subr.mxu0 0.0
    %1385 = vmatpush1.msra.mxu0 0.0
    %1386 = vmatprep.subr.mxu0 0.0
    %1387 = vmatpush1.msra.mxu0 0.0
    %1388 = vmatprep.subr.mxu0 0.0
    %1389 = vmatpush1.msra.mxu0 0.0
    %1390 = vmatprep.subr.mxu0 0.0
    %1391 = vmatpush1.msra.mxu0 0.0
    %1392 = vmatprep.subr.mxu0 0.0
    %1393 = vmatpush1.msra.mxu0 0.0
    %1394 = vmatprep.subr.mxu0 0.0
    %1395 = vmatpush1.msra.mxu0 0.0
    %1396 = vmatprep.subr.mxu0 0.0
    %1397 = vmatpush1.msra.mxu0 0.0
    %1398 = vmatprep.subr.mxu0 0.0
    %1399 = vmatpush1.msra.mxu0 0.0
    %1400 = vmatprep.subr.mxu0 0.0
    %1401 = vmatpush1.msra.mxu0 0.0
    %1402 = vmatprep.subr.mxu0 0.0
    %1403 = vmatpush1.msra.mxu0 0.0
    %1404 = vmatprep.subr.mxu0 0.0
    %1405 = vmatpush1.msra.mxu0 0.0
    %1406 = vmatprep.subr.mxu0 0.0
    %1407 = vmatpush1.msra.mxu0 0.0
    %1408 = vmatprep.mubr.f32.mxu0 0.0
    %1409 = vmatmul.mubr.f32.gmra.mrb[0].mxu0 %v1333
    %v1410 = vpop.f32.mrb[0].mxu0
    %v1411 = vadd.f32 0.0, %v1410
    %v1412 = vpop.f32.mrb[0].mxu0
    %1413 = vmatprep.mubr.f32.mxu0 0.0
    %1414 = vmatmul.mubr.f32.gmra.mrb[0].mxu0 %v1336
    %v1415 = vpop.f32.mrb[0].mxu0
    %v1416 = vadd.f32 0.0, %v1415
    %v1417 = vpop.f32.mrb[0].mxu0
    %1418 = vmatprep.mubr.f32.mxu0 0.0
    %1419 = vmatmul.mubr.f32.gmra.mrb[0].mxu0 %v1339
    %v1420 = vpop.f32.mrb[0].mxu0
    %v1421 = vadd.f32 0.0, %v1420
    %v1422 = vpop.f32.mrb[0].mxu0
    %1423 = vmatprep.mubr.f32.mxu0 0.0
    %1424 = vmatmul.mubr.f32.gmra.mrb[0].mxu0 %v1342
    %v1425 = vpop.f32.mrb[0].mxu0
    %v1426 = vadd.f32 0.0, %v1425
    %v1427 = vpop.f32.mrb[0].mxu0
    %1428 = vdwg.mxu0
    %v1429 = vadd.f32 %v1236, %v1411
    %v1430 = vadd.f32 %v1237, %v1416
    %v1431 = vadd.f32 %v1238, %v1421
    %v1432 = vadd.f32 %v1239, %v1426
    %s1433 = scalar_lea.vmem %s4, 160
    %v1434 = vld [vmem:[%s1433] sm:$0xff]
    %v1435 = vld [vmem:[%s1433 + $0x8] sm:$0xff]
    %v1436 = vld [vmem:[%s1433 + $0x10] sm:$0xff]
    %v1437 = vld [vmem:[%s1433 + $0x18] sm:$0xff]
    %1438 = vmatprep.subr.mxu0 0.0
    %1439 = vmatpush1.msra.mxu0 %v462
    %1440 = vmatprep.subr.mxu0 0.0
    %1441 = vmatpush1.msra.mxu0 %v463
    %1442 = vmatprep.subr.mxu0 0.0
    %1443 = vmatpush1.msra.mxu0 %v464
    %1444 = vmatprep.subr.mxu0 0.0
    %1445 = vmatpush1.msra.mxu0 %v465
    %1446 = vmatprep.subr.mxu0 0.0
    %1447 = vmatpush1.msra.mxu0 %v466
    %1448 = vmatprep.subr.mxu0 0.0
    %1449 = vmatpush1.msra.mxu0 %v467
    %1450 = vmatprep.subr.mxu0 0.0
    %1451 = vmatpush1.msra.mxu0 %v468
    %1452 = vmatprep.subr.mxu0 0.0
    %1453 = vmatpush1.msra.mxu0 %v469
    %1454 = vmatprep.subr.mxu0 0.0
    %1455 = vmatpush1.msra.mxu0 %v470
    %1456 = vmatprep.subr.mxu0 0.0
    %1457 = vmatpush1.msra.mxu0 %v471
    %1458 = vmatprep.subr.mxu0 0.0
    %1459 = vmatpush1.msra.mxu0 %v472
    %1460 = vmatprep.subr.mxu0 0.0
    %1461 = vmatpush1.msra.mxu0 %v473
    %1462 = vmatprep.subr.mxu0 0.0
    %1463 = vmatpush1.msra.mxu0 %v474
    %1464 = vmatprep.subr.mxu0 0.0
    %1465 = vmatpush1.msra.mxu0 %v475
    %1466 = vmatprep.subr.mxu0 0.0
    %1467 = vmatpush1.msra.mxu0 %v476
    %1468 = vmatprep.subr.mxu0 0.0
    %1469 = vmatpush1.msra.mxu0 %v477
    %1470 = vmatprep.subr.mxu0 0.0
    %1471 = vmatpush1.msra.mxu0 0.0
    %1472 = vmatprep.subr.mxu0 0.0
    %1473 = vmatpush1.msra.mxu0 0.0
    %1474 = vmatprep.subr.mxu0 0.0
    %1475 = vmatpush1.msra.mxu0 0.0
    %1476 = vmatprep.subr.mxu0 0.0
    %1477 = vmatpush1.msra.mxu0 0.0
    %1478 = vmatprep.subr.mxu0 0.0
    %1479 = vmatpush1.msra.mxu0 0.0
    %1480 = vmatprep.subr.mxu0 0.0
    %1481 = vmatpush1.msra.mxu0 0.0
    %1482 = vmatprep.subr.mxu0 0.0
    %1483 = vmatpush1.msra.mxu0 0.0
    %1484 = vmatprep.subr.mxu0 0.0
    %1485 = vmatpush1.msra.mxu0 0.0
    %1486 = vmatprep.subr.mxu0 0.0
    %1487 = vmatpush1.msra.mxu0 0.0
    %1488 = vmatprep.subr.mxu0 0.0
    %1489 = vmatpush1.msra.mxu0 0.0
    %1490 = vmatprep.subr.mxu0 0.0
    %1491 = vmatpush1.msra.mxu0 0.0
    %1492 = vmatprep.subr.mxu0 0.0
    %1493 = vmatpush1.msra.mxu0 0.0
    %1494 = vmatprep.subr.mxu0 0.0
    %1495 = vmatpush1.msra.mxu0 0.0
    %1496 = vmatprep.subr.mxu0 0.0
    %1497 = vmatpush1.msra.mxu0 0.0
    %1498 = vmatprep.subr.mxu0 0.0
    %1499 = vmatpush1.msra.mxu0 0.0
    %1500 = vmatprep.subr.mxu0 0.0
    %1501 = vmatpush1.msra.mxu0 0.0
    %1502 = vmatprep.mubr.f32.mxu0 0.0
    %1503 = vmatmul.mubr.f32.gmra.mrb[0].mxu0 %v1434
    %v1504 = vpop.f32.mrb[0].mxu0
    %v1505 = vadd.f32 0.0, %v1504
    %v1506 = vpop.f32.mrb[0].mxu0
    %1507 = vmatprep.mubr.f32.mxu0 0.0
    %1508 = vmatmul.mubr.f32.gmra.mrb[0].mxu0 %v1435
    %v1509 = vpop.f32.mrb[0].mxu0
    %v1510 = vadd.f32 0.0, %v1509
    %v1511 = vpop.f32.mrb[0].mxu0
    %1512 = vmatprep.mubr.f32.mxu0 0.0
    %1513 = vmatmul.mubr.f32.gmra.mrb[0].mxu0 %v1436
    %v1514 = vpop.f32.mrb[0].mxu0
    %v1515 = vadd.f32 0.0, %v1514
    %v1516 = vpop.f32.mrb[0].mxu0
    %1517 = vmatprep.mubr.f32.mxu0 0.0
    %1518 = vmatmul.mubr.f32.gmra.mrb[0].mxu0 %v1437
    %v1519 = vpop.f32.mrb[0].mxu0
    %v1520 = vadd.f32 0.0, %v1519
    %v1521 = vpop.f32.mrb[0].mxu0
    %1522 = vdwg.mxu0
    %s1523 = scalar_lea.vmem %s5, 40
    %v1524 = vld [vmem:[%s1523] sm:$0xff]
    %v1526 = vsel %vm285, %v1505, 0
    %v1529 = vsel %vm285, %v1510, 0
    %v1532 = vsel %vm285, %v1515, 0
    %v1535 = vsel %vm285, %v1520, 0
    %1537 = vmatprep.subr.mxu0 0.0
    %1538 = vmatpush1.msra.mxu0 %v1524
    %1539 = vmatprep.subr.mxu0 0.0
    %1540 = vmatpush1.msra.mxu0 0.0
    %1541 = vmatprep.subr.mxu0 0.0
    %1542 = vmatpush1.msra.mxu0 0.0
    %1543 = vmatprep.subr.mxu0 0.0
    %1544 = vmatpush1.msra.mxu0 0.0
    %1545 = vmatprep.subr.mxu0 0.0
    %1546 = vmatpush1.msra.mxu0 0.0
    %1547 = vmatprep.subr.mxu0 0.0
    %1548 = vmatpush1.msra.mxu0 0.0
    %1549 = vmatprep.subr.mxu0 0.0
    %1550 = vmatpush1.msra.mxu0 0.0
    %1551 = vmatprep.subr.mxu0 0.0
    %1552 = vmatpush1.msra.mxu0 0.0
    %1553 = vmatprep.subr.mxu0 0.0
    %1554 = vmatpush1.msra.mxu0 0.0
    %1555 = vmatprep.subr.mxu0 0.0
    %1556 = vmatpush1.msra.mxu0 0.0
    %1557 = vmatprep.subr.mxu0 0.0
    %1558 = vmatpush1.msra.mxu0 0.0
    %1559 = vmatprep.subr.mxu0 0.0
    %1560 = vmatpush1.msra.mxu0 0.0
    %1561 = vmatprep.subr.mxu0 0.0
    %1562 = vmatpush1.msra.mxu0 0.0
    %1563 = vmatprep.subr.mxu0 0.0
    %1564 = vmatpush1.msra.mxu0 0.0
    %1565 = vmatprep.subr.mxu0 0.0
    %1566 = vmatpush1.msra.mxu0 0.0
    %1567 = vmatprep.subr.mxu0 0.0
    %1568 = vmatpush1.msra.mxu0 0.0
    %1569 = vmatprep.subr.mxu0 0.0
    %1570 = vmatpush1.msra.mxu0 0.0
    %1571 = vmatprep.subr.mxu0 0.0
    %1572 = vmatpush1.msra.mxu0 0.0
    %1573 = vmatprep.subr.mxu0 0.0
    %1574 = vmatpush1.msra.mxu0 0.0
    %1575 = vmatprep.subr.mxu0 0.0
    %1576 = vmatpush1.msra.mxu0 0.0
    %1577 = vmatprep.subr.mxu0 0.0
    %1578 = vmatpush1.msra.mxu0 0.0
    %1579 = vmatprep.subr.mxu0 0.0
    %1580 = vmatpush1.msra.mxu0 0.0
    %1581 = vmatprep.subr.mxu0 0.0
    %1582 = vmatpush1.msra.mxu0 0.0
    %1583 = vmatprep.subr.mxu0 0.0
    %1584 = vmatpush1.msra.mxu0 0.0
    %1585 = vmatprep.subr.mxu0 0.0
    %1586 = vmatpush1.msra.mxu0 0.0
    %1587 = vmatprep.subr.mxu0 0.0
    %1588 = vmatpush1.msra.mxu0 0.0
    %1589 = vmatprep.subr.mxu0 0.0
    %1590 = vmatpush1.msra.mxu0 0.0
    %1591 = vmatprep.subr.mxu0 0.0
    %1592 = vmatpush1.msra.mxu0 0.0
    %1593 = vmatprep.subr.mxu0 0.0
    %1594 = vmatpush1.msra.mxu0 0.0
    %1595 = vmatprep.subr.mxu0 0.0
    %1596 = vmatpush1.msra.mxu0 0.0
    %1597 = vmatprep.subr.mxu0 0.0
    %1598 = vmatpush1.msra.mxu0 0.0
    %1599 = vmatprep.subr.mxu0 0.0
    %1600 = vmatpush1.msra.mxu0 0.0
    %1601 = vmatprep.mubr.f32.mxu0 0.0
    %1602 = vmatmul.mubr.f32.gmra.mrb[0].mxu0 %v1526
    %v1603 = vpop.f32.mrb[0].mxu0
    %v1604 = vadd.f32 0.0, %v1603
    %v1605 = vpop.f32.mrb[0].mxu0
    %1606 = vmatprep.mubr.f32.mxu0 0.0
    %1607 = vmatmul.mubr.f32.gmra.mrb[0].mxu0 %v1529
    %v1608 = vpop.f32.mrb[0].mxu0
    %v1609 = vadd.f32 0.0, %v1608
    %v1610 = vpop.f32.mrb[0].mxu0
    %1611 = vmatprep.mubr.f32.mxu0 0.0
    %1612 = vmatmul.mubr.f32.gmra.mrb[0].mxu0 %v1532
    %v1613 = vpop.f32.mrb[0].mxu0
    %v1614 = vadd.f32 0.0, %v1613
    %v1615 = vpop.f32.mrb[0].mxu0
    %1616 = vmatprep.mubr.f32.mxu0 0.0
    %1617 = vmatmul.mubr.f32.gmra.mrb[0].mxu0 %v1535
    %v1618 = vpop.f32.mrb[0].mxu0
    %v1619 = vadd.f32 0.0, %v1618
    %v1620 = vpop.f32.mrb[0].mxu0
    %1621 = vdwg.mxu0
    %v1622 = vadd.f32 %v1429, %v1604
    %v1623 = vadd.f32 %v1430, %v1609
    %v1624 = vadd.f32 %v1431, %v1614
    %v1625 = vadd.f32 %v1432, %v1619
    %s1626 = scalar_lea.vmem %s4, 192
    %v1627 = vld [vmem:[%s1626] sm:$0xff]
    %v1628 = vld [vmem:[%s1626 + $0x8] sm:$0xff]
    %v1629 = vld [vmem:[%s1626 + $0x10] sm:$0xff]
    %v1630 = vld [vmem:[%s1626 + $0x18] sm:$0xff]
    %1631 = vmatprep.subr.mxu0 0.0
    %1632 = vmatpush1.msra.mxu0 %v462
    %1633 = vmatprep.subr.mxu0 0.0
    %1634 = vmatpush1.msra.mxu0 %v463
    %1635 = vmatprep.subr.mxu0 0.0
    %1636 = vmatpush1.msra.mxu0 %v464
    %1637 = vmatprep.subr.mxu0 0.0
    %1638 = vmatpush1.msra.mxu0 %v465
    %1639 = vmatprep.subr.mxu0 0.0
    %1640 = vmatpush1.msra.mxu0 %v466
    %1641 = vmatprep.subr.mxu0 0.0
    %1642 = vmatpush1.msra.mxu0 %v467
    %1643 = vmatprep.subr.mxu0 0.0
    %1644 = vmatpush1.msra.mxu0 %v468
    %1645 = vmatprep.subr.mxu0 0.0
    %1646 = vmatpush1.msra.mxu0 %v469
    %1647 = vmatprep.subr.mxu0 0.0
    %1648 = vmatpush1.msra.mxu0 %v470
    %1649 = vmatprep.subr.mxu0 0.0
    %1650 = vmatpush1.msra.mxu0 %v471
    %1651 = vmatprep.subr.mxu0 0.0
    %1652 = vmatpush1.msra.mxu0 %v472
    %1653 = vmatprep.subr.mxu0 0.0
    %1654 = vmatpush1.msra.mxu0 %v473
    %1655 = vmatprep.subr.mxu0 0.0
    %1656 = vmatpush1.msra.mxu0 %v474
    %1657 = vmatprep.subr.mxu0 0.0
    %1658 = vmatpush1.msra.mxu0 %v475
    %1659 = vmatprep.subr.mxu0 0.0
    %1660 = vmatpush1.msra.mxu0 %v476
    %1661 = vmatprep.subr.mxu0 0.0
    %1662 = vmatpush1.msra.mxu0 %v477
    %1663 = vmatprep.subr.mxu0 0.0
    %1664 = vmatpush1.msra.mxu0 0.0
    %1665 = vmatprep.subr.mxu0 0.0
    %1666 = vmatpush1.msra.mxu0 0.0
    %1667 = vmatprep.subr.mxu0 0.0
    %1668 = vmatpush1.msra.mxu0 0.0
    %1669 = vmatprep.subr.mxu0 0.0
    %1670 = vmatpush1.msra.mxu0 0.0
    %1671 = vmatprep.subr.mxu0 0.0
    %1672 = vmatpush1.msra.mxu0 0.0
    %1673 = vmatprep.subr.mxu0 0.0
    %1674 = vmatpush1.msra.mxu0 0.0
    %1675 = vmatprep.subr.mxu0 0.0
    %1676 = vmatpush1.msra.mxu0 0.0
    %1677 = vmatprep.subr.mxu0 0.0
    %1678 = vmatpush1.msra.mxu0 0.0
    %1679 = vmatprep.subr.mxu0 0.0
    %1680 = vmatpush1.msra.mxu0 0.0
    %1681 = vmatprep.subr.mxu0 0.0
    %1682 = vmatpush1.msra.mxu0 0.0
    %1683 = vmatprep.subr.mxu0 0.0
    %1684 = vmatpush1.msra.mxu0 0.0
    %1685 = vmatprep.subr.mxu0 0.0
    %1686 = vmatpush1.msra.mxu0 0.0
    %1687 = vmatprep.subr.mxu0 0.0
    %1688 = vmatpush1.msra.mxu0 0.0
    %1689 = vmatprep.subr.mxu0 0.0
    %1690 = vmatpush1.msra.mxu0 0.0
    %1691 = vmatprep.subr.mxu0 0.0
    %1692 = vmatpush1.msra.mxu0 0.0
    %1693 = vmatprep.subr.mxu0 0.0
    %1694 = vmatpush1.msra.mxu0 0.0
    %1695 = vmatprep.mubr.f32.mxu0 0.0
    %1696 = vmatmul.mubr.f32.gmra.mrb[0].mxu0 %v1627
    %v1697 = vpop.f32.mrb[0].mxu0
    %v1698 = vadd.f32 0.0, %v1697
    %v1699 = vpop.f32.mrb[0].mxu0
    %1700 = vmatprep.mubr.f32.mxu0 0.0
    %1701 = vmatmul.mubr.f32.gmra.mrb[0].mxu0 %v1628
    %v1702 = vpop.f32.mrb[0].mxu0
    %v1703 = vadd.f32 0.0, %v1702
    %v1704 = vpop.f32.mrb[0].mxu0
    %1705 = vmatprep.mubr.f32.mxu0 0.0
    %1706 = vmatmul.mubr.f32.gmra.mrb[0].mxu0 %v1629
    %v1707 = vpop.f32.mrb[0].mxu0
    %v1708 = vadd.f32 0.0, %v1707
    %v1709 = vpop.f32.mrb[0].mxu0
    %1710 = vmatprep.mubr.f32.mxu0 0.0
    %1711 = vmatmul.mubr.f32.gmra.mrb[0].mxu0 %v1630
    %v1712 = vpop.f32.mrb[0].mxu0
    %v1713 = vadd.f32 0.0, %v1712
    %v1714 = vpop.f32.mrb[0].mxu0
    %1715 = vdwg.mxu0
    %s1716 = scalar_lea.vmem %s5, 48
    %v1717 = vld [vmem:[%s1716] sm:$0xff]
    %v1719 = vsel %vm285, %v1698, 0
    %v1722 = vsel %vm285, %v1703, 0
    %v1725 = vsel %vm285, %v1708, 0
    %v1728 = vsel %vm285, %v1713, 0
    %1730 = vmatprep.subr.mxu0 0.0
    %1731 = vmatpush1.msra.mxu0 %v1717
    %1732 = vmatprep.subr.mxu0 0.0
    %1733 = vmatpush1.msra.mxu0 0.0
    %1734 = vmatprep.subr.mxu0 0.0
    %1735 = vmatpush1.msra.mxu0 0.0
    %1736 = vmatprep.subr.mxu0 0.0
    %1737 = vmatpush1.msra.mxu0 0.0
    %1738 = vmatprep.subr.mxu0 0.0
    %1739 = vmatpush1.msra.mxu0 0.0
    %1740 = vmatprep.subr.mxu0 0.0
    %1741 = vmatpush1.msra.mxu0 0.0
    %1742 = vmatprep.subr.mxu0 0.0
    %1743 = vmatpush1.msra.mxu0 0.0
    %1744 = vmatprep.subr.mxu0 0.0
    %1745 = vmatpush1.msra.mxu0 0.0
    %1746 = vmatprep.subr.mxu0 0.0
    %1747 = vmatpush1.msra.mxu0 0.0
    %1748 = vmatprep.subr.mxu0 0.0
    %1749 = vmatpush1.msra.mxu0 0.0
    %1750 = vmatprep.subr.mxu0 0.0
    %1751 = vmatpush1.msra.mxu0 0.0
    %1752 = vmatprep.subr.mxu0 0.0
    %1753 = vmatpush1.msra.mxu0 0.0
    %1754 = vmatprep.subr.mxu0 0.0
    %1755 = vmatpush1.msra.mxu0 0.0
    %1756 = vmatprep.subr.mxu0 0.0
    %1757 = vmatpush1.msra.mxu0 0.0
    %1758 = vmatprep.subr.mxu0 0.0
    %1759 = vmatpush1.msra.mxu0 0.0
    %1760 = vmatprep.subr.mxu0 0.0
    %1761 = vmatpush1.msra.mxu0 0.0
    %1762 = vmatprep.subr.mxu0 0.0
    %1763 = vmatpush1.msra.mxu0 0.0
    %1764 = vmatprep.subr.mxu0 0.0
    %1765 = vmatpush1.msra.mxu0 0.0
    %1766 = vmatprep.subr.mxu0 0.0
    %1767 = vmatpush1.msra.mxu0 0.0
    %1768 = vmatprep.subr.mxu0 0.0
    %1769 = vmatpush1.msra.mxu0 0.0
    %1770 = vmatprep.subr.mxu0 0.0
    %1771 = vmatpush1.msra.mxu0 0.0
    %1772 = vmatprep.subr.mxu0 0.0
    %1773 = vmatpush1.msra.mxu0 0.0
    %1774 = vmatprep.subr.mxu0 0.0
    %1775 = vmatpush1.msra.mxu0 0.0
    %1776 = vmatprep.subr.mxu0 0.0
    %1777 = vmatpush1.msra.mxu0 0.0
    %1778 = vmatprep.subr.mxu0 0.0
    %1779 = vmatpush1.msra.mxu0 0.0
    %1780 = vmatprep.subr.mxu0 0.0
    %1781 = vmatpush1.msra.mxu0 0.0
    %1782 = vmatprep.subr.mxu0 0.0
    %1783 = vmatpush1.msra.mxu0 0.0
    %1784 = vmatprep.subr.mxu0 0.0
    %1785 = vmatpush1.msra.mxu0 0.0
    %1786 = vmatprep.subr.mxu0 0.0
    %1787 = vmatpush1.msra.mxu0 0.0
    %1788 = vmatprep.subr.mxu0 0.0
    %1789 = vmatpush1.msra.mxu0 0.0
    %1790 = vmatprep.subr.mxu0 0.0
    %1791 = vmatpush1.msra.mxu0 0.0
    %1792 = vmatprep.subr.mxu0 0.0
    %1793 = vmatpush1.msra.mxu0 0.0
    %1794 = vmatprep.mubr.f32.mxu0 0.0
    %1795 = vmatmul.mubr.f32.gmra.mrb[0].mxu0 %v1719
    %v1796 = vpop.f32.mrb[0].mxu0
    %v1797 = vadd.f32 0.0, %v1796
    %v1798 = vpop.f32.mrb[0].mxu0
    %1799 = vmatprep.mubr.f32.mxu0 0.0
    %1800 = vmatmul.mubr.f32.gmra.mrb[0].mxu0 %v1722
    %v1801 = vpop.f32.mrb[0].mxu0
    %v1802 = vadd.f32 0.0, %v1801
    %v1803 = vpop.f32.mrb[0].mxu0
    %1804 = vmatprep.mubr.f32.mxu0 0.0
    %1805 = vmatmul.mubr.f32.gmra.mrb[0].mxu0 %v1725
    %v1806 = vpop.f32.mrb[0].mxu0
    %v1807 = vadd.f32 0.0, %v1806
    %v1808 = vpop.f32.mrb[0].mxu0
    %1809 = vmatprep.mubr.f32.mxu0 0.0
    %1810 = vmatmul.mubr.f32.gmra.mrb[0].mxu0 %v1728
    %v1811 = vpop.f32.mrb[0].mxu0
    %v1812 = vadd.f32 0.0, %v1811
    %v1813 = vpop.f32.mrb[0].mxu0
    %1814 = vdwg.mxu0
    %v1815 = vadd.f32 %v1622, %v1797
    %v1816 = vadd.f32 %v1623, %v1802
    %v1817 = vadd.f32 %v1624, %v1807
    %v1818 = vadd.f32 %v1625, %v1812
    %s1819 = scalar_lea.vmem %s4, 224
    %v1820 = vld [vmem:[%s1819] sm:$0xff]
    %v1821 = vld [vmem:[%s1819 + $0x8] sm:$0xff]
    %v1822 = vld [vmem:[%s1819 + $0x10] sm:$0xff]
    %v1823 = vld [vmem:[%s1819 + $0x18] sm:$0xff]
    %1824 = vmatprep.subr.mxu0 0.0
    %1825 = vmatpush1.msra.mxu0 %v462
    %1826 = vmatprep.subr.mxu0 0.0
    %1827 = vmatpush1.msra.mxu0 %v463
    %1828 = vmatprep.subr.mxu0 0.0
    %1829 = vmatpush1.msra.mxu0 %v464
    %1830 = vmatprep.subr.mxu0 0.0
    %1831 = vmatpush1.msra.mxu0 %v465
    %1832 = vmatprep.subr.mxu0 0.0
    %1833 = vmatpush1.msra.mxu0 %v466
    %1834 = vmatprep.subr.mxu0 0.0
    %1835 = vmatpush1.msra.mxu0 %v467
    %1836 = vmatprep.subr.mxu0 0.0
    %1837 = vmatpush1.msra.mxu0 %v468
    %1838 = vmatprep.subr.mxu0 0.0
    %1839 = vmatpush1.msra.mxu0 %v469
    %1840 = vmatprep.subr.mxu0 0.0
    %1841 = vmatpush1.msra.mxu0 %v470
    %1842 = vmatprep.subr.mxu0 0.0
    %1843 = vmatpush1.msra.mxu0 %v471
    %1844 = vmatprep.subr.mxu0 0.0
    %1845 = vmatpush1.msra.mxu0 %v472
    %1846 = vmatprep.subr.mxu0 0.0
    %1847 = vmatpush1.msra.mxu0 %v473
    %1848 = vmatprep.subr.mxu0 0.0
    %1849 = vmatpush1.msra.mxu0 %v474
    %1850 = vmatprep.subr.mxu0 0.0
    %1851 = vmatpush1.msra.mxu0 %v475
    %1852 = vmatprep.subr.mxu0 0.0
    %1853 = vmatpush1.msra.mxu0 %v476
    %1854 = vmatprep.subr.mxu0 0.0
    %1855 = vmatpush1.msra.mxu0 %v477
    %1856 = vmatprep.subr.mxu0 0.0
    %1857 = vmatpush1.msra.mxu0 0.0
    %1858 = vmatprep.subr.mxu0 0.0
    %1859 = vmatpush1.msra.mxu0 0.0
    %1860 = vmatprep.subr.mxu0 0.0
    %1861 = vmatpush1.msra.mxu0 0.0
    %1862 = vmatprep.subr.mxu0 0.0
    %1863 = vmatpush1.msra.mxu0 0.0
    %1864 = vmatprep.subr.mxu0 0.0
    %1865 = vmatpush1.msra.mxu0 0.0
    %1866 = vmatprep.subr.mxu0 0.0
    %1867 = vmatpush1.msra.mxu0 0.0
    %1868 = vmatprep.subr.mxu0 0.0
    %1869 = vmatpush1.msra.mxu0 0.0
    %1870 = vmatprep.subr.mxu0 0.0
    %1871 = vmatpush1.msra.mxu0 0.0
    %1872 = vmatprep.subr.mxu0 0.0
    %1873 = vmatpush1.msra.mxu0 0.0
    %1874 = vmatprep.subr.mxu0 0.0
    %1875 = vmatpush1.msra.mxu0 0.0
    %1876 = vmatprep.subr.mxu0 0.0
    %1877 = vmatpush1.msra.mxu0 0.0
    %1878 = vmatprep.subr.mxu0 0.0
    %1879 = vmatpush1.msra.mxu0 0.0
    %1880 = vmatprep.subr.mxu0 0.0
    %1881 = vmatpush1.msra.mxu0 0.0
    %1882 = vmatprep.subr.mxu0 0.0
    %1883 = vmatpush1.msra.mxu0 0.0
    %1884 = vmatprep.subr.mxu0 0.0
    %1885 = vmatpush1.msra.mxu0 0.0
    %1886 = vmatprep.subr.mxu0 0.0
    %1887 = vmatpush1.msra.mxu0 0.0
    %1888 = vmatprep.mubr.f32.mxu0 0.0
    %1889 = vmatmul.mubr.f32.gmra.mrb[0].mxu0 %v1820
    %v1890 = vpop.f32.mrb[0].mxu0
    %v1891 = vadd.f32 0.0, %v1890
    %v1892 = vpop.f32.mrb[0].mxu0
    %1893 = vmatprep.mubr.f32.mxu0 0.0
    %1894 = vmatmul.mubr.f32.gmra.mrb[0].mxu0 %v1821
    %v1895 = vpop.f32.mrb[0].mxu0
    %v1896 = vadd.f32 0.0, %v1895
    %v1897 = vpop.f32.mrb[0].mxu0
    %1898 = vmatprep.mubr.f32.mxu0 0.0
    %1899 = vmatmul.mubr.f32.gmra.mrb[0].mxu0 %v1822
    %v1900 = vpop.f32.mrb[0].mxu0
    %v1901 = vadd.f32 0.0, %v1900
    %v1902 = vpop.f32.mrb[0].mxu0
    %1903 = vmatprep.mubr.f32.mxu0 0.0
    %1904 = vmatmul.mubr.f32.gmra.mrb[0].mxu0 %v1823
    %v1905 = vpop.f32.mrb[0].mxu0
    %v1906 = vadd.f32 0.0, %v1905
    %v1907 = vpop.f32.mrb[0].mxu0
    %1908 = vdwg.mxu0
    %s1909 = scalar_lea.vmem %s5, 56
    %v1910 = vld [vmem:[%s1909] sm:$0xff]
    %v1912 = vsel %vm285, %v1891, 0
    %v1915 = vsel %vm285, %v1896, 0
    %v1918 = vsel %vm285, %v1901, 0
    %v1921 = vsel %vm285, %v1906, 0
    %1923 = vmatprep.subr.mxu0 0.0
    %1924 = vmatpush1.msra.mxu0 %v1910
    %1925 = vmatprep.subr.mxu0 0.0
    %1926 = vmatpush1.msra.mxu0 0.0
    %1927 = vmatprep.subr.mxu0 0.0
    %1928 = vmatpush1.msra.mxu0 0.0
    %1929 = vmatprep.subr.mxu0 0.0
    %1930 = vmatpush1.msra.mxu0 0.0
    %1931 = vmatprep.subr.mxu0 0.0
    %1932 = vmatpush1.msra.mxu0 0.0
    %1933 = vmatprep.subr.mxu0 0.0
    %1934 = vmatpush1.msra.mxu0 0.0
    %1935 = vmatprep.subr.mxu0 0.0
    %1936 = vmatpush1.msra.mxu0 0.0
    %1937 = vmatprep.subr.mxu0 0.0
    %1938 = vmatpush1.msra.mxu0 0.0
    %1939 = vmatprep.subr.mxu0 0.0
    %1940 = vmatpush1.msra.mxu0 0.0
    %1941 = vmatprep.subr.mxu0 0.0
    %1942 = vmatpush1.msra.mxu0 0.0
    %1943 = vmatprep.subr.mxu0 0.0
    %1944 = vmatpush1.msra.mxu0 0.0
    %1945 = vmatprep.subr.mxu0 0.0
    %1946 = vmatpush1.msra.mxu0 0.0
    %1947 = vmatprep.subr.mxu0 0.0
    %1948 = vmatpush1.msra.mxu0 0.0
    %1949 = vmatprep.subr.mxu0 0.0
    %1950 = vmatpush1.msra.mxu0 0.0
    %1951 = vmatprep.subr.mxu0 0.0
    %1952 = vmatpush1.msra.mxu0 0.0
    %1953 = vmatprep.subr.mxu0 0.0
    %1954 = vmatpush1.msra.mxu0 0.0
    %1955 = vmatprep.subr.mxu0 0.0
    %1956 = vmatpush1.msra.mxu0 0.0
    %1957 = vmatprep.subr.mxu0 0.0
    %1958 = vmatpush1.msra.mxu0 0.0
    %1959 = vmatprep.subr.mxu0 0.0
    %1960 = vmatpush1.msra.mxu0 0.0
    %1961 = vmatprep.subr.mxu0 0.0
    %1962 = vmatpush1.msra.mxu0 0.0
    %1963 = vmatprep.subr.mxu0 0.0
    %1964 = vmatpush1.msra.mxu0 0.0
    %1965 = vmatprep.subr.mxu0 0.0
    %1966 = vmatpush1.msra.mxu0 0.0
    %1967 = vmatprep.subr.mxu0 0.0
    %1968 = vmatpush1.msra.mxu0 0.0
    %1969 = vmatprep.subr.mxu0 0.0
    %1970 = vmatpush1.msra.mxu0 0.0
    %1971 = vmatprep.subr.mxu0 0.0
    %1972 = vmatpush1.msra.mxu0 0.0
    %1973 = vmatprep.subr.mxu0 0.0
    %1974 = vmatpush1.msra.mxu0 0.0
    %1975 = vmatprep.subr.mxu0 0.0
    %1976 = vmatpush1.msra.mxu0 0.0
    %1977 = vmatprep.subr.mxu0 0.0
    %1978 = vmatpush1.msra.mxu0 0.0
    %1979 = vmatprep.subr.mxu0 0.0
    %1980 = vmatpush1.msra.mxu0 0.0
    %1981 = vmatprep.subr.mxu0 0.0
    %1982 = vmatpush1.msra.mxu0 0.0
    %1983 = vmatprep.subr.mxu0 0.0
    %1984 = vmatpush1.msra.mxu0 0.0
    %1985 = vmatprep.subr.mxu0 0.0
    %1986 = vmatpush1.msra.mxu0 0.0
    %1987 = vmatprep.mubr.f32.mxu0 0.0
    %1988 = vmatmul.mubr.f32.gmra.mrb[0].mxu0 %v1912
    %v1989 = vpop.f32.mrb[0].mxu0
    %v1990 = vadd.f32 0.0, %v1989
    %v1991 = vpop.f32.mrb[0].mxu0
    %1992 = vmatprep.mubr.f32.mxu0 0.0
    %1993 = vmatmul.mubr.f32.gmra.mrb[0].mxu0 %v1915
    %v1994 = vpop.f32.mrb[0].mxu0
    %v1995 = vadd.f32 0.0, %v1994
    %v1996 = vpop.f32.mrb[0].mxu0
    %1997 = vmatprep.mubr.f32.mxu0 0.0
    %1998 = vmatmul.mubr.f32.gmra.mrb[0].mxu0 %v1918
    %v1999 = vpop.f32.mrb[0].mxu0
    %v2000 = vadd.f32 0.0, %v1999
    %v2001 = vpop.f32.mrb[0].mxu0
    %2002 = vmatprep.mubr.f32.mxu0 0.0
    %2003 = vmatmul.mubr.f32.gmra.mrb[0].mxu0 %v1921
    %v2004 = vpop.f32.mrb[0].mxu0
    %v2005 = vadd.f32 0.0, %v2004
    %v2006 = vpop.f32.mrb[0].mxu0
    %2007 = vdwg.mxu0
    %v2008 = vadd.f32 %v1815, %v1990
    %v2009 = vadd.f32 %v1816, %v1995
    %v2010 = vadd.f32 %v1817, %v2000
    %v2011 = vadd.f32 %v1818, %v2005
    %s2012 = scalar_lea.vmem %s4, 256
    %v2013 = vld [vmem:[%s2012] sm:$0xff]
    %v2014 = vld [vmem:[%s2012 + $0x8] sm:$0xff]
    %v2015 = vld [vmem:[%s2012 + $0x10] sm:$0xff]
    %v2016 = vld [vmem:[%s2012 + $0x18] sm:$0xff]
    %2017 = vmatprep.subr.mxu0 0.0
    %2018 = vmatpush1.msra.mxu0 %v462
    %2019 = vmatprep.subr.mxu0 0.0
    %2020 = vmatpush1.msra.mxu0 %v463
    %2021 = vmatprep.subr.mxu0 0.0
    %2022 = vmatpush1.msra.mxu0 %v464
    %2023 = vmatprep.subr.mxu0 0.0
    %2024 = vmatpush1.msra.mxu0 %v465
    %2025 = vmatprep.subr.mxu0 0.0
    %2026 = vmatpush1.msra.mxu0 %v466
    %2027 = vmatprep.subr.mxu0 0.0
    %2028 = vmatpush1.msra.mxu0 %v467
    %2029 = vmatprep.subr.mxu0 0.0
    %2030 = vmatpush1.msra.mxu0 %v468
    %2031 = vmatprep.subr.mxu0 0.0
    %2032 = vmatpush1.msra.mxu0 %v469
    %2033 = vmatprep.subr.mxu0 0.0
    %2034 = vmatpush1.msra.mxu0 %v470
    %2035 = vmatprep.subr.mxu0 0.0
    %2036 = vmatpush1.msra.mxu0 %v471
    %2037 = vmatprep.subr.mxu0 0.0
    %2038 = vmatpush1.msra.mxu0 %v472
    %2039 = vmatprep.subr.mxu0 0.0
    %2040 = vmatpush1.msra.mxu0 %v473
    %2041 = vmatprep.subr.mxu0 0.0
    %2042 = vmatpush1.msra.mxu0 %v474
    %2043 = vmatprep.subr.mxu0 0.0
    %2044 = vmatpush1.msra.mxu0 %v475
    %2045 = vmatprep.subr.mxu0 0.0
    %2046 = vmatpush1.msra.mxu0 %v476
    %2047 = vmatprep.subr.mxu0 0.0
    %2048 = vmatpush1.msra.mxu0 %v477
    %2049 = vmatprep.subr.mxu0 0.0
    %2050 = vmatpush1.msra.mxu0 0.0
    %2051 = vmatprep.subr.mxu0 0.0
    %2052 = vmatpush1.msra.mxu0 0.0
    %2053 = vmatprep.subr.mxu0 0.0
    %2054 = vmatpush1.msra.mxu0 0.0
    %2055 = vmatprep.subr.mxu0 0.0
    %2056 = vmatpush1.msra.mxu0 0.0
    %2057 = vmatprep.subr.mxu0 0.0
    %2058 = vmatpush1.msra.mxu0 0.0
    %2059 = vmatprep.subr.mxu0 0.0
    %2060 = vmatpush1.msra.mxu0 0.0
    %2061 = vmatprep.subr.mxu0 0.0
    %2062 = vmatpush1.msra.mxu0 0.0
    %2063 = vmatprep.subr.mxu0 0.0
    %2064 = vmatpush1.msra.mxu0 0.0
    %2065 = vmatprep.subr.mxu0 0.0
    %2066 = vmatpush1.msra.mxu0 0.0
    %2067 = vmatprep.subr.mxu0 0.0
    %2068 = vmatpush1.msra.mxu0 0.0
    %2069 = vmatprep.subr.mxu0 0.0
    %2070 = vmatpush1.msra.mxu0 0.0
    %2071 = vmatprep.subr.mxu0 0.0
    %2072 = vmatpush1.msra.mxu0 0.0
    %2073 = vmatprep.subr.mxu0 0.0
    %2074 = vmatpush1.msra.mxu0 0.0
    %2075 = vmatprep.subr.mxu0 0.0
    %2076 = vmatpush1.msra.mxu0 0.0
    %2077 = vmatprep.subr.mxu0 0.0
    %2078 = vmatpush1.msra.mxu0 0.0
    %2079 = vmatprep.subr.mxu0 0.0
    %2080 = vmatpush1.msra.mxu0 0.0
    %2081 = vmatprep.mubr.f32.mxu0 0.0
    %2082 = vmatmul.mubr.f32.gmra.mrb[0].mxu0 %v2013
    %v2083 = vpop.f32.mrb[0].mxu0
    %v2084 = vadd.f32 0.0, %v2083
    %v2085 = vpop.f32.mrb[0].mxu0
    %2086 = vmatprep.mubr.f32.mxu0 0.0
    %2087 = vmatmul.mubr.f32.gmra.mrb[0].mxu0 %v2014
    %v2088 = vpop.f32.mrb[0].mxu0
    %v2089 = vadd.f32 0.0, %v2088
    %v2090 = vpop.f32.mrb[0].mxu0
    %2091 = vmatprep.mubr.f32.mxu0 0.0
    %2092 = vmatmul.mubr.f32.gmra.mrb[0].mxu0 %v2015
    %v2093 = vpop.f32.mrb[0].mxu0
    %v2094 = vadd.f32 0.0, %v2093
    %v2095 = vpop.f32.mrb[0].mxu0
    %2096 = vmatprep.mubr.f32.mxu0 0.0
    %2097 = vmatmul.mubr.f32.gmra.mrb[0].mxu0 %v2016
    %v2098 = vpop.f32.mrb[0].mxu0
    %v2099 = vadd.f32 0.0, %v2098
    %v2100 = vpop.f32.mrb[0].mxu0
    %2101 = vdwg.mxu0
    %s2102 = scalar_lea.vmem %s5, 64
    %v2103 = vld [vmem:[%s2102] sm:$0xff]
    %v2105 = vsel %vm285, %v2084, 0
    %v2108 = vsel %vm285, %v2089, 0
    %v2111 = vsel %vm285, %v2094, 0
    %v2114 = vsel %vm285, %v2099, 0
    %2116 = vmatprep.subr.mxu0 0.0
    %2117 = vmatpush1.msra.mxu0 %v2103
    %2118 = vmatprep.subr.mxu0 0.0
    %2119 = vmatpush1.msra.mxu0 0.0
    %2120 = vmatprep.subr.mxu0 0.0
    %2121 = vmatpush1.msra.mxu0 0.0
    %2122 = vmatprep.subr.mxu0 0.0
    %2123 = vmatpush1.msra.mxu0 0.0
    %2124 = vmatprep.subr.mxu0 0.0
    %2125 = vmatpush1.msra.mxu0 0.0
    %2126 = vmatprep.subr.mxu0 0.0
    %2127 = vmatpush1.msra.mxu0 0.0
    %2128 = vmatprep.subr.mxu0 0.0
    %2129 = vmatpush1.msra.mxu0 0.0
    %2130 = vmatprep.subr.mxu0 0.0
    %2131 = vmatpush1.msra.mxu0 0.0
    %2132 = vmatprep.subr.mxu0 0.0
    %2133 = vmatpush1.msra.mxu0 0.0
    %2134 = vmatprep.subr.mxu0 0.0
    %2135 = vmatpush1.msra.mxu0 0.0
    %2136 = vmatprep.subr.mxu0 0.0
    %2137 = vmatpush1.msra.mxu0 0.0
    %2138 = vmatprep.subr.mxu0 0.0
    %2139 = vmatpush1.msra.mxu0 0.0
    %2140 = vmatprep.subr.mxu0 0.0
    %2141 = vmatpush1.msra.mxu0 0.0
    %2142 = vmatprep.subr.mxu0 0.0
    %2143 = vmatpush1.msra.mxu0 0.0
    %2144 = vmatprep.subr.mxu0 0.0
    %2145 = vmatpush1.msra.mxu0 0.0
    %2146 = vmatprep.subr.mxu0 0.0
    %2147 = vmatpush1.msra.mxu0 0.0
    %2148 = vmatprep.subr.mxu0 0.0
    %2149 = vmatpush1.msra.mxu0 0.0
    %2150 = vmatprep.subr.mxu0 0.0
    %2151 = vmatpush1.msra.mxu0 0.0
    %2152 = vmatprep.subr.mxu0 0.0
    %2153 = vmatpush1.msra.mxu0 0.0
    %2154 = vmatprep.subr.mxu0 0.0
    %2155 = vmatpush1.msra.mxu0 0.0
    %2156 = vmatprep.subr.mxu0 0.0
    %2157 = vmatpush1.msra.mxu0 0.0
    %2158 = vmatprep.subr.mxu0 0.0
    %2159 = vmatpush1.msra.mxu0 0.0
    %2160 = vmatprep.subr.mxu0 0.0
    %2161 = vmatpush1.msra.mxu0 0.0
    %2162 = vmatprep.subr.mxu0 0.0
    %2163 = vmatpush1.msra.mxu0 0.0
    %2164 = vmatprep.subr.mxu0 0.0
    %2165 = vmatpush1.msra.mxu0 0.0
    %2166 = vmatprep.subr.mxu0 0.0
    %2167 = vmatpush1.msra.mxu0 0.0
    %2168 = vmatprep.subr.mxu0 0.0
    %2169 = vmatpush1.msra.mxu0 0.0
    %2170 = vmatprep.subr.mxu0 0.0
    %2171 = vmatpush1.msra.mxu0 0.0
    %2172 = vmatprep.subr.mxu0 0.0
    %2173 = vmatpush1.msra.mxu0 0.0
    %2174 = vmatprep.subr.mxu0 0.0
    %2175 = vmatpush1.msra.mxu0 0.0
    %2176 = vmatprep.subr.mxu0 0.0
    %2177 = vmatpush1.msra.mxu0 0.0
    %2178 = vmatprep.subr.mxu0 0.0
    %2179 = vmatpush1.msra.mxu0 0.0
    %2180 = vmatprep.mubr.f32.mxu0 0.0
    %2181 = vmatmul.mubr.f32.gmra.mrb[0].mxu0 %v2105
    %v2182 = vpop.f32.mrb[0].mxu0
    %v2183 = vadd.f32 0.0, %v2182
    %v2184 = vpop.f32.mrb[0].mxu0
    %2185 = vmatprep.mubr.f32.mxu0 0.0
    %2186 = vmatmul.mubr.f32.gmra.mrb[0].mxu0 %v2108
    %v2187 = vpop.f32.mrb[0].mxu0
    %v2188 = vadd.f32 0.0, %v2187
    %v2189 = vpop.f32.mrb[0].mxu0
    %2190 = vmatprep.mubr.f32.mxu0 0.0
    %2191 = vmatmul.mubr.f32.gmra.mrb[0].mxu0 %v2111
    %v2192 = vpop.f32.mrb[0].mxu0
    %v2193 = vadd.f32 0.0, %v2192
    %v2194 = vpop.f32.mrb[0].mxu0
    %2195 = vmatprep.mubr.f32.mxu0 0.0
    %2196 = vmatmul.mubr.f32.gmra.mrb[0].mxu0 %v2114
    %v2197 = vpop.f32.mrb[0].mxu0
    %v2198 = vadd.f32 0.0, %v2197
    %v2199 = vpop.f32.mrb[0].mxu0
    %2200 = vdwg.mxu0
    %v2201 = vadd.f32 %v2008, %v2183
    %v2202 = vadd.f32 %v2009, %v2188
    %v2203 = vadd.f32 %v2010, %v2193
    %v2204 = vadd.f32 %v2011, %v2198
    %v2205 = vld [vmem:[%s6] sm:$0x1]
    %v2206 = vld [vmem:[%s7] sm:$0x1]
    %vm2207 = vcmask 130048
    %v2208 = vsel %vm2207, %v2201, 0.0
    %v2209 = vsel %vm2207, %v2202, 0.0
    %v2210 = vadd.f32 %v2208, %v2209
    %v2211 = vsel %vm2207, %v2203, 0.0
    %v2212 = vadd.f32 %v2210, %v2211
    %v2213 = vsel %vm2207, %v2204, 0.0
    %v2214 = vadd.f32 %v2212, %v2213
    %v2215 = vrot.slane %v2214, 4
    %v2216 = vadd.f32 %v2214, %v2215
    %v2217 = vrot.slane %v2216, 2
    %v2218 = vadd.f32 %v2216, %v2217
    %v2219 = vrot.slane %v2218, 1
    %v2220 = vadd.f32 %v2218, %v2219
    %v2221 = vrcp.pop 32.0
    %v2222 = vmul.f32 %v2220, %v2221
    %v2223 = vmul.f32 %v2201, %v2201
    %v2224 = vmul.f32 %v2202, %v2202
    %v2225 = vmul.f32 %v2203, %v2203
    %v2226 = vmul.f32 %v2204, %v2204
    %v2227 = vsel %vm2207, %v2223, 0.0
    %v2228 = vsel %vm2207, %v2224, 0.0
    %v2229 = vadd.f32 %v2227, %v2228
    %v2230 = vsel %vm2207, %v2225, 0.0
    %v2231 = vadd.f32 %v2229, %v2230
    %v2232 = vsel %vm2207, %v2226, 0.0
    %v2233 = vadd.f32 %v2231, %v2232
    %v2234 = vrot.slane %v2233, 4
    %v2235 = vadd.f32 %v2233, %v2234
    %v2236 = vrot.slane %v2235, 2
    %v2237 = vadd.f32 %v2235, %v2236
    %v2238 = vrot.slane %v2237, 1
    %v2239 = vadd.f32 %v2237, %v2238
    %v2240 = vmul.f32 %v2239, %v2221
    %v2241 = vmul.f32 %v2222, %v2222
    %v2242 = vsub.f32 %v2240, %v2241
    %v2243 = vadd.f32 %v2242, 1e-05
    %v2244 = vrsqrt.pop %v2243
    %v2245 = vmul.f32 %v2205, %v2244
    %v2247 = vlaneseq
    %v2248 = vshrl.u32 %v2247, 7
    %v2249 = vsub.s32 0, %v2248
    %v2250 = vrot.slane %v2245, %v2249
    %v2252 = vmul.f32 %v2201, %v2250
    %v2253 = vmul.f32 %v2202, %v2250
    %v2254 = vmul.f32 %v2203, %v2250
    %v2255 = vmul.f32 %v2204, %v2250
    %v2256 = vmul.f32 %v2222, %v2245
    %v2257 = vsub.f32 %v2206, %v2256
    %v2259 = vlaneseq
    %v2260 = vshrl.u32 %v2259, 7
    %v2261 = vsub.s32 0, %v2260
    %v2262 = vrot.slane %v2257, %v2261
    %v2264 = vadd.f32 %v2252, %v2262
    %v2265 = vadd.f32 %v2253, %v2262
    %v2266 = vadd.f32 %v2254, %v2262
    %v2267 = vadd.f32 %v2255, %v2262
    %vm2268 = vcmp.gt.f32.partialorder %v2264, 0.0
    %vm2269 = vcmp.gt.f32.partialorder %v2265, 0.0
    %vm2270 = vcmp.gt.f32.partialorder %v2266, 0.0
    %vm2271 = vcmp.gt.f32.partialorder %v2267, 0.0
    %v2272 = vmul.f32 %v2264, 0.01
    %v2273 = vmul.f32 %v2265, 0.01
    %v2274 = vmul.f32 %v2266, 0.01
    %v2275 = vmul.f32 %v2267, 0.01
    %v2276 = vsel %vm2268, %v2264, %v2272
    %v2277 = vsel %vm2269, %v2265, %v2273
    %v2278 = vsel %vm2270, %v2266, %v2274
    %v2279 = vsel %vm2271, %v2267, %v2275
    %v2280 = vld [vmem:[%s8] sm:$0xff]
    %vm2281 = vcmask 261120
    %v2283 = vsel %vm2281, %v2280, 0
    %2285 = vmatprep.subr.mxu0 0.0
    %2286 = vmatpush1.msra.mxu0 %v2276
    %2287 = vmatprep.subr.mxu0 0.0
    %2288 = vmatpush1.msra.mxu0 %v2277
    %2289 = vmatprep.subr.mxu0 0.0
    %2290 = vmatpush1.msra.mxu0 %v2278
    %2291 = vmatprep.subr.mxu0 0.0
    %2292 = vmatpush1.msra.mxu0 %v2279
    %2293 = vmatprep.subr.mxu0 0.0
    %2294 = vmatpush1.msra.mxu0 0.0
    %2295 = vmatprep.subr.mxu0 0.0
    %2296 = vmatpush1.msra.mxu0 0.0
    %2297 = vmatprep.subr.mxu0 0.0
    %2298 = vmatpush1.msra.mxu0 0.0
    %2299 = vmatprep.subr.mxu0 0.0
    %2300 = vmatpush1.msra.mxu0 0.0
    %2301 = vmatprep.subr.mxu0 0.0
    %2302 = vmatpush1.msra.mxu0 0.0
    %2303 = vmatprep.subr.mxu0 0.0
    %2304 = vmatpush1.msra.mxu0 0.0
    %2305 = vmatprep.subr.mxu0 0.0
    %2306 = vmatpush1.msra.mxu0 0.0
    %2307 = vmatprep.subr.mxu0 0.0
    %2308 = vmatpush1.msra.mxu0 0.0
    %2309 = vmatprep.subr.mxu0 0.0
    %2310 = vmatpush1.msra.mxu0 0.0
    %2311 = vmatprep.subr.mxu0 0.0
    %2312 = vmatpush1.msra.mxu0 0.0
    %2313 = vmatprep.subr.mxu0 0.0
    %2314 = vmatpush1.msra.mxu0 0.0
    %2315 = vmatprep.subr.mxu0 0.0
    %2316 = vmatpush1.msra.mxu0 0.0
    %2317 = vmatprep.subr.mxu0 0.0
    %2318 = vmatpush1.msra.mxu0 0.0
    %2319 = vmatprep.subr.mxu0 0.0
    %2320 = vmatpush1.msra.mxu0 0.0
    %2321 = vmatprep.subr.mxu0 0.0
    %2322 = vmatpush1.msra.mxu0 0.0
    %2323 = vmatprep.subr.mxu0 0.0
    %2324 = vmatpush1.msra.mxu0 0.0
    %2325 = vmatprep.subr.mxu0 0.0
    %2326 = vmatpush1.msra.mxu0 0.0
    %2327 = vmatprep.subr.mxu0 0.0
    %2328 = vmatpush1.msra.mxu0 0.0
    %2329 = vmatprep.subr.mxu0 0.0
    %2330 = vmatpush1.msra.mxu0 0.0
    %2331 = vmatprep.subr.mxu0 0.0
    %2332 = vmatpush1.msra.mxu0 0.0
    %2333 = vmatprep.subr.mxu0 0.0
    %2334 = vmatpush1.msra.mxu0 0.0
    %2335 = vmatprep.subr.mxu0 0.0
    %2336 = vmatpush1.msra.mxu0 0.0
    %2337 = vmatprep.subr.mxu0 0.0
    %2338 = vmatpush1.msra.mxu0 0.0
    %2339 = vmatprep.subr.mxu0 0.0
    %2340 = vmatpush1.msra.mxu0 0.0
    %2341 = vmatprep.subr.mxu0 0.0
    %2342 = vmatpush1.msra.mxu0 0.0
    %2343 = vmatprep.subr.mxu0 0.0
    %2344 = vmatpush1.msra.mxu0 0.0
    %2345 = vmatprep.subr.mxu0 0.0
    %2346 = vmatpush1.msra.mxu0 0.0
    %2347 = vmatprep.subr.mxu0 0.0
    %2348 = vmatpush1.msra.mxu0 0.0
    %2349 = vmatprep.mubr.f32.mxu0 0.0
    %2350 = vmatmul.mubr.f32.gmra.mrb[0].mxu0 %v2283
    %v2351 = vpop.f32.mrb[0].mxu0
    %v2352 = vadd.f32 0.0, %v2351
    %v2353 = vpop.f32.mrb[0].mxu0
    %2354 = vdwg.mxu0
    %v2355 = vld [vmem:[%s9] sm:$0xff]
    %v2356 = vld [vmem:[%s9 + $0x8] sm:$0xff]
    %s2357 = scalar_lea.vmem %s8, 8
    %v2358 = vld [vmem:[%s2357] sm:$0xff]
    %v2360 = vsel %vm2281, %v2358, 0
    %2362 = vmatprep.subr.mxu0 0.0
    %2363 = vmatpush1.msra.mxu0 %v2276
    %2364 = vmatprep.subr.mxu0 0.0
    %2365 = vmatpush1.msra.mxu0 %v2277
    %2366 = vmatprep.subr.mxu0 0.0
    %2367 = vmatpush1.msra.mxu0 %v2278
    %2368 = vmatprep.subr.mxu0 0.0
    %2369 = vmatpush1.msra.mxu0 %v2279
    %2370 = vmatprep.subr.mxu0 0.0
    %2371 = vmatpush1.msra.mxu0 0.0
    %2372 = vmatprep.subr.mxu0 0.0
    %2373 = vmatpush1.msra.mxu0 0.0
    %2374 = vmatprep.subr.mxu0 0.0
    %2375 = vmatpush1.msra.mxu0 0.0
    %2376 = vmatprep.subr.mxu0 0.0
    %2377 = vmatpush1.msra.mxu0 0.0
    %2378 = vmatprep.subr.mxu0 0.0
    %2379 = vmatpush1.msra.mxu0 0.0
    %2380 = vmatprep.subr.mxu0 0.0
    %2381 = vmatpush1.msra.mxu0 0.0
    %2382 = vmatprep.subr.mxu0 0.0
    %2383 = vmatpush1.msra.mxu0 0.0
    %2384 = vmatprep.subr.mxu0 0.0
    %2385 = vmatpush1.msra.mxu0 0.0
    %2386 = vmatprep.subr.mxu0 0.0
    %2387 = vmatpush1.msra.mxu0 0.0
    %2388 = vmatprep.subr.mxu0 0.0
    %2389 = vmatpush1.msra.mxu0 0.0
    %2390 = vmatprep.subr.mxu0 0.0
    %2391 = vmatpush1.msra.mxu0 0.0
    %2392 = vmatprep.subr.mxu0 0.0
    %2393 = vmatpush1.msra.mxu0 0.0
    %2394 = vmatprep.subr.mxu0 0.0
    %2395 = vmatpush1.msra.mxu0 0.0
    %2396 = vmatprep.subr.mxu0 0.0
    %2397 = vmatpush1.msra.mxu0 0.0
    %2398 = vmatprep.subr.mxu0 0.0
    %2399 = vmatpush1.msra.mxu0 0.0
    %2400 = vmatprep.subr.mxu0 0.0
    %2401 = vmatpush1.msra.mxu0 0.0
    %2402 = vmatprep.subr.mxu0 0.0
    %2403 = vmatpush1.msra.mxu0 0.0
    %2404 = vmatprep.subr.mxu0 0.0
    %2405 = vmatpush1.msra.mxu0 0.0
    %2406 = vmatprep.subr.mxu0 0.0
    %2407 = vmatpush1.msra.mxu0 0.0
    %2408 = vmatprep.subr.mxu0 0.0
    %2409 = vmatpush1.msra.mxu0 0.0
    %2410 = vmatprep.subr.mxu0 0.0
    %2411 = vmatpush1.msra.mxu0 0.0
    %2412 = vmatprep.subr.mxu0 0.0
    %2413 = vmatpush1.msra.mxu0 0.0
    %2414 = vmatprep.subr.mxu0 0.0
    %2415 = vmatpush1.msra.mxu0 0.0
    %2416 = vmatprep.subr.mxu0 0.0
    %2417 = vmatpush1.msra.mxu0 0.0
    %2418 = vmatprep.subr.mxu0 0.0
    %2419 = vmatpush1.msra.mxu0 0.0
    %2420 = vmatprep.subr.mxu0 0.0
    %2421 = vmatpush1.msra.mxu0 0.0
    %2422 = vmatprep.subr.mxu0 0.0
    %2423 = vmatpush1.msra.mxu0 0.0
    %2424 = vmatprep.subr.mxu0 0.0
    %2425 = vmatpush1.msra.mxu0 0.0
    %2426 = vmatprep.mubr.f32.mxu0 0.0
    %2427 = vmatmul.mubr.f32.gmra.mrb[0].mxu0 %v2360
    %v2428 = vpop.f32.mrb[0].mxu0
    %v2429 = vadd.f32 0.0, %v2428
    %v2430 = vpop.f32.mrb[0].mxu0
    %2431 = vdwg.mxu0
    %s2432 = scalar_lea.vmem %s9, 16
    %v2433 = vld [vmem:[%s2432] sm:$0xff]
    %v2434 = vld [vmem:[%s2432 + $0x8] sm:$0xff]
    %v2436 = vsel %vm2207, %v2429, 0
    %2438 = vmatprep.subr.mxu0 0.0
    %2439 = vmatpush1.msra.mxu0 %v2433
    %2440 = vmatprep.subr.mxu0 0.0
    %2441 = vmatpush1.msra.mxu0 %v2434
    %2442 = vmatprep.subr.mxu0 0.0
    %2443 = vmatpush1.msra.mxu0 0.0
    %2444 = vmatprep.subr.mxu0 0.0
    %2445 = vmatpush1.msra.mxu0 0.0
    %2446 = vmatprep.subr.mxu0 0.0
    %2447 = vmatpush1.msra.mxu0 0.0
    %2448 = vmatprep.subr.mxu0 0.0
    %2449 = vmatpush1.msra.mxu0 0.0
    %2450 = vmatprep.subr.mxu0 0.0
    %2451 = vmatpush1.msra.mxu0 0.0
    %2452 = vmatprep.subr.mxu0 0.0
    %2453 = vmatpush1.msra.mxu0 0.0
    %2454 = vmatprep.subr.mxu0 0.0
    %2455 = vmatpush1.msra.mxu0 0.0
    %2456 = vmatprep.subr.mxu0 0.0
    %2457 = vmatpush1.msra.mxu0 0.0
    %2458 = vmatprep.subr.mxu0 0.0
    %2459 = vmatpush1.msra.mxu0 0.0
    %2460 = vmatprep.subr.mxu0 0.0
    %2461 = vmatpush1.msra.mxu0 0.0
    %2462 = vmatprep.subr.mxu0 0.0
    %2463 = vmatpush1.msra.mxu0 0.0
    %2464 = vmatprep.subr.mxu0 0.0
    %2465 = vmatpush1.msra.mxu0 0.0
    %2466 = vmatprep.subr.mxu0 0.0
    %2467 = vmatpush1.msra.mxu0 0.0
    %2468 = vmatprep.subr.mxu0 0.0
    %2469 = vmatpush1.msra.mxu0 0.0
    %2470 = vmatprep.subr.mxu0 0.0
    %2471 = vmatpush1.msra.mxu0 0.0
    %2472 = vmatprep.subr.mxu0 0.0
    %2473 = vmatpush1.msra.mxu0 0.0
    %2474 = vmatprep.subr.mxu0 0.0
    %2475 = vmatpush1.msra.mxu0 0.0
    %2476 = vmatprep.subr.mxu0 0.0
    %2477 = vmatpush1.msra.mxu0 0.0
    %2478 = vmatprep.subr.mxu0 0.0
    %2479 = vmatpush1.msra.mxu0 0.0
    %2480 = vmatprep.subr.mxu0 0.0
    %2481 = vmatpush1.msra.mxu0 0.0
    %2482 = vmatprep.subr.mxu0 0.0
    %2483 = vmatpush1.msra.mxu0 0.0
    %2484 = vmatprep.subr.mxu0 0.0
    %2485 = vmatpush1.msra.mxu0 0.0
    %2486 = vmatprep.subr.mxu0 0.0
    %2487 = vmatpush1.msra.mxu0 0.0
    %2488 = vmatprep.subr.mxu0 0.0
    %2489 = vmatpush1.msra.mxu0 0.0
    %2490 = vmatprep.subr.mxu0 0.0
    %2491 = vmatpush1.msra.mxu0 0.0
    %2492 = vmatprep.subr.mxu0 0.0
    %2493 = vmatpush1.msra.mxu0 0.0
    %2494 = vmatprep.subr.mxu0 0.0
    %2495 = vmatpush1.msra.mxu0 0.0
    %2496 = vmatprep.subr.mxu0 0.0
    %2497 = vmatpush1.msra.mxu0 0.0
    %2498 = vmatprep.subr.mxu0 0.0
    %2499 = vmatpush1.msra.mxu0 0.0
    %2500 = vmatprep.subr.mxu0 0.0
    %2501 = vmatpush1.msra.mxu0 0.0
    %2502 = vmatprep.mubr.f32.mxu0 0.0
    %2503 = vmatmul.mubr.f32.gmra.mrb[0].mxu0 %v2436
    %v2504 = vpop.f32.mrb[0].mxu0
    %v2505 = vadd.f32 0.0, %v2504
    %v2506 = vpop.f32.mrb[0].mxu0
    %2507 = vdwg.mxu0
    %v2509 = vsel %vm2207, %v2352, 0
    %2511 = vmatprep.subr.mxu0 0.0
    %2512 = vmatpush1.msra.mxu0 %v2355
    %2513 = vmatprep.subr.mxu0 0.0
    %2514 = vmatpush1.msra.mxu0 %v2356
    %2515 = vmatprep.subr.mxu0 0.0
    %2516 = vmatpush1.msra.mxu0 0.0
    %2517 = vmatprep.subr.mxu0 0.0
    %2518 = vmatpush1.msra.mxu0 0.0
    %2519 = vmatprep.subr.mxu0 0.0
    %2520 = vmatpush1.msra.mxu0 0.0
    %2521 = vmatprep.subr.mxu0 0.0
    %2522 = vmatpush1.msra.mxu0 0.0
    %2523 = vmatprep.subr.mxu0 0.0
    %2524 = vmatpush1.msra.mxu0 0.0
    %2525 = vmatprep.subr.mxu0 0.0
    %2526 = vmatpush1.msra.mxu0 0.0
    %2527 = vmatprep.subr.mxu0 0.0
    %2528 = vmatpush1.msra.mxu0 0.0
    %2529 = vmatprep.subr.mxu0 0.0
    %2530 = vmatpush1.msra.mxu0 0.0
    %2531 = vmatprep.subr.mxu0 0.0
    %2532 = vmatpush1.msra.mxu0 0.0
    %2533 = vmatprep.subr.mxu0 0.0
    %2534 = vmatpush1.msra.mxu0 0.0
    %2535 = vmatprep.subr.mxu0 0.0
    %2536 = vmatpush1.msra.mxu0 0.0
    %2537 = vmatprep.subr.mxu0 0.0
    %2538 = vmatpush1.msra.mxu0 0.0
    %2539 = vmatprep.subr.mxu0 0.0
    %2540 = vmatpush1.msra.mxu0 0.0
    %2541 = vmatprep.subr.mxu0 0.0
    %2542 = vmatpush1.msra.mxu0 0.0
    %2543 = vmatprep.subr.mxu0 0.0
    %2544 = vmatpush1.msra.mxu0 0.0
    %2545 = vmatprep.subr.mxu0 0.0
    %2546 = vmatpush1.msra.mxu0 0.0
    %2547 = vmatprep.subr.mxu0 0.0
    %2548 = vmatpush1.msra.mxu0 0.0
    %2549 = vmatprep.subr.mxu0 0.0
    %2550 = vmatpush1.msra.mxu0 0.0
    %2551 = vmatprep.subr.mxu0 0.0
    %2552 = vmatpush1.msra.mxu0 0.0
    %2553 = vmatprep.subr.mxu0 0.0
    %2554 = vmatpush1.msra.mxu0 0.0
    %2555 = vmatprep.subr.mxu0 0.0
    %2556 = vmatpush1.msra.mxu0 0.0
    %2557 = vmatprep.subr.mxu0 0.0
    %2558 = vmatpush1.msra.mxu0 0.0
    %2559 = vmatprep.subr.mxu0 0.0
    %2560 = vmatpush1.msra.mxu0 0.0
    %2561 = vmatprep.subr.mxu0 0.0
    %2562 = vmatpush1.msra.mxu0 0.0
    %2563 = vmatprep.subr.mxu0 0.0
    %2564 = vmatpush1.msra.mxu0 0.0
    %2565 = vmatprep.subr.mxu0 0.0
    %2566 = vmatpush1.msra.mxu0 0.0
    %2567 = vmatprep.subr.mxu0 0.0
    %2568 = vmatpush1.msra.mxu0 0.0
    %2569 = vmatprep.subr.mxu0 0.0
    %2570 = vmatpush1.msra.mxu0 0.0
    %2571 = vmatprep.subr.mxu0 0.0
    %2572 = vmatpush1.msra.mxu0 0.0
    %2573 = vmatprep.subr.mxu0 0.0
    %2574 = vmatpush1.msra.mxu0 0.0
    %2575 = vmatprep.mubr.f32.mxu0 0.0
    %2576 = vmatmul.mubr.f32.gmra.mrb[0].mxu0 %v2509
    %v2577 = vpop.f32.mrb[0].mxu0
    %v2578 = vadd.f32 %v2505, %v2577
    %v2579 = vpop.f32.mrb[0].mxu0
    %2580 = vdwg.mxu0
    %s2581 = scalar_lea.vmem %s8, 16
    %v2582 = vld [vmem:[%s2581] sm:$0xff]
    %v2584 = vsel %vm2281, %v2582, 0
    %2586 = vmatprep.subr.mxu0 0.0
    %2587 = vmatpush1.msra.mxu0 %v2276
    %2588 = vmatprep.subr.mxu0 0.0
    %2589 = vmatpush1.msra.mxu0 %v2277
    %2590 = vmatprep.subr.mxu0 0.0
    %2591 = vmatpush1.msra.mxu0 %v2278
    %2592 = vmatprep.subr.mxu0 0.0
    %2593 = vmatpush1.msra.mxu0 %v2279
    %2594 = vmatprep.subr.mxu0 0.0
    %2595 = vmatpush1.msra.mxu0 0.0
    %2596 = vmatprep.subr.mxu0 0.0
    %2597 = vmatpush1.msra.mxu0 0.0
    %2598 = vmatprep.subr.mxu0 0.0
    %2599 = vmatpush1.msra.mxu0 0.0
    %2600 = vmatprep.subr.mxu0 0.0
    %2601 = vmatpush1.msra.mxu0 0.0
    %2602 = vmatprep.subr.mxu0 0.0
    %2603 = vmatpush1.msra.mxu0 0.0
    %2604 = vmatprep.subr.mxu0 0.0
    %2605 = vmatpush1.msra.mxu0 0.0
    %2606 = vmatprep.subr.mxu0 0.0
    %2607 = vmatpush1.msra.mxu0 0.0
    %2608 = vmatprep.subr.mxu0 0.0
    %2609 = vmatpush1.msra.mxu0 0.0
    %2610 = vmatprep.subr.mxu0 0.0
    %2611 = vmatpush1.msra.mxu0 0.0
    %2612 = vmatprep.subr.mxu0 0.0
    %2613 = vmatpush1.msra.mxu0 0.0
    %2614 = vmatprep.subr.mxu0 0.0
    %2615 = vmatpush1.msra.mxu0 0.0
    %2616 = vmatprep.subr.mxu0 0.0
    %2617 = vmatpush1.msra.mxu0 0.0
    %2618 = vmatprep.subr.mxu0 0.0
    %2619 = vmatpush1.msra.mxu0 0.0
    %2620 = vmatprep.subr.mxu0 0.0
    %2621 = vmatpush1.msra.mxu0 0.0
    %2622 = vmatprep.subr.mxu0 0.0
    %2623 = vmatpush1.msra.mxu0 0.0
    %2624 = vmatprep.subr.mxu0 0.0
    %2625 = vmatpush1.msra.mxu0 0.0
    %2626 = vmatprep.subr.mxu0 0.0
    %2627 = vmatpush1.msra.mxu0 0.0
    %2628 = vmatprep.subr.mxu0 0.0
    %2629 = vmatpush1.msra.mxu0 0.0
    %2630 = vmatprep.subr.mxu0 0.0
    %2631 = vmatpush1.msra.mxu0 0.0
    %2632 = vmatprep.subr.mxu0 0.0
    %2633 = vmatpush1.msra.mxu0 0.0
    %2634 = vmatprep.subr.mxu0 0.0
    %2635 = vmatpush1.msra.mxu0 0.0
    %2636 = vmatprep.subr.mxu0 0.0
    %2637 = vmatpush1.msra.mxu0 0.0
    %2638 = vmatprep.subr.mxu0 0.0
    %2639 = vmatpush1.msra.mxu0 0.0
    %2640 = vmatprep.subr.mxu0 0.0
    %2641 = vmatpush1.msra.mxu0 0.0
    %2642 = vmatprep.subr.mxu0 0.0
    %2643 = vmatpush1.msra.mxu0 0.0
    %2644 = vmatprep.subr.mxu0 0.0
    %2645 = vmatpush1.msra.mxu0 0.0
    %2646 = vmatprep.subr.mxu0 0.0
    %2647 = vmatpush1.msra.mxu0 0.0
    %2648 = vmatprep.subr.mxu0 0.0
    %2649 = vmatpush1.msra.mxu0 0.0
    %2650 = vmatprep.mubr.f32.mxu0 0.0
    %2651 = vmatmul.mubr.f32.gmra.mrb[0].mxu0 %v2584
    %v2652 = vpop.f32.mrb[0].mxu0
    %v2653 = vadd.f32 0.0, %v2652
    %v2654 = vpop.f32.mrb[0].mxu0
    %2655 = vdwg.mxu0
    %s2656 = scalar_lea.vmem %s9, 32
    %v2657 = vld [vmem:[%s2656] sm:$0xff]
    %v2658 = vld [vmem:[%s2656 + $0x8] sm:$0xff]
    %v2660 = vsel %vm2207, %v2653, 0
    %2662 = vmatprep.subr.mxu0 0.0
    %2663 = vmatpush1.msra.mxu0 %v2657
    %2664 = vmatprep.subr.mxu0 0.0
    %2665 = vmatpush1.msra.mxu0 %v2658
    %2666 = vmatprep.subr.mxu0 0.0
    %2667 = vmatpush1.msra.mxu0 0.0
    %2668 = vmatprep.subr.mxu0 0.0
    %2669 = vmatpush1.msra.mxu0 0.0
    %2670 = vmatprep.subr.mxu0 0.0
    %2671 = vmatpush1.msra.mxu0 0.0
    %2672 = vmatprep.subr.mxu0 0.0
    %2673 = vmatpush1.msra.mxu0 0.0
    %2674 = vmatprep.subr.mxu0 0.0
    %2675 = vmatpush1.msra.mxu0 0.0
    %2676 = vmatprep.subr.mxu0 0.0
    %2677 = vmatpush1.msra.mxu0 0.0
    %2678 = vmatprep.subr.mxu0 0.0
    %2679 = vmatpush1.msra.mxu0 0.0
    %2680 = vmatprep.subr.mxu0 0.0
    %2681 = vmatpush1.msra.mxu0 0.0
    %2682 = vmatprep.subr.mxu0 0.0
    %2683 = vmatpush1.msra.mxu0 0.0
    %2684 = vmatprep.subr.mxu0 0.0
    %2685 = vmatpush1.msra.mxu0 0.0
    %2686 = vmatprep.subr.mxu0 0.0
    %2687 = vmatpush1.msra.mxu0 0.0
    %2688 = vmatprep.subr.mxu0 0.0
    %2689 = vmatpush1.msra.mxu0 0.0
    %2690 = vmatprep.subr.mxu0 0.0
    %2691 = vmatpush1.msra.mxu0 0.0
    %2692 = vmatprep.subr.mxu0 0.0
    %2693 = vmatpush1.msra.mxu0 0.0
    %2694 = vmatprep.subr.mxu0 0.0
    %2695 = vmatpush1.msra.mxu0 0.0
    %2696 = vmatprep.subr.mxu0 0.0
    %2697 = vmatpush1.msra.mxu0 0.0
    %2698 = vmatprep.subr.mxu0 0.0
    %2699 = vmatpush1.msra.mxu0 0.0
    %2700 = vmatprep.subr.mxu0 0.0
    %2701 = vmatpush1.msra.mxu0 0.0
    %2702 = vmatprep.subr.mxu0 0.0
    %2703 = vmatpush1.msra.mxu0 0.0
    %2704 = vmatprep.subr.mxu0 0.0
    %2705 = vmatpush1.msra.mxu0 0.0
    %2706 = vmatprep.subr.mxu0 0.0
    %2707 = vmatpush1.msra.mxu0 0.0
    %2708 = vmatprep.subr.mxu0 0.0
    %2709 = vmatpush1.msra.mxu0 0.0
    %2710 = vmatprep.subr.mxu0 0.0
    %2711 = vmatpush1.msra.mxu0 0.0
    %2712 = vmatprep.subr.mxu0 0.0
    %2713 = vmatpush1.msra.mxu0 0.0
    %2714 = vmatprep.subr.mxu0 0.0
    %2715 = vmatpush1.msra.mxu0 0.0
    %2716 = vmatprep.subr.mxu0 0.0
    %2717 = vmatpush1.msra.mxu0 0.0
    %2718 = vmatprep.subr.mxu0 0.0
    %2719 = vmatpush1.msra.mxu0 0.0
    %2720 = vmatprep.subr.mxu0 0.0
    %2721 = vmatpush1.msra.mxu0 0.0
    %2722 = vmatprep.subr.mxu0 0.0
    %2723 = vmatpush1.msra.mxu0 0.0
    %2724 = vmatprep.subr.mxu0 0.0
    %2725 = vmatpush1.msra.mxu0 0.0
    %2726 = vmatprep.mubr.f32.mxu0 0.0
    %2727 = vmatmul.mubr.f32.gmra.mrb[0].mxu0 %v2660
    %v2728 = vpop.f32.mrb[0].mxu0
    %v2729 = vadd.f32 0.0, %v2728
    %v2730 = vpop.f32.mrb[0].mxu0
    %2731 = vdwg.mxu0
    %v2732 = vadd.f32 %v2578, %v2729
    %s2733 = scalar_lea.vmem %s8, 24
    %v2734 = vld [vmem:[%s2733] sm:$0xff]
    %v2736 = vsel %vm2281, %v2734, 0
    %2738 = vmatprep.subr.mxu0 0.0
    %2739 = vmatpush1.msra.mxu0 %v2276
    %2740 = vmatprep.subr.mxu0 0.0
    %2741 = vmatpush1.msra.mxu0 %v2277
    %2742 = vmatprep.subr.mxu0 0.0
    %2743 = vmatpush1.msra.mxu0 %v2278
    %2744 = vmatprep.subr.mxu0 0.0
    %2745 = vmatpush1.msra.mxu0 %v2279
    %2746 = vmatprep.subr.mxu0 0.0
    %2747 = vmatpush1.msra.mxu0 0.0
    %2748 = vmatprep.subr.mxu0 0.0
    %2749 = vmatpush1.msra.mxu0 0.0
    %2750 = vmatprep.subr.mxu0 0.0
    %2751 = vmatpush1.msra.mxu0 0.0
    %2752 = vmatprep.subr.mxu0 0.0
    %2753 = vmatpush1.msra.mxu0 0.0
    %2754 = vmatprep.subr.mxu0 0.0
    %2755 = vmatpush1.msra.mxu0 0.0
    %2756 = vmatprep.subr.mxu0 0.0
    %2757 = vmatpush1.msra.mxu0 0.0
    %2758 = vmatprep.subr.mxu0 0.0
    %2759 = vmatpush1.msra.mxu0 0.0
    %2760 = vmatprep.subr.mxu0 0.0
    %2761 = vmatpush1.msra.mxu0 0.0
    %2762 = vmatprep.subr.mxu0 0.0
    %2763 = vmatpush1.msra.mxu0 0.0
    %2764 = vmatprep.subr.mxu0 0.0
    %2765 = vmatpush1.msra.mxu0 0.0
    %2766 = vmatprep.subr.mxu0 0.0
    %2767 = vmatpush1.msra.mxu0 0.0
    %2768 = vmatprep.subr.mxu0 0.0
    %2769 = vmatpush1.msra.mxu0 0.0
    %2770 = vmatprep.subr.mxu0 0.0
    %2771 = vmatpush1.msra.mxu0 0.0
    %2772 = vmatprep.subr.mxu0 0.0
    %2773 = vmatpush1.msra.mxu0 0.0
    %2774 = vmatprep.subr.mxu0 0.0
    %2775 = vmatpush1.msra.mxu0 0.0
    %2776 = vmatprep.subr.mxu0 0.0
    %2777 = vmatpush1.msra.mxu0 0.0
    %2778 = vmatprep.subr.mxu0 0.0
    %2779 = vmatpush1.msra.mxu0 0.0
    %2780 = vmatprep.subr.mxu0 0.0
    %2781 = vmatpush1.msra.mxu0 0.0
    %2782 = vmatprep.subr.mxu0 0.0
    %2783 = vmatpush1.msra.mxu0 0.0
    %2784 = vmatprep.subr.mxu0 0.0
    %2785 = vmatpush1.msra.mxu0 0.0
    %2786 = vmatprep.subr.mxu0 0.0
    %2787 = vmatpush1.msra.mxu0 0.0
    %2788 = vmatprep.subr.mxu0 0.0
    %2789 = vmatpush1.msra.mxu0 0.0
    %2790 = vmatprep.subr.mxu0 0.0
    %2791 = vmatpush1.msra.mxu0 0.0
    %2792 = vmatprep.subr.mxu0 0.0
    %2793 = vmatpush1.msra.mxu0 0.0
    %2794 = vmatprep.subr.mxu0 0.0
    %2795 = vmatpush1.msra.mxu0 0.0
    %2796 = vmatprep.subr.mxu0 0.0
    %2797 = vmatpush1.msra.mxu0 0.0
    %2798 = vmatprep.subr.mxu0 0.0
    %2799 = vmatpush1.msra.mxu0 0.0
    %2800 = vmatprep.subr.mxu0 0.0
    %2801 = vmatpush1.msra.mxu0 0.0
    %2802 = vmatprep.mubr.f32.mxu0 0.0
    %2803 = vmatmul.mubr.f32.gmra.mrb[0].mxu0 %v2736
    %v2804 = vpop.f32.mrb[0].mxu0
    %v2805 = vadd.f32 0.0, %v2804
    %v2806 = vpop.f32.mrb[0].mxu0
    %2807 = vdwg.mxu0
    %s2808 = scalar_lea.vmem %s9, 48
    %v2809 = vld [vmem:[%s2808] sm:$0xff]
    %v2810 = vld [vmem:[%s2808 + $0x8] sm:$0xff]
    %v2812 = vsel %vm2207, %v2805, 0
    %2814 = vmatprep.subr.mxu0 0.0
    %2815 = vmatpush1.msra.mxu0 %v2809
    %2816 = vmatprep.subr.mxu0 0.0
    %2817 = vmatpush1.msra.mxu0 %v2810
    %2818 = vmatprep.subr.mxu0 0.0
    %2819 = vmatpush1.msra.mxu0 0.0
    %2820 = vmatprep.subr.mxu0 0.0
    %2821 = vmatpush1.msra.mxu0 0.0
    %2822 = vmatprep.subr.mxu0 0.0
    %2823 = vmatpush1.msra.mxu0 0.0
    %2824 = vmatprep.subr.mxu0 0.0
    %2825 = vmatpush1.msra.mxu0 0.0
    %2826 = vmatprep.subr.mxu0 0.0
    %2827 = vmatpush1.msra.mxu0 0.0
    %2828 = vmatprep.subr.mxu0 0.0
    %2829 = vmatpush1.msra.mxu0 0.0
    %2830 = vmatprep.subr.mxu0 0.0
    %2831 = vmatpush1.msra.mxu0 0.0
    %2832 = vmatprep.subr.mxu0 0.0
    %2833 = vmatpush1.msra.mxu0 0.0
    %2834 = vmatprep.subr.mxu0 0.0
    %2835 = vmatpush1.msra.mxu0 0.0
    %2836 = vmatprep.subr.mxu0 0.0
    %2837 = vmatpush1.msra.mxu0 0.0
    %2838 = vmatprep.subr.mxu0 0.0
    %2839 = vmatpush1.msra.mxu0 0.0
    %2840 = vmatprep.subr.mxu0 0.0
    %2841 = vmatpush1.msra.mxu0 0.0
    %2842 = vmatprep.subr.mxu0 0.0
    %2843 = vmatpush1.msra.mxu0 0.0
    %2844 = vmatprep.subr.mxu0 0.0
    %2845 = vmatpush1.msra.mxu0 0.0
    %2846 = vmatprep.subr.mxu0 0.0
    %2847 = vmatpush1.msra.mxu0 0.0
    %2848 = vmatprep.subr.mxu0 0.0
    %2849 = vmatpush1.msra.mxu0 0.0
    %2850 = vmatprep.subr.mxu0 0.0
    %2851 = vmatpush1.msra.mxu0 0.0
    %2852 = vmatprep.subr.mxu0 0.0
    %2853 = vmatpush1.msra.mxu0 0.0
    %2854 = vmatprep.subr.mxu0 0.0
    %2855 = vmatpush1.msra.mxu0 0.0
    %2856 = vmatprep.subr.mxu0 0.0
    %2857 = vmatpush1.msra.mxu0 0.0
    %2858 = vmatprep.subr.mxu0 0.0
    %2859 = vmatpush1.msra.mxu0 0.0
    %2860 = vmatprep.subr.mxu0 0.0
    %2861 = vmatpush1.msra.mxu0 0.0
    %2862 = vmatprep.subr.mxu0 0.0
    %2863 = vmatpush1.msra.mxu0 0.0
    %2864 = vmatprep.subr.mxu0 0.0
    %2865 = vmatpush1.msra.mxu0 0.0
    %2866 = vmatprep.subr.mxu0 0.0
    %2867 = vmatpush1.msra.mxu0 0.0
    %2868 = vmatprep.subr.mxu0 0.0
    %2869 = vmatpush1.msra.mxu0 0.0
    %2870 = vmatprep.subr.mxu0 0.0
    %2871 = vmatpush1.msra.mxu0 0.0
    %2872 = vmatprep.subr.mxu0 0.0
    %2873 = vmatpush1.msra.mxu0 0.0
    %2874 = vmatprep.subr.mxu0 0.0
    %2875 = vmatpush1.msra.mxu0 0.0
    %2876 = vmatprep.subr.mxu0 0.0
    %2877 = vmatpush1.msra.mxu0 0.0
    %2878 = vmatprep.mubr.f32.mxu0 0.0
    %2879 = vmatmul.mubr.f32.gmra.mrb[0].mxu0 %v2812
    %v2880 = vpop.f32.mrb[0].mxu0
    %v2881 = vadd.f32 0.0, %v2880
    %v2882 = vpop.f32.mrb[0].mxu0
    %2883 = vdwg.mxu0
    %v2884 = vadd.f32 %v2732, %v2881
    %s2885 = scalar_lea.vmem %s8, 32
    %v2886 = vld [vmem:[%s2885] sm:$0xff]
    %v2888 = vsel %vm2281, %v2886, 0
    %2890 = vmatprep.subr.mxu0 0.0
    %2891 = vmatpush1.msra.mxu0 %v2276
    %2892 = vmatprep.subr.mxu0 0.0
    %2893 = vmatpush1.msra.mxu0 %v2277
    %2894 = vmatprep.subr.mxu0 0.0
    %2895 = vmatpush1.msra.mxu0 %v2278
    %2896 = vmatprep.subr.mxu0 0.0
    %2897 = vmatpush1.msra.mxu0 %v2279
    %2898 = vmatprep.subr.mxu0 0.0
    %2899 = vmatpush1.msra.mxu0 0.0
    %2900 = vmatprep.subr.mxu0 0.0
    %2901 = vmatpush1.msra.mxu0 0.0
    %2902 = vmatprep.subr.mxu0 0.0
    %2903 = vmatpush1.msra.mxu0 0.0
    %2904 = vmatprep.subr.mxu0 0.0
    %2905 = vmatpush1.msra.mxu0 0.0
    %2906 = vmatprep.subr.mxu0 0.0
    %2907 = vmatpush1.msra.mxu0 0.0
    %2908 = vmatprep.subr.mxu0 0.0
    %2909 = vmatpush1.msra.mxu0 0.0
    %2910 = vmatprep.subr.mxu0 0.0
    %2911 = vmatpush1.msra.mxu0 0.0
    %2912 = vmatprep.subr.mxu0 0.0
    %2913 = vmatpush1.msra.mxu0 0.0
    %2914 = vmatprep.subr.mxu0 0.0
    %2915 = vmatpush1.msra.mxu0 0.0
    %2916 = vmatprep.subr.mxu0 0.0
    %2917 = vmatpush1.msra.mxu0 0.0
    %2918 = vmatprep.subr.mxu0 0.0
    %2919 = vmatpush1.msra.mxu0 0.0
    %2920 = vmatprep.subr.mxu0 0.0
    %2921 = vmatpush1.msra.mxu0 0.0
    %2922 = vmatprep.subr.mxu0 0.0
    %2923 = vmatpush1.msra.mxu0 0.0
    %2924 = vmatprep.subr.mxu0 0.0
    %2925 = vmatpush1.msra.mxu0 0.0
    %2926 = vmatprep.subr.mxu0 0.0
    %2927 = vmatpush1.msra.mxu0 0.0
    %2928 = vmatprep.subr.mxu0 0.0
    %2929 = vmatpush1.msra.mxu0 0.0
    %2930 = vmatprep.subr.mxu0 0.0
    %2931 = vmatpush1.msra.mxu0 0.0
    %2932 = vmatprep.subr.mxu0 0.0
    %2933 = vmatpush1.msra.mxu0 0.0
    %2934 = vmatprep.subr.mxu0 0.0
    %2935 = vmatpush1.msra.mxu0 0.0
    %2936 = vmatprep.subr.mxu0 0.0
    %2937 = vmatpush1.msra.mxu0 0.0
    %2938 = vmatprep.subr.mxu0 0.0
    %2939 = vmatpush1.msra.mxu0 0.0
    %2940 = vmatprep.subr.mxu0 0.0
    %2941 = vmatpush1.msra.mxu0 0.0
    %2942 = vmatprep.subr.mxu0 0.0
    %2943 = vmatpush1.msra.mxu0 0.0
    %2944 = vmatprep.subr.mxu0 0.0
    %2945 = vmatpush1.msra.mxu0 0.0
    %2946 = vmatprep.subr.mxu0 0.0
    %2947 = vmatpush1.msra.mxu0 0.0
    %2948 = vmatprep.subr.mxu0 0.0
    %2949 = vmatpush1.msra.mxu0 0.0
    %2950 = vmatprep.subr.mxu0 0.0
    %2951 = vmatpush1.msra.mxu0 0.0
    %2952 = vmatprep.subr.mxu0 0.0
    %2953 = vmatpush1.msra.mxu0 0.0
    %2954 = vmatprep.mubr.f32.mxu0 0.0
    %2955 = vmatmul.mubr.f32.gmra.mrb[0].mxu0 %v2888
    %v2956 = vpop.f32.mrb[0].mxu0
    %v2957 = vadd.f32 0.0, %v2956
    %v2958 = vpop.f32.mrb[0].mxu0
    %2959 = vdwg.mxu0
    %s2960 = scalar_lea.vmem %s9, 64
    %v2961 = vld [vmem:[%s2960] sm:$0xff]
    %v2962 = vld [vmem:[%s2960 + $0x8] sm:$0xff]
    %v2964 = vsel %vm2207, %v2957, 0
    %2966 = vmatprep.subr.mxu0 0.0
    %2967 = vmatpush1.msra.mxu0 %v2961
    %2968 = vmatprep.subr.mxu0 0.0
    %2969 = vmatpush1.msra.mxu0 %v2962
    %2970 = vmatprep.subr.mxu0 0.0
    %2971 = vmatpush1.msra.mxu0 0.0
    %2972 = vmatprep.subr.mxu0 0.0
    %2973 = vmatpush1.msra.mxu0 0.0
    %2974 = vmatprep.subr.mxu0 0.0
    %2975 = vmatpush1.msra.mxu0 0.0
    %2976 = vmatprep.subr.mxu0 0.0
    %2977 = vmatpush1.msra.mxu0 0.0
    %2978 = vmatprep.subr.mxu0 0.0
    %2979 = vmatpush1.msra.mxu0 0.0
    %2980 = vmatprep.subr.mxu0 0.0
    %2981 = vmatpush1.msra.mxu0 0.0
    %2982 = vmatprep.subr.mxu0 0.0
    %2983 = vmatpush1.msra.mxu0 0.0
    %2984 = vmatprep.subr.mxu0 0.0
    %2985 = vmatpush1.msra.mxu0 0.0
    %2986 = vmatprep.subr.mxu0 0.0
    %2987 = vmatpush1.msra.mxu0 0.0
    %2988 = vmatprep.subr.mxu0 0.0
    %2989 = vmatpush1.msra.mxu0 0.0
    %2990 = vmatprep.subr.mxu0 0.0
    %2991 = vmatpush1.msra.mxu0 0.0
    %2992 = vmatprep.subr.mxu0 0.0
    %2993 = vmatpush1.msra.mxu0 0.0
    %2994 = vmatprep.subr.mxu0 0.0
    %2995 = vmatpush1.msra.mxu0 0.0
    %2996 = vmatprep.subr.mxu0 0.0
    %2997 = vmatpush1.msra.mxu0 0.0
    %2998 = vmatprep.subr.mxu0 0.0
    %2999 = vmatpush1.msra.mxu0 0.0
    %3000 = vmatprep.subr.mxu0 0.0
    %3001 = vmatpush1.msra.mxu0 0.0
    %3002 = vmatprep.subr.mxu0 0.0
    %3003 = vmatpush1.msra.mxu0 0.0
    %3004 = vmatprep.subr.mxu0 0.0
    %3005 = vmatpush1.msra.mxu0 0.0
    %3006 = vmatprep.subr.mxu0 0.0
    %3007 = vmatpush1.msra.mxu0 0.0
    %3008 = vmatprep.subr.mxu0 0.0
    %3009 = vmatpush1.msra.mxu0 0.0
    %3010 = vmatprep.subr.mxu0 0.0
    %3011 = vmatpush1.msra.mxu0 0.0
    %3012 = vmatprep.subr.mxu0 0.0
    %3013 = vmatpush1.msra.mxu0 0.0
    %3014 = vmatprep.subr.mxu0 0.0
    %3015 = vmatpush1.msra.mxu0 0.0
    %3016 = vmatprep.subr.mxu0 0.0
    %3017 = vmatpush1.msra.mxu0 0.0
    %3018 = vmatprep.subr.mxu0 0.0
    %3019 = vmatpush1.msra.mxu0 0.0
    %3020 = vmatprep.subr.mxu0 0.0
    %3021 = vmatpush1.msra.mxu0 0.0
    %3022 = vmatprep.subr.mxu0 0.0
    %3023 = vmatpush1.msra.mxu0 0.0
    %3024 = vmatprep.subr.mxu0 0.0
    %3025 = vmatpush1.msra.mxu0 0.0
    %3026 = vmatprep.subr.mxu0 0.0
    %3027 = vmatpush1.msra.mxu0 0.0
    %3028 = vmatprep.subr.mxu0 0.0
    %3029 = vmatpush1.msra.mxu0 0.0
    %3030 = vmatprep.mubr.f32.mxu0 0.0
    %3031 = vmatmul.mubr.f32.gmra.mrb[0].mxu0 %v2964
    %v3032 = vpop.f32.mrb[0].mxu0
    %v3033 = vadd.f32 0.0, %v3032
    %v3034 = vpop.f32.mrb[0].mxu0
    %3035 = vdwg.mxu0
    %v3036 = vadd.f32 %v2884, %v3033
    %s3037 = scalar_lea.vmem %s8, 40
    %v3038 = vld [vmem:[%s3037] sm:$0xff]
    %v3040 = vsel %vm2281, %v3038, 0
    %3042 = vmatprep.subr.mxu0 0.0
    %3043 = vmatpush1.msra.mxu0 %v2276
    %3044 = vmatprep.subr.mxu0 0.0
    %3045 = vmatpush1.msra.mxu0 %v2277
    %3046 = vmatprep.subr.mxu0 0.0
    %3047 = vmatpush1.msra.mxu0 %v2278
    %3048 = vmatprep.subr.mxu0 0.0
    %3049 = vmatpush1.msra.mxu0 %v2279
    %3050 = vmatprep.subr.mxu0 0.0
    %3051 = vmatpush1.msra.mxu0 0.0
    %3052 = vmatprep.subr.mxu0 0.0
    %3053 = vmatpush1.msra.mxu0 0.0
    %3054 = vmatprep.subr.mxu0 0.0
    %3055 = vmatpush1.msra.mxu0 0.0
    %3056 = vmatprep.subr.mxu0 0.0
    %3057 = vmatpush1.msra.mxu0 0.0
    %3058 = vmatprep.subr.mxu0 0.0
    %3059 = vmatpush1.msra.mxu0 0.0
    %3060 = vmatprep.subr.mxu0 0.0
    %3061 = vmatpush1.msra.mxu0 0.0
    %3062 = vmatprep.subr.mxu0 0.0
    %3063 = vmatpush1.msra.mxu0 0.0
    %3064 = vmatprep.subr.mxu0 0.0
    %3065 = vmatpush1.msra.mxu0 0.0
    %3066 = vmatprep.subr.mxu0 0.0
    %3067 = vmatpush1.msra.mxu0 0.0
    %3068 = vmatprep.subr.mxu0 0.0
    %3069 = vmatpush1.msra.mxu0 0.0
    %3070 = vmatprep.subr.mxu0 0.0
    %3071 = vmatpush1.msra.mxu0 0.0
    %3072 = vmatprep.subr.mxu0 0.0
    %3073 = vmatpush1.msra.mxu0 0.0
    %3074 = vmatprep.subr.mxu0 0.0
    %3075 = vmatpush1.msra.mxu0 0.0
    %3076 = vmatprep.subr.mxu0 0.0
    %3077 = vmatpush1.msra.mxu0 0.0
    %3078 = vmatprep.subr.mxu0 0.0
    %3079 = vmatpush1.msra.mxu0 0.0
    %3080 = vmatprep.subr.mxu0 0.0
    %3081 = vmatpush1.msra.mxu0 0.0
    %3082 = vmatprep.subr.mxu0 0.0
    %3083 = vmatpush1.msra.mxu0 0.0
    %3084 = vmatprep.subr.mxu0 0.0
    %3085 = vmatpush1.msra.mxu0 0.0
    %3086 = vmatprep.subr.mxu0 0.0
    %3087 = vmatpush1.msra.mxu0 0.0
    %3088 = vmatprep.subr.mxu0 0.0
    %3089 = vmatpush1.msra.mxu0 0.0
    %3090 = vmatprep.subr.mxu0 0.0
    %3091 = vmatpush1.msra.mxu0 0.0
    %3092 = vmatprep.subr.mxu0 0.0
    %3093 = vmatpush1.msra.mxu0 0.0
    %3094 = vmatprep.subr.mxu0 0.0
    %3095 = vmatpush1.msra.mxu0 0.0
    %3096 = vmatprep.subr.mxu0 0.0
    %3097 = vmatpush1.msra.mxu0 0.0
    %3098 = vmatprep.subr.mxu0 0.0
    %3099 = vmatpush1.msra.mxu0 0.0
    %3100 = vmatprep.subr.mxu0 0.0
    %3101 = vmatpush1.msra.mxu0 0.0
    %3102 = vmatprep.subr.mxu0 0.0
    %3103 = vmatpush1.msra.mxu0 0.0
    %3104 = vmatprep.subr.mxu0 0.0
    %3105 = vmatpush1.msra.mxu0 0.0
    %3106 = vmatprep.mubr.f32.mxu0 0.0
    %3107 = vmatmul.mubr.f32.gmra.mrb[0].mxu0 %v3040
    %v3108 = vpop.f32.mrb[0].mxu0
    %v3109 = vadd.f32 0.0, %v3108
    %v3110 = vpop.f32.mrb[0].mxu0
    %3111 = vdwg.mxu0
    %s3112 = scalar_lea.vmem %s9, 80
    %v3113 = vld [vmem:[%s3112] sm:$0xff]
    %v3114 = vld [vmem:[%s3112 + $0x8] sm:$0xff]
    %v3116 = vsel %vm2207, %v3109, 0
    %3118 = vmatprep.subr.mxu0 0.0
    %3119 = vmatpush1.msra.mxu0 %v3113
    %3120 = vmatprep.subr.mxu0 0.0
    %3121 = vmatpush1.msra.mxu0 %v3114
    %3122 = vmatprep.subr.mxu0 0.0
    %3123 = vmatpush1.msra.mxu0 0.0
    %3124 = vmatprep.subr.mxu0 0.0
    %3125 = vmatpush1.msra.mxu0 0.0
    %3126 = vmatprep.subr.mxu0 0.0
    %3127 = vmatpush1.msra.mxu0 0.0
    %3128 = vmatprep.subr.mxu0 0.0
    %3129 = vmatpush1.msra.mxu0 0.0
    %3130 = vmatprep.subr.mxu0 0.0
    %3131 = vmatpush1.msra.mxu0 0.0
    %3132 = vmatprep.subr.mxu0 0.0
    %3133 = vmatpush1.msra.mxu0 0.0
    %3134 = vmatprep.subr.mxu0 0.0
    %3135 = vmatpush1.msra.mxu0 0.0
    %3136 = vmatprep.subr.mxu0 0.0
    %3137 = vmatpush1.msra.mxu0 0.0
    %3138 = vmatprep.subr.mxu0 0.0
    %3139 = vmatpush1.msra.mxu0 0.0
    %3140 = vmatprep.subr.mxu0 0.0
    %3141 = vmatpush1.msra.mxu0 0.0
    %3142 = vmatprep.subr.mxu0 0.0
    %3143 = vmatpush1.msra.mxu0 0.0
    %3144 = vmatprep.subr.mxu0 0.0
    %3145 = vmatpush1.msra.mxu0 0.0
    %3146 = vmatprep.subr.mxu0 0.0
    %3147 = vmatpush1.msra.mxu0 0.0
    %3148 = vmatprep.subr.mxu0 0.0
    %3149 = vmatpush1.msra.mxu0 0.0
    %3150 = vmatprep.subr.mxu0 0.0
    %3151 = vmatpush1.msra.mxu0 0.0
    %3152 = vmatprep.subr.mxu0 0.0
    %3153 = vmatpush1.msra.mxu0 0.0
    %3154 = vmatprep.subr.mxu0 0.0
    %3155 = vmatpush1.msra.mxu0 0.0
    %3156 = vmatprep.subr.mxu0 0.0
    %3157 = vmatpush1.msra.mxu0 0.0
    %3158 = vmatprep.subr.mxu0 0.0
    %3159 = vmatpush1.msra.mxu0 0.0
    %3160 = vmatprep.subr.mxu0 0.0
    %3161 = vmatpush1.msra.mxu0 0.0
    %3162 = vmatprep.subr.mxu0 0.0
    %3163 = vmatpush1.msra.mxu0 0.0
    %3164 = vmatprep.subr.mxu0 0.0
    %3165 = vmatpush1.msra.mxu0 0.0
    %3166 = vmatprep.subr.mxu0 0.0
    %3167 = vmatpush1.msra.mxu0 0.0
    %3168 = vmatprep.subr.mxu0 0.0
    %3169 = vmatpush1.msra.mxu0 0.0
    %3170 = vmatprep.subr.mxu0 0.0
    %3171 = vmatpush1.msra.mxu0 0.0
    %3172 = vmatprep.subr.mxu0 0.0
    %3173 = vmatpush1.msra.mxu0 0.0
    %3174 = vmatprep.subr.mxu0 0.0
    %3175 = vmatpush1.msra.mxu0 0.0
    %3176 = vmatprep.subr.mxu0 0.0
    %3177 = vmatpush1.msra.mxu0 0.0
    %3178 = vmatprep.subr.mxu0 0.0
    %3179 = vmatpush1.msra.mxu0 0.0
    %3180 = vmatprep.subr.mxu0 0.0
    %3181 = vmatpush1.msra.mxu0 0.0
    %3182 = vmatprep.mubr.f32.mxu0 0.0
    %3183 = vmatmul.mubr.f32.gmra.mrb[0].mxu0 %v3116
    %v3184 = vpop.f32.mrb[0].mxu0
    %v3185 = vadd.f32 0.0, %v3184
    %v3186 = vpop.f32.mrb[0].mxu0
    %3187 = vdwg.mxu0
    %v3188 = vadd.f32 %v3036, %v3185
    %s3189 = scalar_lea.vmem %s8, 48
    %v3190 = vld [vmem:[%s3189] sm:$0xff]
    %v3192 = vsel %vm2281, %v3190, 0
    %3194 = vmatprep.subr.mxu0 0.0
    %3195 = vmatpush1.msra.mxu0 %v2276
    %3196 = vmatprep.subr.mxu0 0.0
    %3197 = vmatpush1.msra.mxu0 %v2277
    %3198 = vmatprep.subr.mxu0 0.0
    %3199 = vmatpush1.msra.mxu0 %v2278
    %3200 = vmatprep.subr.mxu0 0.0
    %3201 = vmatpush1.msra.mxu0 %v2279
    %3202 = vmatprep.subr.mxu0 0.0
    %3203 = vmatpush1.msra.mxu0 0.0
    %3204 = vmatprep.subr.mxu0 0.0
    %3205 = vmatpush1.msra.mxu0 0.0
    %3206 = vmatprep.subr.mxu0 0.0
    %3207 = vmatpush1.msra.mxu0 0.0
    %3208 = vmatprep.subr.mxu0 0.0
    %3209 = vmatpush1.msra.mxu0 0.0
    %3210 = vmatprep.subr.mxu0 0.0
    %3211 = vmatpush1.msra.mxu0 0.0
    %3212 = vmatprep.subr.mxu0 0.0
    %3213 = vmatpush1.msra.mxu0 0.0
    %3214 = vmatprep.subr.mxu0 0.0
    %3215 = vmatpush1.msra.mxu0 0.0
    %3216 = vmatprep.subr.mxu0 0.0
    %3217 = vmatpush1.msra.mxu0 0.0
    %3218 = vmatprep.subr.mxu0 0.0
    %3219 = vmatpush1.msra.mxu0 0.0
    %3220 = vmatprep.subr.mxu0 0.0
    %3221 = vmatpush1.msra.mxu0 0.0
    %3222 = vmatprep.subr.mxu0 0.0
    %3223 = vmatpush1.msra.mxu0 0.0
    %3224 = vmatprep.subr.mxu0 0.0
    %3225 = vmatpush1.msra.mxu0 0.0
    %3226 = vmatprep.subr.mxu0 0.0
    %3227 = vmatpush1.msra.mxu0 0.0
    %3228 = vmatprep.subr.mxu0 0.0
    %3229 = vmatpush1.msra.mxu0 0.0
    %3230 = vmatprep.subr.mxu0 0.0
    %3231 = vmatpush1.msra.mxu0 0.0
    %3232 = vmatprep.subr.mxu0 0.0
    %3233 = vmatpush1.msra.mxu0 0.0
    %3234 = vmatprep.subr.mxu0 0.0
    %3235 = vmatpush1.msra.mxu0 0.0
    %3236 = vmatprep.subr.mxu0 0.0
    %3237 = vmatpush1.msra.mxu0 0.0
    %3238 = vmatprep.subr.mxu0 0.0
    %3239 = vmatpush1.msra.mxu0 0.0
    %3240 = vmatprep.subr.mxu0 0.0
    %3241 = vmatpush1.msra.mxu0 0.0
    %3242 = vmatprep.subr.mxu0 0.0
    %3243 = vmatpush1.msra.mxu0 0.0
    %3244 = vmatprep.subr.mxu0 0.0
    %3245 = vmatpush1.msra.mxu0 0.0
    %3246 = vmatprep.subr.mxu0 0.0
    %3247 = vmatpush1.msra.mxu0 0.0
    %3248 = vmatprep.subr.mxu0 0.0
    %3249 = vmatpush1.msra.mxu0 0.0
    %3250 = vmatprep.subr.mxu0 0.0
    %3251 = vmatpush1.msra.mxu0 0.0
    %3252 = vmatprep.subr.mxu0 0.0
    %3253 = vmatpush1.msra.mxu0 0.0
    %3254 = vmatprep.subr.mxu0 0.0
    %3255 = vmatpush1.msra.mxu0 0.0
    %3256 = vmatprep.subr.mxu0 0.0
    %3257 = vmatpush1.msra.mxu0 0.0
    %3258 = vmatprep.mubr.f32.mxu0 0.0
    %3259 = vmatmul.mubr.f32.gmra.mrb[0].mxu0 %v3192
    %v3260 = vpop.f32.mrb[0].mxu0
    %v3261 = vadd.f32 0.0, %v3260
    %v3262 = vpop.f32.mrb[0].mxu0
    %3263 = vdwg.mxu0
    %s3264 = scalar_lea.vmem %s9, 96
    %v3265 = vld [vmem:[%s3264] sm:$0xff]
    %v3266 = vld [vmem:[%s3264 + $0x8] sm:$0xff]
    %v3268 = vsel %vm2207, %v3261, 0
    %3270 = vmatprep.subr.mxu0 0.0
    %3271 = vmatpush1.msra.mxu0 %v3265
    %3272 = vmatprep.subr.mxu0 0.0
    %3273 = vmatpush1.msra.mxu0 %v3266
    %3274 = vmatprep.subr.mxu0 0.0
    %3275 = vmatpush1.msra.mxu0 0.0
    %3276 = vmatprep.subr.mxu0 0.0
    %3277 = vmatpush1.msra.mxu0 0.0
    %3278 = vmatprep.subr.mxu0 0.0
    %3279 = vmatpush1.msra.mxu0 0.0
    %3280 = vmatprep.subr.mxu0 0.0
    %3281 = vmatpush1.msra.mxu0 0.0
    %3282 = vmatprep.subr.mxu0 0.0
    %3283 = vmatpush1.msra.mxu0 0.0
    %3284 = vmatprep.subr.mxu0 0.0
    %3285 = vmatpush1.msra.mxu0 0.0
    %3286 = vmatprep.subr.mxu0 0.0
    %3287 = vmatpush1.msra.mxu0 0.0
    %3288 = vmatprep.subr.mxu0 0.0
    %3289 = vmatpush1.msra.mxu0 0.0
    %3290 = vmatprep.subr.mxu0 0.0
    %3291 = vmatpush1.msra.mxu0 0.0
    %3292 = vmatprep.subr.mxu0 0.0
    %3293 = vmatpush1.msra.mxu0 0.0
    %3294 = vmatprep.subr.mxu0 0.0
    %3295 = vmatpush1.msra.mxu0 0.0
    %3296 = vmatprep.subr.mxu0 0.0
    %3297 = vmatpush1.msra.mxu0 0.0
    %3298 = vmatprep.subr.mxu0 0.0
    %3299 = vmatpush1.msra.mxu0 0.0
    %3300 = vmatprep.subr.mxu0 0.0
    %3301 = vmatpush1.msra.mxu0 0.0
    %3302 = vmatprep.subr.mxu0 0.0
    %3303 = vmatpush1.msra.mxu0 0.0
    %3304 = vmatprep.subr.mxu0 0.0
    %3305 = vmatpush1.msra.mxu0 0.0
    %3306 = vmatprep.subr.mxu0 0.0
    %3307 = vmatpush1.msra.mxu0 0.0
    %3308 = vmatprep.subr.mxu0 0.0
    %3309 = vmatpush1.msra.mxu0 0.0
    %3310 = vmatprep.subr.mxu0 0.0
    %3311 = vmatpush1.msra.mxu0 0.0
    %3312 = vmatprep.subr.mxu0 0.0
    %3313 = vmatpush1.msra.mxu0 0.0
    %3314 = vmatprep.subr.mxu0 0.0
    %3315 = vmatpush1.msra.mxu0 0.0
    %3316 = vmatprep.subr.mxu0 0.0
    %3317 = vmatpush1.msra.mxu0 0.0
    %3318 = vmatprep.subr.mxu0 0.0
    %3319 = vmatpush1.msra.mxu0 0.0
    %3320 = vmatprep.subr.mxu0 0.0
    %3321 = vmatpush1.msra.mxu0 0.0
    %3322 = vmatprep.subr.mxu0 0.0
    %3323 = vmatpush1.msra.mxu0 0.0
    %3324 = vmatprep.subr.mxu0 0.0
    %3325 = vmatpush1.msra.mxu0 0.0
    %3326 = vmatprep.subr.mxu0 0.0
    %3327 = vmatpush1.msra.mxu0 0.0
    %3328 = vmatprep.subr.mxu0 0.0
    %3329 = vmatpush1.msra.mxu0 0.0
    %3330 = vmatprep.subr.mxu0 0.0
    %3331 = vmatpush1.msra.mxu0 0.0
    %3332 = vmatprep.subr.mxu0 0.0
    %3333 = vmatpush1.msra.mxu0 0.0
    %3334 = vmatprep.mubr.f32.mxu0 0.0
    %3335 = vmatmul.mubr.f32.gmra.mrb[0].mxu0 %v3268
    %v3336 = vpop.f32.mrb[0].mxu0
    %v3337 = vadd.f32 0.0, %v3336
    %v3338 = vpop.f32.mrb[0].mxu0
    %3339 = vdwg.mxu0
    %v3340 = vadd.f32 %v3188, %v3337
    %s3341 = scalar_lea.vmem %s8, 56
    %v3342 = vld [vmem:[%s3341] sm:$0xff]
    %v3344 = vsel %vm2281, %v3342, 0
    %3346 = vmatprep.subr.mxu0 0.0
    %3347 = vmatpush1.msra.mxu0 %v2276
    %3348 = vmatprep.subr.mxu0 0.0
    %3349 = vmatpush1.msra.mxu0 %v2277
    %3350 = vmatprep.subr.mxu0 0.0
    %3351 = vmatpush1.msra.mxu0 %v2278
    %3352 = vmatprep.subr.mxu0 0.0
    %3353 = vmatpush1.msra.mxu0 %v2279
    %3354 = vmatprep.subr.mxu0 0.0
    %3355 = vmatpush1.msra.mxu0 0.0
    %3356 = vmatprep.subr.mxu0 0.0
    %3357 = vmatpush1.msra.mxu0 0.0
    %3358 = vmatprep.subr.mxu0 0.0
    %3359 = vmatpush1.msra.mxu0 0.0
    %3360 = vmatprep.subr.mxu0 0.0
    %3361 = vmatpush1.msra.mxu0 0.0
    %3362 = vmatprep.subr.mxu0 0.0
    %3363 = vmatpush1.msra.mxu0 0.0
    %3364 = vmatprep.subr.mxu0 0.0
    %3365 = vmatpush1.msra.mxu0 0.0
    %3366 = vmatprep.subr.mxu0 0.0
    %3367 = vmatpush1.msra.mxu0 0.0
    %3368 = vmatprep.subr.mxu0 0.0
    %3369 = vmatpush1.msra.mxu0 0.0
    %3370 = vmatprep.subr.mxu0 0.0
    %3371 = vmatpush1.msra.mxu0 0.0
    %3372 = vmatprep.subr.mxu0 0.0
    %3373 = vmatpush1.msra.mxu0 0.0
    %3374 = vmatprep.subr.mxu0 0.0
    %3375 = vmatpush1.msra.mxu0 0.0
    %3376 = vmatprep.subr.mxu0 0.0
    %3377 = vmatpush1.msra.mxu0 0.0
    %3378 = vmatprep.subr.mxu0 0.0
    %3379 = vmatpush1.msra.mxu0 0.0
    %3380 = vmatprep.subr.mxu0 0.0
    %3381 = vmatpush1.msra.mxu0 0.0
    %3382 = vmatprep.subr.mxu0 0.0
    %3383 = vmatpush1.msra.mxu0 0.0
    %3384 = vmatprep.subr.mxu0 0.0
    %3385 = vmatpush1.msra.mxu0 0.0
    %3386 = vmatprep.subr.mxu0 0.0
    %3387 = vmatpush1.msra.mxu0 0.0
    %3388 = vmatprep.subr.mxu0 0.0
    %3389 = vmatpush1.msra.mxu0 0.0
    %3390 = vmatprep.subr.mxu0 0.0
    %3391 = vmatpush1.msra.mxu0 0.0
    %3392 = vmatprep.subr.mxu0 0.0
    %3393 = vmatpush1.msra.mxu0 0.0
    %3394 = vmatprep.subr.mxu0 0.0
    %3395 = vmatpush1.msra.mxu0 0.0
    %3396 = vmatprep.subr.mxu0 0.0
    %3397 = vmatpush1.msra.mxu0 0.0
    %3398 = vmatprep.subr.mxu0 0.0
    %3399 = vmatpush1.msra.mxu0 0.0
    %3400 = vmatprep.subr.mxu0 0.0
    %3401 = vmatpush1.msra.mxu0 0.0
    %3402 = vmatprep.subr.mxu0 0.0
    %3403 = vmatpush1.msra.mxu0 0.0
    %3404 = vmatprep.subr.mxu0 0.0
    %3405 = vmatpush1.msra.mxu0 0.0
    %3406 = vmatprep.subr.mxu0 0.0
    %3407 = vmatpush1.msra.mxu0 0.0
    %3408 = vmatprep.subr.mxu0 0.0
    %3409 = vmatpush1.msra.mxu0 0.0
    %3410 = vmatprep.mubr.f32.mxu0 0.0
    %3411 = vmatmul.mubr.f32.gmra.mrb[0].mxu0 %v3344
    %v3412 = vpop.f32.mrb[0].mxu0
    %v3413 = vadd.f32 0.0, %v3412
    %v3414 = vpop.f32.mrb[0].mxu0
    %3415 = vdwg.mxu0
    %s3416 = scalar_lea.vmem %s9, 112
    %v3417 = vld [vmem:[%s3416] sm:$0xff]
    %v3418 = vld [vmem:[%s3416 + $0x8] sm:$0xff]
    %v3420 = vsel %vm2207, %v3413, 0
    %3422 = vmatprep.subr.mxu0 0.0
    %3423 = vmatpush1.msra.mxu0 %v3417
    %3424 = vmatprep.subr.mxu0 0.0
    %3425 = vmatpush1.msra.mxu0 %v3418
    %3426 = vmatprep.subr.mxu0 0.0
    %3427 = vmatpush1.msra.mxu0 0.0
    %3428 = vmatprep.subr.mxu0 0.0
    %3429 = vmatpush1.msra.mxu0 0.0
    %3430 = vmatprep.subr.mxu0 0.0
    %3431 = vmatpush1.msra.mxu0 0.0
    %3432 = vmatprep.subr.mxu0 0.0
    %3433 = vmatpush1.msra.mxu0 0.0
    %3434 = vmatprep.subr.mxu0 0.0
    %3435 = vmatpush1.msra.mxu0 0.0
    %3436 = vmatprep.subr.mxu0 0.0
    %3437 = vmatpush1.msra.mxu0 0.0
    %3438 = vmatprep.subr.mxu0 0.0
    %3439 = vmatpush1.msra.mxu0 0.0
    %3440 = vmatprep.subr.mxu0 0.0
    %3441 = vmatpush1.msra.mxu0 0.0
    %3442 = vmatprep.subr.mxu0 0.0
    %3443 = vmatpush1.msra.mxu0 0.0
    %3444 = vmatprep.subr.mxu0 0.0
    %3445 = vmatpush1.msra.mxu0 0.0
    %3446 = vmatprep.subr.mxu0 0.0
    %3447 = vmatpush1.msra.mxu0 0.0
    %3448 = vmatprep.subr.mxu0 0.0
    %3449 = vmatpush1.msra.mxu0 0.0
    %3450 = vmatprep.subr.mxu0 0.0
    %3451 = vmatpush1.msra.mxu0 0.0
    %3452 = vmatprep.subr.mxu0 0.0
    %3453 = vmatpush1.msra.mxu0 0.0
    %3454 = vmatprep.subr.mxu0 0.0
    %3455 = vmatpush1.msra.mxu0 0.0
    %3456 = vmatprep.subr.mxu0 0.0
    %3457 = vmatpush1.msra.mxu0 0.0
    %3458 = vmatprep.subr.mxu0 0.0
    %3459 = vmatpush1.msra.mxu0 0.0
    %3460 = vmatprep.subr.mxu0 0.0
    %3461 = vmatpush1.msra.mxu0 0.0
    %3462 = vmatprep.subr.mxu0 0.0
    %3463 = vmatpush1.msra.mxu0 0.0
    %3464 = vmatprep.subr.mxu0 0.0
    %3465 = vmatpush1.msra.mxu0 0.0
    %3466 = vmatprep.subr.mxu0 0.0
    %3467 = vmatpush1.msra.mxu0 0.0
    %3468 = vmatprep.subr.mxu0 0.0
    %3469 = vmatpush1.msra.mxu0 0.0
    %3470 = vmatprep.subr.mxu0 0.0
    %3471 = vmatpush1.msra.mxu0 0.0
    %3472 = vmatprep.subr.mxu0 0.0
    %3473 = vmatpush1.msra.mxu0 0.0
    %3474 = vmatprep.subr.mxu0 0.0
    %3475 = vmatpush1.msra.mxu0 0.0
    %3476 = vmatprep.subr.mxu0 0.0
    %3477 = vmatpush1.msra.mxu0 0.0
    %3478 = vmatprep.subr.mxu0 0.0
    %3479 = vmatpush1.msra.mxu0 0.0
    %3480 = vmatprep.subr.mxu0 0.0
    %3481 = vmatpush1.msra.mxu0 0.0
    %3482 = vmatprep.subr.mxu0 0.0
    %3483 = vmatpush1.msra.mxu0 0.0
    %3484 = vmatprep.subr.mxu0 0.0
    %3485 = vmatpush1.msra.mxu0 0.0
    %3486 = vmatprep.mubr.f32.mxu0 0.0
    %3487 = vmatmul.mubr.f32.gmra.mrb[0].mxu0 %v3420
    %v3488 = vpop.f32.mrb[0].mxu0
    %v3489 = vadd.f32 0.0, %v3488
    %v3490 = vpop.f32.mrb[0].mxu0
    %3491 = vdwg.mxu0
    %v3492 = vadd.f32 %v3340, %v3489
    %s3493 = scalar_lea.vmem %s8, 64
    %v3494 = vld [vmem:[%s3493] sm:$0xff]
    %v3496 = vsel %vm2281, %v3494, 0
    %3498 = vmatprep.subr.mxu0 0.0
    %3499 = vmatpush1.msra.mxu0 %v2276
    %3500 = vmatprep.subr.mxu0 0.0
    %3501 = vmatpush1.msra.mxu0 %v2277
    %3502 = vmatprep.subr.mxu0 0.0
    %3503 = vmatpush1.msra.mxu0 %v2278
    %3504 = vmatprep.subr.mxu0 0.0
    %3505 = vmatpush1.msra.mxu0 %v2279
    %3506 = vmatprep.subr.mxu0 0.0
    %3507 = vmatpush1.msra.mxu0 0.0
    %3508 = vmatprep.subr.mxu0 0.0
    %3509 = vmatpush1.msra.mxu0 0.0
    %3510 = vmatprep.subr.mxu0 0.0
    %3511 = vmatpush1.msra.mxu0 0.0
    %3512 = vmatprep.subr.mxu0 0.0
    %3513 = vmatpush1.msra.mxu0 0.0
    %3514 = vmatprep.subr.mxu0 0.0
    %3515 = vmatpush1.msra.mxu0 0.0
    %3516 = vmatprep.subr.mxu0 0.0
    %3517 = vmatpush1.msra.mxu0 0.0
    %3518 = vmatprep.subr.mxu0 0.0
    %3519 = vmatpush1.msra.mxu0 0.0
    %3520 = vmatprep.subr.mxu0 0.0
    %3521 = vmatpush1.msra.mxu0 0.0
    %3522 = vmatprep.subr.mxu0 0.0
    %3523 = vmatpush1.msra.mxu0 0.0
    %3524 = vmatprep.subr.mxu0 0.0
    %3525 = vmatpush1.msra.mxu0 0.0
    %3526 = vmatprep.subr.mxu0 0.0
    %3527 = vmatpush1.msra.mxu0 0.0
    %3528 = vmatprep.subr.mxu0 0.0
    %3529 = vmatpush1.msra.mxu0 0.0
    %3530 = vmatprep.subr.mxu0 0.0
    %3531 = vmatpush1.msra.mxu0 0.0
    %3532 = vmatprep.subr.mxu0 0.0
    %3533 = vmatpush1.msra.mxu0 0.0
    %3534 = vmatprep.subr.mxu0 0.0
    %3535 = vmatpush1.msra.mxu0 0.0
    %3536 = vmatprep.subr.mxu0 0.0
    %3537 = vmatpush1.msra.mxu0 0.0
    %3538 = vmatprep.subr.mxu0 0.0
    %3539 = vmatpush1.msra.mxu0 0.0
    %3540 = vmatprep.subr.mxu0 0.0
    %3541 = vmatpush1.msra.mxu0 0.0
    %3542 = vmatprep.subr.mxu0 0.0
    %3543 = vmatpush1.msra.mxu0 0.0
    %3544 = vmatprep.subr.mxu0 0.0
    %3545 = vmatpush1.msra.mxu0 0.0
    %3546 = vmatprep.subr.mxu0 0.0
    %3547 = vmatpush1.msra.mxu0 0.0
    %3548 = vmatprep.subr.mxu0 0.0
    %3549 = vmatpush1.msra.mxu0 0.0
    %3550 = vmatprep.subr.mxu0 0.0
    %3551 = vmatpush1.msra.mxu0 0.0
    %3552 = vmatprep.subr.mxu0 0.0
    %3553 = vmatpush1.msra.mxu0 0.0
    %3554 = vmatprep.subr.mxu0 0.0
    %3555 = vmatpush1.msra.mxu0 0.0
    %3556 = vmatprep.subr.mxu0 0.0
    %3557 = vmatpush1.msra.mxu0 0.0
    %3558 = vmatprep.subr.mxu0 0.0
    %3559 = vmatpush1.msra.mxu0 0.0
    %3560 = vmatprep.subr.mxu0 0.0
    %3561 = vmatpush1.msra.mxu0 0.0
    %3562 = vmatprep.mubr.f32.mxu0 0.0
    %3563 = vmatmul.mubr.f32.gmra.mrb[0].mxu0 %v3496
    %v3564 = vpop.f32.mrb[0].mxu0
    %v3565 = vadd.f32 0.0, %v3564
    %v3566 = vpop.f32.mrb[0].mxu0
    %3567 = vdwg.mxu0
    %s3568 = scalar_lea.vmem %s9, 128
    %v3569 = vld [vmem:[%s3568] sm:$0xff]
    %v3570 = vld [vmem:[%s3568 + $0x8] sm:$0xff]
    %v3572 = vsel %vm2207, %v3565, 0
    %3574 = vmatprep.subr.mxu0 0.0
    %3575 = vmatpush1.msra.mxu0 %v3569
    %3576 = vmatprep.subr.mxu0 0.0
    %3577 = vmatpush1.msra.mxu0 %v3570
    %3578 = vmatprep.subr.mxu0 0.0
    %3579 = vmatpush1.msra.mxu0 0.0
    %3580 = vmatprep.subr.mxu0 0.0
    %3581 = vmatpush1.msra.mxu0 0.0
    %3582 = vmatprep.subr.mxu0 0.0
    %3583 = vmatpush1.msra.mxu0 0.0
    %3584 = vmatprep.subr.mxu0 0.0
    %3585 = vmatpush1.msra.mxu0 0.0
    %3586 = vmatprep.subr.mxu0 0.0
    %3587 = vmatpush1.msra.mxu0 0.0
    %3588 = vmatprep.subr.mxu0 0.0
    %3589 = vmatpush1.msra.mxu0 0.0
    %3590 = vmatprep.subr.mxu0 0.0
    %3591 = vmatpush1.msra.mxu0 0.0
    %3592 = vmatprep.subr.mxu0 0.0
    %3593 = vmatpush1.msra.mxu0 0.0
    %3594 = vmatprep.subr.mxu0 0.0
    %3595 = vmatpush1.msra.mxu0 0.0
    %3596 = vmatprep.subr.mxu0 0.0
    %3597 = vmatpush1.msra.mxu0 0.0
    %3598 = vmatprep.subr.mxu0 0.0
    %3599 = vmatpush1.msra.mxu0 0.0
    %3600 = vmatprep.subr.mxu0 0.0
    %3601 = vmatpush1.msra.mxu0 0.0
    %3602 = vmatprep.subr.mxu0 0.0
    %3603 = vmatpush1.msra.mxu0 0.0
    %3604 = vmatprep.subr.mxu0 0.0
    %3605 = vmatpush1.msra.mxu0 0.0
    %3606 = vmatprep.subr.mxu0 0.0
    %3607 = vmatpush1.msra.mxu0 0.0
    %3608 = vmatprep.subr.mxu0 0.0
    %3609 = vmatpush1.msra.mxu0 0.0
    %3610 = vmatprep.subr.mxu0 0.0
    %3611 = vmatpush1.msra.mxu0 0.0
    %3612 = vmatprep.subr.mxu0 0.0
    %3613 = vmatpush1.msra.mxu0 0.0
    %3614 = vmatprep.subr.mxu0 0.0
    %3615 = vmatpush1.msra.mxu0 0.0
    %3616 = vmatprep.subr.mxu0 0.0
    %3617 = vmatpush1.msra.mxu0 0.0
    %3618 = vmatprep.subr.mxu0 0.0
    %3619 = vmatpush1.msra.mxu0 0.0
    %3620 = vmatprep.subr.mxu0 0.0
    %3621 = vmatpush1.msra.mxu0 0.0
    %3622 = vmatprep.subr.mxu0 0.0
    %3623 = vmatpush1.msra.mxu0 0.0
    %3624 = vmatprep.subr.mxu0 0.0
    %3625 = vmatpush1.msra.mxu0 0.0
    %3626 = vmatprep.subr.mxu0 0.0
    %3627 = vmatpush1.msra.mxu0 0.0
    %3628 = vmatprep.subr.mxu0 0.0
    %3629 = vmatpush1.msra.mxu0 0.0
    %3630 = vmatprep.subr.mxu0 0.0
    %3631 = vmatpush1.msra.mxu0 0.0
    %3632 = vmatprep.subr.mxu0 0.0
    %3633 = vmatpush1.msra.mxu0 0.0
    %3634 = vmatprep.subr.mxu0 0.0
    %3635 = vmatpush1.msra.mxu0 0.0
    %3636 = vmatprep.subr.mxu0 0.0
    %3637 = vmatpush1.msra.mxu0 0.0
    %3638 = vmatprep.mubr.f32.mxu0 0.0
    %3639 = vmatmul.mubr.f32.gmra.mrb[0].mxu0 %v3572
    %v3640 = vpop.f32.mrb[0].mxu0
    %v3641 = vadd.f32 0.0, %v3640
    %v3642 = vpop.f32.mrb[0].mxu0
    %3643 = vdwg.mxu0
    %v3644 = vadd.f32 %v3492, %v3641
    %v3645 = vld [vmem:[%s10] sm:$0x1]
    %v3646 = vld [vmem:[%s11] sm:$0x1]
    %v3647 = vsel %vm2281, %v3644, 0.0
    %v3648 = vrot.slane %v3647, 4
    %v3649 = vadd.f32 %v3647, %v3648
    %v3650 = vrot.slane %v3649, 2
    %v3651 = vadd.f32 %v3649, %v3650
    %v3652 = vrot.slane %v3651, 1
    %v3653 = vadd.f32 %v3651, %v3652
    %v3654 = vrcp.pop 8.0
    %v3655 = vmul.f32 %v3653, %v3654
    %v3656 = vmul.f32 %v3644, %v3644
    %v3657 = vsel %vm2281, %v3656, 0.0
    %v3658 = vrot.slane %v3657, 4
    %v3659 = vadd.f32 %v3657, %v3658
    %v3660 = vrot.slane %v3659, 2
    %v3661 = vadd.f32 %v3659, %v3660
    %v3662 = vrot.slane %v3661, 1
    %v3663 = vadd.f32 %v3661, %v3662
    %v3664 = vmul.f32 %v3663, %v3654
    %v3665 = vmul.f32 %v3655, %v3655
    %v3666 = vsub.f32 %v3664, %v3665
    %v3667 = vadd.f32 %v3666, 1e-05
    %v3668 = vrsqrt.pop %v3667
    %v3669 = vmul.f32 %v3645, %v3668
    %v3671 = vlaneseq
    %v3672 = vshrl.u32 %v3671, 7
    %v3673 = vsub.s32 0, %v3672
    %v3674 = vrot.slane %v3669, %v3673
    %v3676 = vmul.f32 %v3644, %v3674
    %v3677 = vmul.f32 %v3655, %v3669
    %v3678 = vsub.f32 %v3646, %v3677
    %v3680 = vlaneseq
    %v3681 = vshrl.u32 %v3680, 7
    %v3682 = vsub.s32 0, %v3681
    %v3683 = vrot.slane %v3678, %v3682
    %v3685 = vadd.f32 %v3676, %v3683
    %vm3686 = vcmp.gt.f32.partialorder %v3685, 0.0
    %v3687 = vmul.f32 %v3685, 0.01
    %v3688 = vsel %vm3686, %v3685, %v3687
    %v3689 = vld [vmem:[%s12] sm:$0x3]
    %v3691 = vsel %vm285, %v3689, 0
    %3693 = vmatprep.subr.mxu0 0.0
    %3694 = vmatpush1.msra.mxu0 %v3688
    %3695 = vmatprep.subr.mxu0 0.0
    %3696 = vmatpush1.msra.mxu0 0.0
    %3697 = vmatprep.subr.mxu0 0.0
    %3698 = vmatpush1.msra.mxu0 0.0
    %3699 = vmatprep.subr.mxu0 0.0
    %3700 = vmatpush1.msra.mxu0 0.0
    %3701 = vmatprep.subr.mxu0 0.0
    %3702 = vmatpush1.msra.mxu0 0.0
    %3703 = vmatprep.subr.mxu0 0.0
    %3704 = vmatpush1.msra.mxu0 0.0
    %3705 = vmatprep.subr.mxu0 0.0
    %3706 = vmatpush1.msra.mxu0 0.0
    %3707 = vmatprep.subr.mxu0 0.0
    %3708 = vmatpush1.msra.mxu0 0.0
    %3709 = vmatprep.subr.mxu0 0.0
    %3710 = vmatpush1.msra.mxu0 0.0
    %3711 = vmatprep.subr.mxu0 0.0
    %3712 = vmatpush1.msra.mxu0 0.0
    %3713 = vmatprep.subr.mxu0 0.0
    %3714 = vmatpush1.msra.mxu0 0.0
    %3715 = vmatprep.subr.mxu0 0.0
    %3716 = vmatpush1.msra.mxu0 0.0
    %3717 = vmatprep.subr.mxu0 0.0
    %3718 = vmatpush1.msra.mxu0 0.0
    %3719 = vmatprep.subr.mxu0 0.0
    %3720 = vmatpush1.msra.mxu0 0.0
    %3721 = vmatprep.subr.mxu0 0.0
    %3722 = vmatpush1.msra.mxu0 0.0
    %3723 = vmatprep.subr.mxu0 0.0
    %3724 = vmatpush1.msra.mxu0 0.0
    %3725 = vmatprep.subr.mxu0 0.0
    %3726 = vmatpush1.msra.mxu0 0.0
    %3727 = vmatprep.subr.mxu0 0.0
    %3728 = vmatpush1.msra.mxu0 0.0
    %3729 = vmatprep.subr.mxu0 0.0
    %3730 = vmatpush1.msra.mxu0 0.0
    %3731 = vmatprep.subr.mxu0 0.0
    %3732 = vmatpush1.msra.mxu0 0.0
    %3733 = vmatprep.subr.mxu0 0.0
    %3734 = vmatpush1.msra.mxu0 0.0
    %3735 = vmatprep.subr.mxu0 0.0
    %3736 = vmatpush1.msra.mxu0 0.0
    %3737 = vmatprep.subr.mxu0 0.0
    %3738 = vmatpush1.msra.mxu0 0.0
    %3739 = vmatprep.subr.mxu0 0.0
    %3740 = vmatpush1.msra.mxu0 0.0
    %3741 = vmatprep.subr.mxu0 0.0
    %3742 = vmatpush1.msra.mxu0 0.0
    %3743 = vmatprep.subr.mxu0 0.0
    %3744 = vmatpush1.msra.mxu0 0.0
    %3745 = vmatprep.subr.mxu0 0.0
    %3746 = vmatpush1.msra.mxu0 0.0
    %3747 = vmatprep.subr.mxu0 0.0
    %3748 = vmatpush1.msra.mxu0 0.0
    %3749 = vmatprep.subr.mxu0 0.0
    %3750 = vmatpush1.msra.mxu0 0.0
    %3751 = vmatprep.subr.mxu0 0.0
    %3752 = vmatpush1.msra.mxu0 0.0
    %3753 = vmatprep.subr.mxu0 0.0
    %3754 = vmatpush1.msra.mxu0 0.0
    %3755 = vmatprep.subr.mxu0 0.0
    %3756 = vmatpush1.msra.mxu0 0.0
    %3757 = vmatprep.mubr.f32.mxu0 0.0
    %3758 = vmatmul.mubr.f32.gmra.mrb[0].mxu0 %v3691
    %v3759 = vpop.f32.mrb[0].mxu0
    %v3760 = vadd.f32 0.0, %v3759
    %v3761 = vpop.f32.mrb[0].mxu0
    %3762 = vdwg.mxu0
    %v3763 = vld [vmem:[%s13] sm:$0xff]
    %v3764 = vld [vmem:[%s13 + $0x8] sm:$0xff]
    %v3765 = vld [vmem:[%s13 + $0x10] sm:$0xff]
    %v3766 = vld [vmem:[%s13 + $0x18] sm:$0xff]
    %v3767 = vld [vmem:[%s14] sm:$0xff]
    %v3768 = vld [vmem:[%s14 + $0x8] sm:$0xff]
    %v3769 = vld [vmem:[%s14 + $0x10] sm:$0xff]
    %v3770 = vld [vmem:[%s14 + $0x18] sm:$0xff]
    %s3771 = scalar_lea.vmem %s12, 2
    %v3772 = vld [vmem:[%s3771] sm:$0x3]
    %v3774 = vsel %vm285, %v3772, 0
    %3776 = vmatprep.subr.mxu0 0.0
    %3777 = vmatpush1.msra.mxu0 %v3688
    %3778 = vmatprep.subr.mxu0 0.0
    %3779 = vmatpush1.msra.mxu0 0.0
    %3780 = vmatprep.subr.mxu0 0.0
    %3781 = vmatpush1.msra.mxu0 0.0
    %3782 = vmatprep.subr.mxu0 0.0
    %3783 = vmatpush1.msra.mxu0 0.0
    %3784 = vmatprep.subr.mxu0 0.0
    %3785 = vmatpush1.msra.mxu0 0.0
    %3786 = vmatprep.subr.mxu0 0.0
    %3787 = vmatpush1.msra.mxu0 0.0
    %3788 = vmatprep.subr.mxu0 0.0
    %3789 = vmatpush1.msra.mxu0 0.0
    %3790 = vmatprep.subr.mxu0 0.0
    %3791 = vmatpush1.msra.mxu0 0.0
    %3792 = vmatprep.subr.mxu0 0.0
    %3793 = vmatpush1.msra.mxu0 0.0
    %3794 = vmatprep.subr.mxu0 0.0
    %3795 = vmatpush1.msra.mxu0 0.0
    %3796 = vmatprep.subr.mxu0 0.0
    %3797 = vmatpush1.msra.mxu0 0.0
    %3798 = vmatprep.subr.mxu0 0.0
    %3799 = vmatpush1.msra.mxu0 0.0
    %3800 = vmatprep.subr.mxu0 0.0
    %3801 = vmatpush1.msra.mxu0 0.0
    %3802 = vmatprep.subr.mxu0 0.0
    %3803 = vmatpush1.msra.mxu0 0.0
    %3804 = vmatprep.subr.mxu0 0.0
    %3805 = vmatpush1.msra.mxu0 0.0
    %3806 = vmatprep.subr.mxu0 0.0
    %3807 = vmatpush1.msra.mxu0 0.0
    %3808 = vmatprep.subr.mxu0 0.0
    %3809 = vmatpush1.msra.mxu0 0.0
    %3810 = vmatprep.subr.mxu0 0.0
    %3811 = vmatpush1.msra.mxu0 0.0
    %3812 = vmatprep.subr.mxu0 0.0
    %3813 = vmatpush1.msra.mxu0 0.0
    %3814 = vmatprep.subr.mxu0 0.0
    %3815 = vmatpush1.msra.mxu0 0.0
    %3816 = vmatprep.subr.mxu0 0.0
    %3817 = vmatpush1.msra.mxu0 0.0
    %3818 = vmatprep.subr.mxu0 0.0
    %3819 = vmatpush1.msra.mxu0 0.0
    %3820 = vmatprep.subr.mxu0 0.0
    %3821 = vmatpush1.msra.mxu0 0.0
    %3822 = vmatprep.subr.mxu0 0.0
    %3823 = vmatpush1.msra.mxu0 0.0
    %3824 = vmatprep.subr.mxu0 0.0
    %3825 = vmatpush1.msra.mxu0 0.0
    %3826 = vmatprep.subr.mxu0 0.0
    %3827 = vmatpush1.msra.mxu0 0.0
    %3828 = vmatprep.subr.mxu0 0.0
    %3829 = vmatpush1.msra.mxu0 0.0
    %3830 = vmatprep.subr.mxu0 0.0
    %3831 = vmatpush1.msra.mxu0 0.0
    %3832 = vmatprep.subr.mxu0 0.0
    %3833 = vmatpush1.msra.mxu0 0.0
    %3834 = vmatprep.subr.mxu0 0.0
    %3835 = vmatpush1.msra.mxu0 0.0
    %3836 = vmatprep.subr.mxu0 0.0
    %3837 = vmatpush1.msra.mxu0 0.0
    %3838 = vmatprep.subr.mxu0 0.0
    %3839 = vmatpush1.msra.mxu0 0.0
    %3840 = vmatprep.mubr.f32.mxu0 0.0
    %3841 = vmatmul.mubr.f32.gmra.mrb[0].mxu0 %v3774
    %v3842 = vpop.f32.mrb[0].mxu0
    %v3843 = vadd.f32 0.0, %v3842
    %v3844 = vpop.f32.mrb[0].mxu0
    %3845 = vdwg.mxu0
    %s3846 = scalar_lea.vmem %s13, 32
    %v3847 = vld [vmem:[%s3846] sm:$0xff]
    %v3848 = vld [vmem:[%s3846 + $0x8] sm:$0xff]
    %v3849 = vld [vmem:[%s3846 + $0x10] sm:$0xff]
    %v3850 = vld [vmem:[%s3846 + $0x18] sm:$0xff]
    %v3852 = vsel %vm2281, %v3843, 0
    %3854 = vmatprep.subr.mxu0 0.0
    %3855 = vmatpush1.msra.mxu0 %v3847
    %3856 = vmatprep.subr.mxu0 0.0
    %3857 = vmatpush1.msra.mxu0 %v3848
    %3858 = vmatprep.subr.mxu0 0.0
    %3859 = vmatpush1.msra.mxu0 %v3849
    %3860 = vmatprep.subr.mxu0 0.0
    %3861 = vmatpush1.msra.mxu0 %v3850
    %3862 = vmatprep.subr.mxu0 0.0
    %3863 = vmatpush1.msra.mxu0 0.0
    %3864 = vmatprep.subr.mxu0 0.0
    %3865 = vmatpush1.msra.mxu0 0.0
    %3866 = vmatprep.subr.mxu0 0.0
    %3867 = vmatpush1.msra.mxu0 0.0
    %3868 = vmatprep.subr.mxu0 0.0
    %3869 = vmatpush1.msra.mxu0 0.0
    %3870 = vmatprep.subr.mxu0 0.0
    %3871 = vmatpush1.msra.mxu0 0.0
    %3872 = vmatprep.subr.mxu0 0.0
    %3873 = vmatpush1.msra.mxu0 0.0
    %3874 = vmatprep.subr.mxu0 0.0
    %3875 = vmatpush1.msra.mxu0 0.0
    %3876 = vmatprep.subr.mxu0 0.0
    %3877 = vmatpush1.msra.mxu0 0.0
    %3878 = vmatprep.subr.mxu0 0.0
    %3879 = vmatpush1.msra.mxu0 0.0
    %3880 = vmatprep.subr.mxu0 0.0
    %3881 = vmatpush1.msra.mxu0 0.0
    %3882 = vmatprep.subr.mxu0 0.0
    %3883 = vmatpush1.msra.mxu0 0.0
    %3884 = vmatprep.subr.mxu0 0.0
    %3885 = vmatpush1.msra.mxu0 0.0
    %3886 = vmatprep.subr.mxu0 0.0
    %3887 = vmatpush1.msra.mxu0 0.0
    %3888 = vmatprep.subr.mxu0 0.0
    %3889 = vmatpush1.msra.mxu0 0.0
    %3890 = vmatprep.subr.mxu0 0.0
    %3891 = vmatpush1.msra.mxu0 0.0
    %3892 = vmatprep.subr.mxu0 0.0
    %3893 = vmatpush1.msra.mxu0 0.0
    %3894 = vmatprep.subr.mxu0 0.0
    %3895 = vmatpush1.msra.mxu0 0.0
    %3896 = vmatprep.subr.mxu0 0.0
    %3897 = vmatpush1.msra.mxu0 0.0
    %3898 = vmatprep.subr.mxu0 0.0
    %3899 = vmatpush1.msra.mxu0 0.0
    %3900 = vmatprep.subr.mxu0 0.0
    %3901 = vmatpush1.msra.mxu0 0.0
    %3902 = vmatprep.subr.mxu0 0.0
    %3903 = vmatpush1.msra.mxu0 0.0
    %3904 = vmatprep.subr.mxu0 0.0
    %3905 = vmatpush1.msra.mxu0 0.0
    %3906 = vmatprep.subr.mxu0 0.0
    %3907 = vmatpush1.msra.mxu0 0.0
    %3908 = vmatprep.subr.mxu0 0.0
    %3909 = vmatpush1.msra.mxu0 0.0
    %3910 = vmatprep.subr.mxu0 0.0
    %3911 = vmatpush1.msra.mxu0 0.0
    %3912 = vmatprep.subr.mxu0 0.0
    %3913 = vmatpush1.msra.mxu0 0.0
    %3914 = vmatprep.subr.mxu0 0.0
    %3915 = vmatpush1.msra.mxu0 0.0
    %3916 = vmatprep.subr.mxu0 0.0
    %3917 = vmatpush1.msra.mxu0 0.0
    %3918 = vmatprep.mubr.f32.mxu0 0.0
    %3919 = vmatmul.mubr.f32.gmra.mrb[0].mxu0 %v3852
    %v3920 = vpop.f32.mrb[0].mxu0
    %v3921 = vadd.f32 0.0, %v3920
    %v3922 = vpop.f32.mrb[0].mxu0
    %3923 = vdwg.mxu0
    %s3924 = scalar_lea.vmem %s14, 32
    %v3925 = vld [vmem:[%s3924] sm:$0xff]
    %v3926 = vld [vmem:[%s3924 + $0x8] sm:$0xff]
    %v3927 = vld [vmem:[%s3924 + $0x10] sm:$0xff]
    %v3928 = vld [vmem:[%s3924 + $0x18] sm:$0xff]
    %3929 = vmatprep.subr.mxu0 0.0
    %3930 = vmatpush1.msra.mxu0 %v3925
    %3931 = vmatprep.subr.mxu0 0.0
    %3932 = vmatpush1.msra.mxu0 %v3926
    %3933 = vmatprep.subr.mxu0 0.0
    %3934 = vmatpush1.msra.mxu0 %v3927
    %3935 = vmatprep.subr.mxu0 0.0
    %3936 = vmatpush1.msra.mxu0 %v3928
    %3937 = vmatprep.subr.mxu0 0.0
    %3938 = vmatpush1.msra.mxu0 0.0
    %3939 = vmatprep.subr.mxu0 0.0
    %3940 = vmatpush1.msra.mxu0 0.0
    %3941 = vmatprep.subr.mxu0 0.0
    %3942 = vmatpush1.msra.mxu0 0.0
    %3943 = vmatprep.subr.mxu0 0.0
    %3944 = vmatpush1.msra.mxu0 0.0
    %3945 = vmatprep.subr.mxu0 0.0
    %3946 = vmatpush1.msra.mxu0 0.0
    %3947 = vmatprep.subr.mxu0 0.0
    %3948 = vmatpush1.msra.mxu0 0.0
    %3949 = vmatprep.subr.mxu0 0.0
    %3950 = vmatpush1.msra.mxu0 0.0
    %3951 = vmatprep.subr.mxu0 0.0
    %3952 = vmatpush1.msra.mxu0 0.0
    %3953 = vmatprep.subr.mxu0 0.0
    %3954 = vmatpush1.msra.mxu0 0.0
    %3955 = vmatprep.subr.mxu0 0.0
    %3956 = vmatpush1.msra.mxu0 0.0
    %3957 = vmatprep.subr.mxu0 0.0
    %3958 = vmatpush1.msra.mxu0 0.0
    %3959 = vmatprep.subr.mxu0 0.0
    %3960 = vmatpush1.msra.mxu0 0.0
    %3961 = vmatprep.subr.mxu0 0.0
    %3962 = vmatpush1.msra.mxu0 0.0
    %3963 = vmatprep.subr.mxu0 0.0
    %3964 = vmatpush1.msra.mxu0 0.0
    %3965 = vmatprep.subr.mxu0 0.0
    %3966 = vmatpush1.msra.mxu0 0.0
    %3967 = vmatprep.subr.mxu0 0.0
    %3968 = vmatpush1.msra.mxu0 0.0
    %3969 = vmatprep.subr.mxu0 0.0
    %3970 = vmatpush1.msra.mxu0 0.0
    %3971 = vmatprep.subr.mxu0 0.0
    %3972 = vmatpush1.msra.mxu0 0.0
    %3973 = vmatprep.subr.mxu0 0.0
    %3974 = vmatpush1.msra.mxu0 0.0
    %3975 = vmatprep.subr.mxu0 0.0
    %3976 = vmatpush1.msra.mxu0 0.0
    %3977 = vmatprep.subr.mxu0 0.0
    %3978 = vmatpush1.msra.mxu0 0.0
    %3979 = vmatprep.subr.mxu0 0.0
    %3980 = vmatpush1.msra.mxu0 0.0
    %3981 = vmatprep.subr.mxu0 0.0
    %3982 = vmatpush1.msra.mxu0 0.0
    %3983 = vmatprep.subr.mxu0 0.0
    %3984 = vmatpush1.msra.mxu0 0.0
    %3985 = vmatprep.subr.mxu0 0.0
    %3986 = vmatpush1.msra.mxu0 0.0
    %3987 = vmatprep.subr.mxu0 0.0
    %3988 = vmatpush1.msra.mxu0 0.0
    %3989 = vmatprep.subr.mxu0 0.0
    %3990 = vmatpush1.msra.mxu0 0.0
    %3991 = vmatprep.subr.mxu0 0.0
    %3992 = vmatpush1.msra.mxu0 0.0
    %3993 = vmatprep.mubr.f32.mxu0 0.0
    %3994 = vmatmul.mubr.f32.gmra.mrb[0].mxu0 %v3852
    %v3995 = vpop.f32.mrb[0].mxu0
    %v3996 = vadd.f32 0.0, %v3995
    %v3997 = vpop.f32.mrb[0].mxu0
    %3998 = vdwg.mxu0
    %v4000 = vsel %vm2281, %v3760, 0
    %4002 = vmatprep.subr.mxu0 0.0
    %4003 = vmatpush1.msra.mxu0 %v3763
    %4004 = vmatprep.subr.mxu0 0.0
    %4005 = vmatpush1.msra.mxu0 %v3764
    %4006 = vmatprep.subr.mxu0 0.0
    %4007 = vmatpush1.msra.mxu0 %v3765
    %4008 = vmatprep.subr.mxu0 0.0
    %4009 = vmatpush1.msra.mxu0 %v3766
    %4010 = vmatprep.subr.mxu0 0.0
    %4011 = vmatpush1.msra.mxu0 0.0
    %4012 = vmatprep.subr.mxu0 0.0
    %4013 = vmatpush1.msra.mxu0 0.0
    %4014 = vmatprep.subr.mxu0 0.0
    %4015 = vmatpush1.msra.mxu0 0.0
    %4016 = vmatprep.subr.mxu0 0.0
    %4017 = vmatpush1.msra.mxu0 0.0
    %4018 = vmatprep.subr.mxu0 0.0
    %4019 = vmatpush1.msra.mxu0 0.0
    %4020 = vmatprep.subr.mxu0 0.0
    %4021 = vmatpush1.msra.mxu0 0.0
    %4022 = vmatprep.subr.mxu0 0.0
    %4023 = vmatpush1.msra.mxu0 0.0
    %4024 = vmatprep.subr.mxu0 0.0
    %4025 = vmatpush1.msra.mxu0 0.0
    %4026 = vmatprep.subr.mxu0 0.0
    %4027 = vmatpush1.msra.mxu0 0.0
    %4028 = vmatprep.subr.mxu0 0.0
    %4029 = vmatpush1.msra.mxu0 0.0
    %4030 = vmatprep.subr.mxu0 0.0
    %4031 = vmatpush1.msra.mxu0 0.0
    %4032 = vmatprep.subr.mxu0 0.0
    %4033 = vmatpush1.msra.mxu0 0.0
    %4034 = vmatprep.subr.mxu0 0.0
    %4035 = vmatpush1.msra.mxu0 0.0
    %4036 = vmatprep.subr.mxu0 0.0
    %4037 = vmatpush1.msra.mxu0 0.0
    %4038 = vmatprep.subr.mxu0 0.0
    %4039 = vmatpush1.msra.mxu0 0.0
    %4040 = vmatprep.subr.mxu0 0.0
    %4041 = vmatpush1.msra.mxu0 0.0
    %4042 = vmatprep.subr.mxu0 0.0
    %4043 = vmatpush1.msra.mxu0 0.0
    %4044 = vmatprep.subr.mxu0 0.0
    %4045 = vmatpush1.msra.mxu0 0.0
    %4046 = vmatprep.subr.mxu0 0.0
    %4047 = vmatpush1.msra.mxu0 0.0
    %4048 = vmatprep.subr.mxu0 0.0
    %4049 = vmatpush1.msra.mxu0 0.0
    %4050 = vmatprep.subr.mxu0 0.0
    %4051 = vmatpush1.msra.mxu0 0.0
    %4052 = vmatprep.subr.mxu0 0.0
    %4053 = vmatpush1.msra.mxu0 0.0
    %4054 = vmatprep.subr.mxu0 0.0
    %4055 = vmatpush1.msra.mxu0 0.0
    %4056 = vmatprep.subr.mxu0 0.0
    %4057 = vmatpush1.msra.mxu0 0.0
    %4058 = vmatprep.subr.mxu0 0.0
    %4059 = vmatpush1.msra.mxu0 0.0
    %4060 = vmatprep.subr.mxu0 0.0
    %4061 = vmatpush1.msra.mxu0 0.0
    %4062 = vmatprep.subr.mxu0 0.0
    %4063 = vmatpush1.msra.mxu0 0.0
    %4064 = vmatprep.subr.mxu0 0.0
    %4065 = vmatpush1.msra.mxu0 0.0
    %4066 = vmatprep.mubr.f32.mxu0 0.0
    %4067 = vmatmul.mubr.f32.gmra.mrb[0].mxu0 %v4000
    %v4068 = vpop.f32.mrb[0].mxu0
    %v4069 = vadd.f32 %v3921, %v4068
    %v4070 = vpop.f32.mrb[0].mxu0
    %4071 = vdwg.mxu0
    %4072 = vmatprep.subr.mxu0 0.0
    %4073 = vmatpush1.msra.mxu0 %v3767
    %4074 = vmatprep.subr.mxu0 0.0
    %4075 = vmatpush1.msra.mxu0 %v3768
    %4076 = vmatprep.subr.mxu0 0.0
    %4077 = vmatpush1.msra.mxu0 %v3769
    %4078 = vmatprep.subr.mxu0 0.0
    %4079 = vmatpush1.msra.mxu0 %v3770
    %4080 = vmatprep.subr.mxu0 0.0
    %4081 = vmatpush1.msra.mxu0 0.0
    %4082 = vmatprep.subr.mxu0 0.0
    %4083 = vmatpush1.msra.mxu0 0.0
    %4084 = vmatprep.subr.mxu0 0.0
    %4085 = vmatpush1.msra.mxu0 0.0
    %4086 = vmatprep.subr.mxu0 0.0
    %4087 = vmatpush1.msra.mxu0 0.0
    %4088 = vmatprep.subr.mxu0 0.0
    %4089 = vmatpush1.msra.mxu0 0.0
    %4090 = vmatprep.subr.mxu0 0.0
    %4091 = vmatpush1.msra.mxu0 0.0
    %4092 = vmatprep.subr.mxu0 0.0
    %4093 = vmatpush1.msra.mxu0 0.0
    %4094 = vmatprep.subr.mxu0 0.0
    %4095 = vmatpush1.msra.mxu0 0.0
    %4096 = vmatprep.subr.mxu0 0.0
    %4097 = vmatpush1.msra.mxu0 0.0
    %4098 = vmatprep.subr.mxu0 0.0
    %4099 = vmatpush1.msra.mxu0 0.0
    %4100 = vmatprep.subr.mxu0 0.0
    %4101 = vmatpush1.msra.mxu0 0.0
    %4102 = vmatprep.subr.mxu0 0.0
    %4103 = vmatpush1.msra.mxu0 0.0
    %4104 = vmatprep.subr.mxu0 0.0
    %4105 = vmatpush1.msra.mxu0 0.0
    %4106 = vmatprep.subr.mxu0 0.0
    %4107 = vmatpush1.msra.mxu0 0.0
    %4108 = vmatprep.subr.mxu0 0.0
    %4109 = vmatpush1.msra.mxu0 0.0
    %4110 = vmatprep.subr.mxu0 0.0
    %4111 = vmatpush1.msra.mxu0 0.0
    %4112 = vmatprep.subr.mxu0 0.0
    %4113 = vmatpush1.msra.mxu0 0.0
    %4114 = vmatprep.subr.mxu0 0.0
    %4115 = vmatpush1.msra.mxu0 0.0
    %4116 = vmatprep.subr.mxu0 0.0
    %4117 = vmatpush1.msra.mxu0 0.0
    %4118 = vmatprep.subr.mxu0 0.0
    %4119 = vmatpush1.msra.mxu0 0.0
    %4120 = vmatprep.subr.mxu0 0.0
    %4121 = vmatpush1.msra.mxu0 0.0
    %4122 = vmatprep.subr.mxu0 0.0
    %4123 = vmatpush1.msra.mxu0 0.0
    %4124 = vmatprep.subr.mxu0 0.0
    %4125 = vmatpush1.msra.mxu0 0.0
    %4126 = vmatprep.subr.mxu0 0.0
    %4127 = vmatpush1.msra.mxu0 0.0
    %4128 = vmatprep.subr.mxu0 0.0
    %4129 = vmatpush1.msra.mxu0 0.0
    %4130 = vmatprep.subr.mxu0 0.0
    %4131 = vmatpush1.msra.mxu0 0.0
    %4132 = vmatprep.subr.mxu0 0.0
    %4133 = vmatpush1.msra.mxu0 0.0
    %4134 = vmatprep.subr.mxu0 0.0
    %4135 = vmatpush1.msra.mxu0 0.0
    %4136 = vmatprep.mubr.f32.mxu0 0.0
    %4137 = vmatmul.mubr.f32.gmra.mrb[0].mxu0 %v4000
    %v4138 = vpop.f32.mrb[0].mxu0
    %v4139 = vadd.f32 %v3996, %v4138
    %v4140 = vpop.f32.mrb[0].mxu0
    %4141 = vdwg.mxu0
    %s4142 = scalar_lea.vmem %s12, 4
    %v4143 = vld [vmem:[%s4142] sm:$0x3]
    %v4145 = vsel %vm285, %v4143, 0
    %4147 = vmatprep.subr.mxu0 0.0
    %4148 = vmatpush1.msra.mxu0 %v3688
    %4149 = vmatprep.subr.mxu0 0.0
    %4150 = vmatpush1.msra.mxu0 0.0
    %4151 = vmatprep.subr.mxu0 0.0
    %4152 = vmatpush1.msra.mxu0 0.0
    %4153 = vmatprep.subr.mxu0 0.0
    %4154 = vmatpush1.msra.mxu0 0.0
    %4155 = vmatprep.subr.mxu0 0.0
    %4156 = vmatpush1.msra.mxu0 0.0
    %4157 = vmatprep.subr.mxu0 0.0
    %4158 = vmatpush1.msra.mxu0 0.0
    %4159 = vmatprep.subr.mxu0 0.0
    %4160 = vmatpush1.msra.mxu0 0.0
    %4161 = vmatprep.subr.mxu0 0.0
    %4162 = vmatpush1.msra.mxu0 0.0
    %4163 = vmatprep.subr.mxu0 0.0
    %4164 = vmatpush1.msra.mxu0 0.0
    %4165 = vmatprep.subr.mxu0 0.0
    %4166 = vmatpush1.msra.mxu0 0.0
    %4167 = vmatprep.subr.mxu0 0.0
    %4168 = vmatpush1.msra.mxu0 0.0
    %4169 = vmatprep.subr.mxu0 0.0
    %4170 = vmatpush1.msra.mxu0 0.0
    %4171 = vmatprep.subr.mxu0 0.0
    %4172 = vmatpush1.msra.mxu0 0.0
    %4173 = vmatprep.subr.mxu0 0.0
    %4174 = vmatpush1.msra.mxu0 0.0
    %4175 = vmatprep.subr.mxu0 0.0
    %4176 = vmatpush1.msra.mxu0 0.0
    %4177 = vmatprep.subr.mxu0 0.0
    %4178 = vmatpush1.msra.mxu0 0.0
    %4179 = vmatprep.subr.mxu0 0.0
    %4180 = vmatpush1.msra.mxu0 0.0
    %4181 = vmatprep.subr.mxu0 0.0
    %4182 = vmatpush1.msra.mxu0 0.0
    %4183 = vmatprep.subr.mxu0 0.0
    %4184 = vmatpush1.msra.mxu0 0.0
    %4185 = vmatprep.subr.mxu0 0.0
    %4186 = vmatpush1.msra.mxu0 0.0
    %4187 = vmatprep.subr.mxu0 0.0
    %4188 = vmatpush1.msra.mxu0 0.0
    %4189 = vmatprep.subr.mxu0 0.0
    %4190 = vmatpush1.msra.mxu0 0.0
    %4191 = vmatprep.subr.mxu0 0.0
    %4192 = vmatpush1.msra.mxu0 0.0
    %4193 = vmatprep.subr.mxu0 0.0
    %4194 = vmatpush1.msra.mxu0 0.0
    %4195 = vmatprep.subr.mxu0 0.0
    %4196 = vmatpush1.msra.mxu0 0.0
    %4197 = vmatprep.subr.mxu0 0.0
    %4198 = vmatpush1.msra.mxu0 0.0
    %4199 = vmatprep.subr.mxu0 0.0
    %4200 = vmatpush1.msra.mxu0 0.0
    %4201 = vmatprep.subr.mxu0 0.0
    %4202 = vmatpush1.msra.mxu0 0.0
    %4203 = vmatprep.subr.mxu0 0.0
    %4204 = vmatpush1.msra.mxu0 0.0
    %4205 = vmatprep.subr.mxu0 0.0
    %4206 = vmatpush1.msra.mxu0 0.0
    %4207 = vmatprep.subr.mxu0 0.0
    %4208 = vmatpush1.msra.mxu0 0.0
    %4209 = vmatprep.subr.mxu0 0.0
    %4210 = vmatpush1.msra.mxu0 0.0
    %4211 = vmatprep.mubr.f32.mxu0 0.0
    %4212 = vmatmul.mubr.f32.gmra.mrb[0].mxu0 %v4145
    %v4213 = vpop.f32.mrb[0].mxu0
    %v4214 = vadd.f32 0.0, %v4213
    %v4215 = vpop.f32.mrb[0].mxu0
    %4216 = vdwg.mxu0
    %s4217 = scalar_lea.vmem %s13, 64
    %v4218 = vld [vmem:[%s4217] sm:$0xff]
    %v4219 = vld [vmem:[%s4217 + $0x8] sm:$0xff]
    %v4220 = vld [vmem:[%s4217 + $0x10] sm:$0xff]
    %v4221 = vld [vmem:[%s4217 + $0x18] sm:$0xff]
    %v4223 = vsel %vm2281, %v4214, 0
    %4225 = vmatprep.subr.mxu0 0.0
    %4226 = vmatpush1.msra.mxu0 %v4218
    %4227 = vmatprep.subr.mxu0 0.0
    %4228 = vmatpush1.msra.mxu0 %v4219
    %4229 = vmatprep.subr.mxu0 0.0
    %4230 = vmatpush1.msra.mxu0 %v4220
    %4231 = vmatprep.subr.mxu0 0.0
    %4232 = vmatpush1.msra.mxu0 %v4221
    %4233 = vmatprep.subr.mxu0 0.0
    %4234 = vmatpush1.msra.mxu0 0.0
    %4235 = vmatprep.subr.mxu0 0.0
    %4236 = vmatpush1.msra.mxu0 0.0
    %4237 = vmatprep.subr.mxu0 0.0
    %4238 = vmatpush1.msra.mxu0 0.0
    %4239 = vmatprep.subr.mxu0 0.0
    %4240 = vmatpush1.msra.mxu0 0.0
    %4241 = vmatprep.subr.mxu0 0.0
    %4242 = vmatpush1.msra.mxu0 0.0
    %4243 = vmatprep.subr.mxu0 0.0
    %4244 = vmatpush1.msra.mxu0 0.0
    %4245 = vmatprep.subr.mxu0 0.0
    %4246 = vmatpush1.msra.mxu0 0.0
    %4247 = vmatprep.subr.mxu0 0.0
    %4248 = vmatpush1.msra.mxu0 0.0
    %4249 = vmatprep.subr.mxu0 0.0
    %4250 = vmatpush1.msra.mxu0 0.0
    %4251 = vmatprep.subr.mxu0 0.0
    %4252 = vmatpush1.msra.mxu0 0.0
    %4253 = vmatprep.subr.mxu0 0.0
    %4254 = vmatpush1.msra.mxu0 0.0
    %4255 = vmatprep.subr.mxu0 0.0
    %4256 = vmatpush1.msra.mxu0 0.0
    %4257 = vmatprep.subr.mxu0 0.0
    %4258 = vmatpush1.msra.mxu0 0.0
    %4259 = vmatprep.subr.mxu0 0.0
    %4260 = vmatpush1.msra.mxu0 0.0
    %4261 = vmatprep.subr.mxu0 0.0
    %4262 = vmatpush1.msra.mxu0 0.0
    %4263 = vmatprep.subr.mxu0 0.0
    %4264 = vmatpush1.msra.mxu0 0.0
    %4265 = vmatprep.subr.mxu0 0.0
    %4266 = vmatpush1.msra.mxu0 0.0
    %4267 = vmatprep.subr.mxu0 0.0
    %4268 = vmatpush1.msra.mxu0 0.0
    %4269 = vmatprep.subr.mxu0 0.0
    %4270 = vmatpush1.msra.mxu0 0.0
    %4271 = vmatprep.subr.mxu0 0.0
    %4272 = vmatpush1.msra.mxu0 0.0
    %4273 = vmatprep.subr.mxu0 0.0
    %4274 = vmatpush1.msra.mxu0 0.0
    %4275 = vmatprep.subr.mxu0 0.0
    %4276 = vmatpush1.msra.mxu0 0.0
    %4277 = vmatprep.subr.mxu0 0.0
    %4278 = vmatpush1.msra.mxu0 0.0
    %4279 = vmatprep.subr.mxu0 0.0
    %4280 = vmatpush1.msra.mxu0 0.0
    %4281 = vmatprep.subr.mxu0 0.0
    %4282 = vmatpush1.msra.mxu0 0.0
    %4283 = vmatprep.subr.mxu0 0.0
    %4284 = vmatpush1.msra.mxu0 0.0
    %4285 = vmatprep.subr.mxu0 0.0
    %4286 = vmatpush1.msra.mxu0 0.0
    %4287 = vmatprep.subr.mxu0 0.0
    %4288 = vmatpush1.msra.mxu0 0.0
    %4289 = vmatprep.mubr.f32.mxu0 0.0
    %4290 = vmatmul.mubr.f32.gmra.mrb[0].mxu0 %v4223
    %v4291 = vpop.f32.mrb[0].mxu0
    %v4292 = vadd.f32 0.0, %v4291
    %v4293 = vpop.f32.mrb[0].mxu0
    %4294 = vdwg.mxu0
    %s4295 = scalar_lea.vmem %s14, 64
    %v4296 = vld [vmem:[%s4295] sm:$0xff]
    %v4297 = vld [vmem:[%s4295 + $0x8] sm:$0xff]
    %v4298 = vld [vmem:[%s4295 + $0x10] sm:$0xff]
    %v4299 = vld [vmem:[%s4295 + $0x18] sm:$0xff]
    %4300 = vmatprep.subr.mxu0 0.0
    %4301 = vmatpush1.msra.mxu0 %v4296
    %4302 = vmatprep.subr.mxu0 0.0
    %4303 = vmatpush1.msra.mxu0 %v4297
    %4304 = vmatprep.subr.mxu0 0.0
    %4305 = vmatpush1.msra.mxu0 %v4298
    %4306 = vmatprep.subr.mxu0 0.0
    %4307 = vmatpush1.msra.mxu0 %v4299
    %4308 = vmatprep.subr.mxu0 0.0
    %4309 = vmatpush1.msra.mxu0 0.0
    %4310 = vmatprep.subr.mxu0 0.0
    %4311 = vmatpush1.msra.mxu0 0.0
    %4312 = vmatprep.subr.mxu0 0.0
    %4313 = vmatpush1.msra.mxu0 0.0
    %4314 = vmatprep.subr.mxu0 0.0
    %4315 = vmatpush1.msra.mxu0 0.0
    %4316 = vmatprep.subr.mxu0 0.0
    %4317 = vmatpush1.msra.mxu0 0.0
    %4318 = vmatprep.subr.mxu0 0.0
    %4319 = vmatpush1.msra.mxu0 0.0
    %4320 = vmatprep.subr.mxu0 0.0
    %4321 = vmatpush1.msra.mxu0 0.0
    %4322 = vmatprep.subr.mxu0 0.0
    %4323 = vmatpush1.msra.mxu0 0.0
    %4324 = vmatprep.subr.mxu0 0.0
    %4325 = vmatpush1.msra.mxu0 0.0
    %4326 = vmatprep.subr.mxu0 0.0
    %4327 = vmatpush1.msra.mxu0 0.0
    %4328 = vmatprep.subr.mxu0 0.0
    %4329 = vmatpush1.msra.mxu0 0.0
    %4330 = vmatprep.subr.mxu0 0.0
    %4331 = vmatpush1.msra.mxu0 0.0
    %4332 = vmatprep.subr.mxu0 0.0
    %4333 = vmatpush1.msra.mxu0 0.0
    %4334 = vmatprep.subr.mxu0 0.0
    %4335 = vmatpush1.msra.mxu0 0.0
    %4336 = vmatprep.subr.mxu0 0.0
    %4337 = vmatpush1.msra.mxu0 0.0
    %4338 = vmatprep.subr.mxu0 0.0
    %4339 = vmatpush1.msra.mxu0 0.0
    %4340 = vmatprep.subr.mxu0 0.0
    %4341 = vmatpush1.msra.mxu0 0.0
    %4342 = vmatprep.subr.mxu0 0.0
    %4343 = vmatpush1.msra.mxu0 0.0
    %4344 = vmatprep.subr.mxu0 0.0
    %4345 = vmatpush1.msra.mxu0 0.0
    %4346 = vmatprep.subr.mxu0 0.0
    %4347 = vmatpush1.msra.mxu0 0.0
    %4348 = vmatprep.subr.mxu0 0.0
    %4349 = vmatpush1.msra.mxu0 0.0
    %4350 = vmatprep.subr.mxu0 0.0
    %4351 = vmatpush1.msra.mxu0 0.0
    %4352 = vmatprep.subr.mxu0 0.0
    %4353 = vmatpush1.msra.mxu0 0.0
    %4354 = vmatprep.subr.mxu0 0.0
    %4355 = vmatpush1.msra.mxu0 0.0
    %4356 = vmatprep.subr.mxu0 0.0
    %4357 = vmatpush1.msra.mxu0 0.0
    %4358 = vmatprep.subr.mxu0 0.0
    %4359 = vmatpush1.msra.mxu0 0.0
    %4360 = vmatprep.subr.mxu0 0.0
    %4361 = vmatpush1.msra.mxu0 0.0
    %4362 = vmatprep.subr.mxu0 0.0
    %4363 = vmatpush1.msra.mxu0 0.0
    %4364 = vmatprep.mubr.f32.mxu0 0.0
    %4365 = vmatmul.mubr.f32.gmra.mrb[0].mxu0 %v4223
    %v4366 = vpop.f32.mrb[0].mxu0
    %v4367 = vadd.f32 0.0, %v4366
    %v4368 = vpop.f32.mrb[0].mxu0
    %4369 = vdwg.mxu0
    %v4370 = vadd.f32 %v4069, %v4292
    %v4371 = vadd.f32 %v4139, %v4367
    %s4372 = scalar_lea.vmem %s12, 6
    %v4373 = vld [vmem:[%s4372] sm:$0x3]
    %v4375 = vsel %vm285, %v4373, 0
    %4377 = vmatprep.subr.mxu0 0.0
    %4378 = vmatpush1.msra.mxu0 %v3688
    %4379 = vmatprep.subr.mxu0 0.0
    %4380 = vmatpush1.msra.mxu0 0.0
    %4381 = vmatprep.subr.mxu0 0.0
    %4382 = vmatpush1.msra.mxu0 0.0
    %4383 = vmatprep.subr.mxu0 0.0
    %4384 = vmatpush1.msra.mxu0 0.0
    %4385 = vmatprep.subr.mxu0 0.0
    %4386 = vmatpush1.msra.mxu0 0.0
    %4387 = vmatprep.subr.mxu0 0.0
    %4388 = vmatpush1.msra.mxu0 0.0
    %4389 = vmatprep.subr.mxu0 0.0
    %4390 = vmatpush1.msra.mxu0 0.0
    %4391 = vmatprep.subr.mxu0 0.0
    %4392 = vmatpush1.msra.mxu0 0.0
    %4393 = vmatprep.subr.mxu0 0.0
    %4394 = vmatpush1.msra.mxu0 0.0
    %4395 = vmatprep.subr.mxu0 0.0
    %4396 = vmatpush1.msra.mxu0 0.0
    %4397 = vmatprep.subr.mxu0 0.0
    %4398 = vmatpush1.msra.mxu0 0.0
    %4399 = vmatprep.subr.mxu0 0.0
    %4400 = vmatpush1.msra.mxu0 0.0
    %4401 = vmatprep.subr.mxu0 0.0
    %4402 = vmatpush1.msra.mxu0 0.0
    %4403 = vmatprep.subr.mxu0 0.0
    %4404 = vmatpush1.msra.mxu0 0.0
    %4405 = vmatprep.subr.mxu0 0.0
    %4406 = vmatpush1.msra.mxu0 0.0
    %4407 = vmatprep.subr.mxu0 0.0
    %4408 = vmatpush1.msra.mxu0 0.0
    %4409 = vmatprep.subr.mxu0 0.0
    %4410 = vmatpush1.msra.mxu0 0.0
    %4411 = vmatprep.subr.mxu0 0.0
    %4412 = vmatpush1.msra.mxu0 0.0
    %4413 = vmatprep.subr.mxu0 0.0
    %4414 = vmatpush1.msra.mxu0 0.0
    %4415 = vmatprep.subr.mxu0 0.0
    %4416 = vmatpush1.msra.mxu0 0.0
    %4417 = vmatprep.subr.mxu0 0.0
    %4418 = vmatpush1.msra.mxu0 0.0
    %4419 = vmatprep.subr.mxu0 0.0
    %4420 = vmatpush1.msra.mxu0 0.0
    %4421 = vmatprep.subr.mxu0 0.0
    %4422 = vmatpush1.msra.mxu0 0.0
    %4423 = vmatprep.subr.mxu0 0.0
    %4424 = vmatpush1.msra.mxu0 0.0
    %4425 = vmatprep.subr.mxu0 0.0
    %4426 = vmatpush1.msra.mxu0 0.0
    %4427 = vmatprep.subr.mxu0 0.0
    %4428 = vmatpush1.msra.mxu0 0.0
    %4429 = vmatprep.subr.mxu0 0.0
    %4430 = vmatpush1.msra.mxu0 0.0
    %4431 = vmatprep.subr.mxu0 0.0
    %4432 = vmatpush1.msra.mxu0 0.0
    %4433 = vmatprep.subr.mxu0 0.0
    %4434 = vmatpush1.msra.mxu0 0.0
    %4435 = vmatprep.subr.mxu0 0.0
    %4436 = vmatpush1.msra.mxu0 0.0
    %4437 = vmatprep.subr.mxu0 0.0
    %4438 = vmatpush1.msra.mxu0 0.0
    %4439 = vmatprep.subr.mxu0 0.0
    %4440 = vmatpush1.msra.mxu0 0.0
    %4441 = vmatprep.mubr.f32.mxu0 0.0
    %4442 = vmatmul.mubr.f32.gmra.mrb[0].mxu0 %v4375
    %v4443 = vpop.f32.mrb[0].mxu0
    %v4444 = vadd.f32 0.0, %v4443
    %v4445 = vpop.f32.mrb[0].mxu0
    %4446 = vdwg.mxu0
    %s4447 = scalar_lea.vmem %s13, 96
    %v4448 = vld [vmem:[%s4447] sm:$0xff]
    %v4449 = vld [vmem:[%s4447 + $0x8] sm:$0xff]
    %v4450 = vld [vmem:[%s4447 + $0x10] sm:$0xff]
    %v4451 = vld [vmem:[%s4447 + $0x18] sm:$0xff]
    %v4453 = vsel %vm2281, %v4444, 0
    %4455 = vmatprep.subr.mxu0 0.0
    %4456 = vmatpush1.msra.mxu0 %v4448
    %4457 = vmatprep.subr.mxu0 0.0
    %4458 = vmatpush1.msra.mxu0 %v4449
    %4459 = vmatprep.subr.mxu0 0.0
    %4460 = vmatpush1.msra.mxu0 %v4450
    %4461 = vmatprep.subr.mxu0 0.0
    %4462 = vmatpush1.msra.mxu0 %v4451
    %4463 = vmatprep.subr.mxu0 0.0
    %4464 = vmatpush1.msra.mxu0 0.0
    %4465 = vmatprep.subr.mxu0 0.0
    %4466 = vmatpush1.msra.mxu0 0.0
    %4467 = vmatprep.subr.mxu0 0.0
    %4468 = vmatpush1.msra.mxu0 0.0
    %4469 = vmatprep.subr.mxu0 0.0
    %4470 = vmatpush1.msra.mxu0 0.0
    %4471 = vmatprep.subr.mxu0 0.0
    %4472 = vmatpush1.msra.mxu0 0.0
    %4473 = vmatprep.subr.mxu0 0.0
    %4474 = vmatpush1.msra.mxu0 0.0
    %4475 = vmatprep.subr.mxu0 0.0
    %4476 = vmatpush1.msra.mxu0 0.0
    %4477 = vmatprep.subr.mxu0 0.0
    %4478 = vmatpush1.msra.mxu0 0.0
    %4479 = vmatprep.subr.mxu0 0.0
    %4480 = vmatpush1.msra.mxu0 0.0
    %4481 = vmatprep.subr.mxu0 0.0
    %4482 = vmatpush1.msra.mxu0 0.0
    %4483 = vmatprep.subr.mxu0 0.0
    %4484 = vmatpush1.msra.mxu0 0.0
    %4485 = vmatprep.subr.mxu0 0.0
    %4486 = vmatpush1.msra.mxu0 0.0
    %4487 = vmatprep.subr.mxu0 0.0
    %4488 = vmatpush1.msra.mxu0 0.0
    %4489 = vmatprep.subr.mxu0 0.0
    %4490 = vmatpush1.msra.mxu0 0.0
    %4491 = vmatprep.subr.mxu0 0.0
    %4492 = vmatpush1.msra.mxu0 0.0
    %4493 = vmatprep.subr.mxu0 0.0
    %4494 = vmatpush1.msra.mxu0 0.0
    %4495 = vmatprep.subr.mxu0 0.0
    %4496 = vmatpush1.msra.mxu0 0.0
    %4497 = vmatprep.subr.mxu0 0.0
    %4498 = vmatpush1.msra.mxu0 0.0
    %4499 = vmatprep.subr.mxu0 0.0
    %4500 = vmatpush1.msra.mxu0 0.0
    %4501 = vmatprep.subr.mxu0 0.0
    %4502 = vmatpush1.msra.mxu0 0.0
    %4503 = vmatprep.subr.mxu0 0.0
    %4504 = vmatpush1.msra.mxu0 0.0
    %4505 = vmatprep.subr.mxu0 0.0
    %4506 = vmatpush1.msra.mxu0 0.0
    %4507 = vmatprep.subr.mxu0 0.0
    %4508 = vmatpush1.msra.mxu0 0.0
    %4509 = vmatprep.subr.mxu0 0.0
    %4510 = vmatpush1.msra.mxu0 0.0
    %4511 = vmatprep.subr.mxu0 0.0
    %4512 = vmatpush1.msra.mxu0 0.0
    %4513 = vmatprep.subr.mxu0 0.0
    %4514 = vmatpush1.msra.mxu0 0.0
    %4515 = vmatprep.subr.mxu0 0.0
    %4516 = vmatpush1.msra.mxu0 0.0
    %4517 = vmatprep.subr.mxu0 0.0
    %4518 = vmatpush1.msra.mxu0 0.0
    %4519 = vmatprep.mubr.f32.mxu0 0.0
    %4520 = vmatmul.mubr.f32.gmra.mrb[0].mxu0 %v4453
    %v4521 = vpop.f32.mrb[0].mxu0
    %v4522 = vadd.f32 0.0, %v4521
    %v4523 = vpop.f32.mrb[0].mxu0
    %4524 = vdwg.mxu0
    %s4525 = scalar_lea.vmem %s14, 96
    %v4526 = vld [vmem:[%s4525] sm:$0xff]
    %v4527 = vld [vmem:[%s4525 + $0x8] sm:$0xff]
    %v4528 = vld [vmem:[%s4525 + $0x10] sm:$0xff]
    %v4529 = vld [vmem:[%s4525 + $0x18] sm:$0xff]
    %4530 = vmatprep.subr.mxu0 0.0
    %4531 = vmatpush1.msra.mxu0 %v4526
    %4532 = vmatprep.subr.mxu0 0.0
    %4533 = vmatpush1.msra.mxu0 %v4527
    %4534 = vmatprep.subr.mxu0 0.0
    %4535 = vmatpush1.msra.mxu0 %v4528
    %4536 = vmatprep.subr.mxu0 0.0
    %4537 = vmatpush1.msra.mxu0 %v4529
    %4538 = vmatprep.subr.mxu0 0.0
    %4539 = vmatpush1.msra.mxu0 0.0
    %4540 = vmatprep.subr.mxu0 0.0
    %4541 = vmatpush1.msra.mxu0 0.0
    %4542 = vmatprep.subr.mxu0 0.0
    %4543 = vmatpush1.msra.mxu0 0.0
    %4544 = vmatprep.subr.mxu0 0.0
    %4545 = vmatpush1.msra.mxu0 0.0
    %4546 = vmatprep.subr.mxu0 0.0
    %4547 = vmatpush1.msra.mxu0 0.0
    %4548 = vmatprep.subr.mxu0 0.0
    %4549 = vmatpush1.msra.mxu0 0.0
    %4550 = vmatprep.subr.mxu0 0.0
    %4551 = vmatpush1.msra.mxu0 0.0
    %4552 = vmatprep.subr.mxu0 0.0
    %4553 = vmatpush1.msra.mxu0 0.0
    %4554 = vmatprep.subr.mxu0 0.0
    %4555 = vmatpush1.msra.mxu0 0.0
    %4556 = vmatprep.subr.mxu0 0.0
    %4557 = vmatpush1.msra.mxu0 0.0
    %4558 = vmatprep.subr.mxu0 0.0
    %4559 = vmatpush1.msra.mxu0 0.0
    %4560 = vmatprep.subr.mxu0 0.0
    %4561 = vmatpush1.msra.mxu0 0.0
    %4562 = vmatprep.subr.mxu0 0.0
    %4563 = vmatpush1.msra.mxu0 0.0
    %4564 = vmatprep.subr.mxu0 0.0
    %4565 = vmatpush1.msra.mxu0 0.0
    %4566 = vmatprep.subr.mxu0 0.0
    %4567 = vmatpush1.msra.mxu0 0.0
    %4568 = vmatprep.subr.mxu0 0.0
    %4569 = vmatpush1.msra.mxu0 0.0
    %4570 = vmatprep.subr.mxu0 0.0
    %4571 = vmatpush1.msra.mxu0 0.0
    %4572 = vmatprep.subr.mxu0 0.0
    %4573 = vmatpush1.msra.mxu0 0.0
    %4574 = vmatprep.subr.mxu0 0.0
    %4575 = vmatpush1.msra.mxu0 0.0
    %4576 = vmatprep.subr.mxu0 0.0
    %4577 = vmatpush1.msra.mxu0 0.0
    %4578 = vmatprep.subr.mxu0 0.0
    %4579 = vmatpush1.msra.mxu0 0.0
    %4580 = vmatprep.subr.mxu0 0.0
    %4581 = vmatpush1.msra.mxu0 0.0
    %4582 = vmatprep.subr.mxu0 0.0
    %4583 = vmatpush1.msra.mxu0 0.0
    %4584 = vmatprep.subr.mxu0 0.0
    %4585 = vmatpush1.msra.mxu0 0.0
    %4586 = vmatprep.subr.mxu0 0.0
    %4587 = vmatpush1.msra.mxu0 0.0
    %4588 = vmatprep.subr.mxu0 0.0
    %4589 = vmatpush1.msra.mxu0 0.0
    %4590 = vmatprep.subr.mxu0 0.0
    %4591 = vmatpush1.msra.mxu0 0.0
    %4592 = vmatprep.subr.mxu0 0.0
    %4593 = vmatpush1.msra.mxu0 0.0
    %4594 = vmatprep.mubr.f32.mxu0 0.0
    %4595 = vmatmul.mubr.f32.gmra.mrb[0].mxu0 %v4453
    %v4596 = vpop.f32.mrb[0].mxu0
    %v4597 = vadd.f32 0.0, %v4596
    %v4598 = vpop.f32.mrb[0].mxu0
    %4599 = vdwg.mxu0
    %v4600 = vadd.f32 %v4370, %v4522
    %v4601 = vadd.f32 %v4371, %v4597
    %v4602 = vld [vmem:[%s15] sm:$0x1]
    %v4604 = vlaneseq
    %v4605 = vshrl.u32 %v4604, 7
    %v4606 = vsub.s32 0, %v4605
    %v4607 = vrot.slane %v4602, %v4606
    %v4609 = vadd.f32 %v4600, %v4607
    %v4610 = vld [vmem:[%s16] sm:$0x1]
    %v4612 = vlaneseq
    %v4613 = vshrl.u32 %v4612, 7
    %v4614 = vsub.s32 0, %v4613
    %v4615 = vrot.slane %v4610, %v4614
    %v4617 = vadd.f32 %v4601, %v4615
    %v4618 = vmul.f32 %v4617, 0.5
    %v4619 = vmul.f32 %v4618, 1.442695
    %v4620 = vpow.pop %v4619
    %v4621 = vld [vmem:[%s17] sm:$0x3]
    %v4622 = vmul.f32 %v4621, %v4620
    %v4623 = vadd.f32 %v4622, %v4609
    %vm4624 = vcmask 58368
    %4625 = vst.msk [vmem:[#allocation2] sm:$0x3] %vm4624, %v4623
    %4626 = vst.msk [vmem:[#allocation4] sm:$0x3] %vm4624, %v4609
    %4627 = vst.msk [vmem:[#allocation6] sm:$0x3] %vm4624, %v4617
    // Predicated region
    $region74: #{encoder_forward.1} parent=1 // pred_check
      _
    $region75: #{encoder_forward.1} parent=1 // pred_check_branch
      %4629 = sbr.rel (0) target = $region77
    $region76: #{encoder_forward.1} parent=1 // pred_region
      %s4631 = ssub.s32 32, 32
      %4632 = vsyncadd [#allocation3], %s4631
      %s4634 = sshll.u32 [#allocation2], 4
      %s4635 = int_to_ptr.vmem [resolvable:$true] %s4634
      %4637 = dma.vmem_to_hbm [thread:$0]  %s4635, 32, %s18, [#allocation3]
    $region77: #{encoder_forward.1} parent=1 // pred_fallthru
      _
    // Predicated region
    $region78: #{encoder_forward.1} parent=1 // pred_check
      _
    $region79: #{encoder_forward.1} parent=1 // pred_check_branch
      %4639 = sbr.rel (0) target = $region81
    $region80: #{encoder_forward.1} parent=1 // pred_region
      %s4641 = ssub.s32 32, 32
      %4642 = vsyncadd [#allocation5], %s4641
      %s4644 = sshll.u32 [#allocation4], 4
      %s4645 = int_to_ptr.vmem [resolvable:$true] %s4644
      %4647 = dma.vmem_to_hbm [thread:$0]  %s4645, 32, %s19, [#allocation5]
    $region81: #{encoder_forward.1} parent=1 // pred_fallthru
      _
    // Predicated region
    $region82: #{encoder_forward.1} parent=1 // pred_check
      _
    $region83: #{encoder_forward.1} parent=1 // pred_check_branch
      %4649 = sbr.rel (0) target = $region85
    $region84: #{encoder_forward.1} parent=1 // pred_region
      %s4651 = ssub.s32 32, 32
      %4652 = vsyncadd [#allocation5], %s4651
      %s4654 = sshll.u32 [#allocation6], 4
      %s4655 = int_to_ptr.vmem [resolvable:$true] %s4654
      %4657 = dma.vmem_to_hbm [thread:$0]  %s4655, 32, %s20, [#allocation5]
    $region85: #{encoder_forward.1} parent=1 // pred_fallthru
      _
    // Predicated region
    $region86: #{encoder_forward.1} parent=1 // pred_check
      _
    $region87: #{encoder_forward.1} parent=1 // pred_check_branch
      %4659 = sbr.rel (0) target = $region89
    $region88: #{encoder_forward.1} parent=1 // pred_region
      %4660 = dma.done [#allocation3], 32
    $region89: #{encoder_forward.1} parent=1 // pred_fallthru
      _
    // Predicated region
    $region90: #{encoder_forward.1} parent=1 // pred_check
      _
    $region91: #{encoder_forward.1} parent=1 // pred_check_branch
      %4662 = sbr.rel (0) target = $region93
    $region92: #{encoder_forward.1} parent=1 // pred_region
      %4663 = dma.done [#allocation5], 32
    $region93: #{encoder_forward.1} parent=1 // pred_fallthru
      _
    // Predicated region
    $region94: #{encoder_forward.1} parent=1 // pred_check
      _
    $region95: #{encoder_forward.1} parent=1 // pred_check_branch
      %4665 = sbr.rel (0) target = $region97
    $region96: #{encoder_forward.1} parent=1 // pred_region
      %4666 = dma.done [#allocation5], 32
    $region97: #{encoder_forward.1} parent=1 // pred_fallthru
      _
    %4667 = vsyncpa [#allocation3], 1
    %4668 = vsyncpa [#allocation5], 1

</llo_original>
